<compile_context>
chip_gen: v7x
topology: tpu7x:2x2x1
jax: 0.10.0
libtpu: 0.0.40
codegen_flags: <defaults>
</compile_context>

<pallas_src>
import functools

import jax
import jax.numpy as jnp
from jax.experimental import pallas as pl
from jax.experimental.pallas import tpu as pltpu

H1, H2 = 500, 300            # LSTM hidden sizes (torch)
H1P, H2P = 512, 384          # gate/hidden widths padded to multiples of 128 lanes
LIN1P = 128                  # linear1 out / LSTM2 in, padded 100 -> 128
HEADP = 128                  # lane-dense head widths (linear2 out 60 -> 128, logits 2 -> 128)
_UNROLL_T = 4                # static unroll up to this T, lax.fori_loop beyond


# --------------------------------------------------------------------------
# Fused Pallas kernel
# --------------------------------------------------------------------------

def _fused_forward_kernel(x_ref, wih1_ref, whh1_hbm, b1_ref,
                          lin1_wt_hbm, lin1_b_ref,
                          wih2_hbm, whh2_hbm, b2_ref,
                          lin2_wt_ref, lin2_b_ref, lin3_wt_ref, lin3_b_ref,
                          out_ref,
                          x1p_ref, z1_ref, x2p_ref,
                          whh1_v, lin1_wt_v, wih2_v, whh2_v, dma_sems,
                          *, T, Bp, collecting):
    """Whole LSTMLinear forward in one kernel invocation (grid=()).

    x_ref        : (T*Bp, 185) f32, time-major, batch padded to Bp (VMEM)
    wih1/b1      : (185, 4*H1P) bf16 / (1, 4*H1P) f32  (VMEM)
    whh1/lin1_wt/wih2/whh2 : raw HBM refs (memory_space=pl.ANY), bf16,
                   manually DMA'd into whh1_v/lin1_wt_v/wih2_v/whh2_v so the
                   copies overlap the earlier compute.
    lin2/lin3    : (H2P, HEADP)/(HEADP, HEADP) bf16 + (1, HEADP) f32 biases
    out_ref      : (T*Bp, H2P) if collecting else (Bp, HEADP), f32
    x1p/z1/x2p   : f32 VMEM scratch for hoisted projections and LSTM1 outputs
    """
    bf16 = jnp.bfloat16

    # Kick off the HBM->VMEM copies of weights that are not needed immediately.
    cp_whh1 = pltpu.make_async_copy(whh1_hbm, whh1_v, dma_sems.at[0])
    cp_lin1 = pltpu.make_async_copy(lin1_wt_hbm, lin1_wt_v, dma_sems.at[1])
    cp_wih2 = pltpu.make_async_copy(wih2_hbm, wih2_v, dma_sems.at[2])
    cp_whh2 = pltpu.make_async_copy(whh2_hbm, whh2_v, dma_sems.at[3])
    cp_whh1.start()
    cp_lin1.start()
    cp_wih2.start()
    cp_whh2.start()

    def lstm_cell(gates, c, hp):
        # PyTorch gate order i, f, g, o; each gate spans hp (128-aligned) lanes.
        i_g = jax.nn.sigmoid(gates[:, 0 * hp:1 * hp])
        f_g = jax.nn.sigmoid(gates[:, 1 * hp:2 * hp])
        g_g = jnp.tanh(gates[:, 2 * hp:3 * hp])
        o_g = jax.nn.sigmoid(gates[:, 3 * hp:4 * hp])
        c_new = f_g * c + i_g * g_g
        h_new = o_g * jnp.tanh(c_new)
        return h_new, c_new

    def recurrence(xp_ref, whh_vref, hp, store):
        """T LSTM steps; per-step matmul LHS cast to bf16, gate math kept f32."""
        def step(carry, start):
            h, c = carry
            g = xp_ref[pl.ds(start, Bp), :] + jnp.dot(
                h.astype(bf16), whh_vref[...],
                preferred_element_type=jnp.float32)
            h, c = lstm_cell(g, c, hp)
            if store is not None:
                store(start, h)
            return h, c

        h = jnp.zeros((Bp, hp), jnp.float32)
        c = jnp.zeros((Bp, hp), jnp.float32)
        if T <= _UNROLL_T:                       # short sequences: static unroll
            for t in range(T):
                h, c = step((h, c), t * Bp)
        else:                                    # long sequences: carried fori_loop
            def body(t, carry):
                return step(carry, pl.multiple_of(t * Bp, Bp))
            h, c = jax.lax.fori_loop(0, T, body, (h, c), unroll=2)
        return h

    # ---- LSTM1 input projection, hoisted out of the recurrence (one matmul) --
    x1p_ref[...] = (jnp.dot(x_ref[...].astype(bf16), wih1_ref[...],
                            preferred_element_type=jnp.float32)
                    + b1_ref[...])

    # whh1 is first needed here; its DMA ran under the projection above.
    cp_whh1.wait()

    # ---- LSTM1 recurrence ----------------------------------------------------
    def store_z1(start, h):
        z1_ref[pl.ds(start, Bp), :] = h
    recurrence(x1p_ref, whh1_v, H1P, store_z1)

    # LSTM2 / linear1 weights were DMA'd under the LSTM1 recurrence.
    cp_lin1.wait()
    cp_wih2.wait()
    cp_whh2.wait()

    # ---- linear1 + ReLU, then LSTM2 input projection (batched over T*Bp) -----
    a1 = jnp.maximum(
        jnp.dot(z1_ref[...].astype(bf16), lin1_wt_v[...],
                preferred_element_type=jnp.float32) + lin1_b_ref[...], 0.0)
    x2p_ref[...] = (jnp.dot(a1.astype(bf16), wih2_v[...],
                            preferred_element_type=jnp.float32)
                    + b2_ref[...])

    # ---- LSTM2 recurrence (+ head on the non-collecting path) ---------------
    if collecting:
        def store_out(start, h):
            out_ref[pl.ds(start, Bp), :] = h     # lane-dense (H2P) store
        recurrence(x2p_ref, whh2_v, H2P, store_out)
    else:
        h = recurrence(x2p_ref, whh2_v, H2P, None)
        a2 = jnp.maximum(
            jnp.dot(h.astype(bf16), lin2_wt_ref[...],
                    preferred_element_type=jnp.float32) + lin2_b_ref[...], 0.0)
        out_ref[...] = (jnp.dot(a2.astype(bf16), lin3_wt_ref[...],
                                preferred_element_type=jnp.float32)
                        + lin3_b_ref[...])       # lane-dense (HEADP) store


# --------------------------------------------------------------------------
# One-time parameter preparation (layout plumbing off the latency path)
# --------------------------------------------------------------------------

def _fuse_lstm_gates(w_ih, w_hh, b_ih, b_hh, h, hp, in_pad=None):
    """torch (4H, Din)/(4H, H) gate-stacked weights -> fused, transposed,
    gate-padded bf16 (Din_pad, 4*HP) / (HP, 4*HP) and f32 bias (1, 4*HP)."""
    din = w_ih.shape[1]
    in_pad = din if in_pad is None else in_pad

    def prep(w, in_dim, in_padded):
        w4 = w.reshape(4, h, in_dim)                     # (4, H, in)
        w4 = jnp.transpose(w4, (2, 0, 1))                # (in, 4, H)
        w4 = jnp.pad(w4, ((0, in_padded - in_dim), (0, 0), (0, hp - h)))
        return w4.reshape(in_padded, 4 * hp).astype(jnp.bfloat16)

    wih = prep(w_ih, din, in_pad)
    whh = prep(w_hh, h, hp)
    b = jnp.pad((b_ih + b_hh).reshape(4, h), ((0, 0), (0, hp - h)))
    return wih, whh, b.reshape(1, 4 * hp).astype(jnp.float32)


def prepare_params(p):
    wih1, whh1, b1 = _fuse_lstm_gates(p["lstm1_wih"], p["lstm1_whh"],
                                      p["lstm1_bih"], p["lstm1_bhh"], H1, H1P)
    wih2, whh2, b2 = _fuse_lstm_gates(p["lstm2_wih"], p["lstm2_whh"],
                                      p["lstm2_bih"], p["lstm2_bhh"], H2, H2P,
                                      in_pad=LIN1P)
    lin1_wt = jnp.pad(p["lin1_w"].T, ((0, H1P - H1), (0, LIN1P - 100)))
    lin2_wt = jnp.pad(p["lin2_w"].T, ((0, H2P - H2), (0, HEADP - 60)))
    lin3_wt = jnp.pad(p["lin3_w"].T, ((0, HEADP - 60), (0, HEADP - 2)))
    return {
        "wih1": wih1, "whh1": whh1, "b1": b1,
        "lin1_wt": lin1_wt.astype(jnp.bfloat16),
        "lin1_b": jnp.pad(p["lin1_b"], (0, LIN1P - 100)).reshape(1, -1),
        "wih2": wih2, "whh2": whh2, "b2": b2,
        "lin2_wt": lin2_wt.astype(jnp.bfloat16),
        "lin2_b": jnp.pad(p["lin2_b"], (0, HEADP - 60)).reshape(1, -1),
        "lin3_wt": lin3_wt.astype(jnp.bfloat16),
        "lin3_b": jnp.pad(p["lin3_b"], (0, HEADP - 2)).reshape(1, -1),
    }


# --------------------------------------------------------------------------
# Forward wrapper (single pallas_call)
# --------------------------------------------------------------------------

def lstm_linear_forward(x, prep, collecting=False, info=1):
    T, B, Din = x.shape
    # Pad batch to 8 sublanes.  NOTE (perf): the per-step recurrence matmul is
    # weight-push-bound at small Bp -- batching more sequences per call (toward
    # 128 rows on v5e, 256 on v6e/v7x) is nearly free and cuts per-sample latency.
    Bp = ((B + 7) // 8) * 8
    x_p = jnp.pad(x, ((0, 0), (0, Bp - B), (0, 0))).reshape(T * Bp, Din)

    if collecting:
        out_shape = jax.ShapeDtypeStruct((T * Bp, H2P), jnp.float32)
    else:
        # torch: z.view(1, batch, info*300) -- only valid for seq_len == 1.
        assert T == 1, "non-collecting path requires seq_len == 1 (torch .view)"
        assert info == 1, "only info == 1 is supported"
        out_shape = jax.ShapeDtypeStruct((Bp, HEADP), jnp.float32)

    vmem_spec = pl.BlockSpec(memory_space=pltpu.MemorySpace.VMEM)
    any_spec = pl.BlockSpec(memory_space=pl.ANY)     # raw HBM ref, manual DMA
    in_specs = [
        vmem_spec,                       # x
        vmem_spec, any_spec, vmem_spec,  # wih1, whh1 (overlapped), b1
        any_spec, vmem_spec,             # lin1_wt (overlapped), lin1_b
        any_spec, any_spec, vmem_spec,   # wih2, whh2 (overlapped), b2
        vmem_spec, vmem_spec,            # lin2_wt, lin2_b
        vmem_spec, vmem_spec,            # lin3_wt, lin3_b
    ]

    kernel = functools.partial(_fused_forward_kernel,
                               T=T, Bp=Bp, collecting=collecting)
    out = pl.pallas_call(
        kernel,
        out_shape=out_shape,
        in_specs=in_specs,
        out_specs=vmem_spec,
        scratch_shapes=[
            pltpu.VMEM((T * Bp, 4 * H1P), jnp.float32),   # hoisted LSTM1 proj
            pltpu.VMEM((T * Bp, H1P), jnp.float32),       # LSTM1 outputs
            pltpu.VMEM((T * Bp, 4 * H2P), jnp.float32),   # hoisted LSTM2 proj
            pltpu.VMEM((H1P, 4 * H1P), jnp.bfloat16),     # whh1 landing buffer
            pltpu.VMEM((H1P, LIN1P), jnp.bfloat16),       # lin1_wt landing buffer
            pltpu.VMEM((LIN1P, 4 * H2P), jnp.bfloat16),   # wih2 landing buffer
            pltpu.VMEM((H2P, 4 * H2P), jnp.bfloat16),     # whh2 landing buffer
            pltpu.SemaphoreType.DMA((4,)),
        ],
        compiler_params=pltpu.CompilerParams(
            vmem_limit_bytes=32 * 1024 * 1024),           # fits v7x 64 MiB VMEM
    )(x_p, prep["wih1"], prep["whh1"], prep["b1"],
      prep["lin1_wt"], prep["lin1_b"],
      prep["wih2"], prep["whh2"], prep["b2"],
      prep["lin2_wt"], prep["lin2_b"], prep["lin3_wt"], prep["lin3_b"])

    if collecting:
        return out.reshape(T, Bp, H2P)[:, :B, :H2]
    return out[:B, :2].reshape(1, B, 2)


# --------------------------------------------------------------------------
# Parameters (deterministic, matching torch init shapes / ranges)
# --------------------------------------------------------------------------

def init_params(key):
    ks = jax.random.split(key, 14)

    def u(k, shape, lim):
        return jax.random.uniform(k, shape, jnp.float32, minval=-lim, maxval=lim)

    s1 = 1.0 / (500.0 ** 0.5)   # torch LSTM default init range
    s2 = 1.0 / (300.0 ** 0.5)
    R = 0.5                      # init_weights() range for Linear layers
    return {
        "lstm1_wih": u(ks[0], (4 * 500, 185), s1),
        "lstm1_whh": u(ks[1], (4 * 500, 500), s1),
        "lstm1_bih": u(ks[2], (4 * 500,), s1),
        "lstm1_bhh": u(ks[3], (4 * 500,), s1),
        "lstm2_wih": u(ks[4], (4 * 300, 100), s2),
        "lstm2_whh": u(ks[5], (4 * 300, 300), s2),
        "lstm2_bih": u(ks[6], (4 * 300,), s2),
        "lstm2_bhh": u(ks[7], (4 * 300,), s2),
        "lin1_w": u(ks[8], (100, 500), R), "lin1_b": u(ks[9], (100,), R),
        "lin2_w": u(ks[10], (60, 300), R), "lin2_b": u(ks[11], (60,), R),
        "lin3_w": u(ks[12], (2, 60), R),   "lin3_b": u(ks[13], (2,), R),
    }


# --------------------------------------------------------------------------
# Pure-JAX references
# --------------------------------------------------------------------------

def _f32dot(a, b):
    return jnp.dot(a, b, preferred_element_type=jnp.float32)


def _bdot(a, b):
    # Mirrors the kernel's numerics: bf16 operands, f32 MXU accumulation.
    return jnp.dot(a.astype(jnp.bfloat16), b.astype(jnp.bfloat16),
                   preferred_element_type=jnp.float32)


def _lstm_ref(x, w_ih, w_hh, b_ih, b_hh, h0, c0, dot_fn):
    wih_t, whh_t, b = w_ih.T, w_hh.T, b_ih + b_hh

    def step(carry, xt):
        h, c = carry
        g = (dot_fn(xt, wih_t) + b) + dot_fn(h, whh_t)
        i_g, f_g, g_g, o_g = jnp.split(g, 4, axis=-1)
        c = jax.nn.sigmoid(f_g) * c + jax.nn.sigmoid(i_g) * jnp.tanh(g_g)
        h = jax.nn.sigmoid(o_g) * jnp.tanh(c)
        return (h, c), h
    (_, _), ys = jax.lax.scan(step, (h0, c0), x)
    return ys


def lstm_linear_forward_ref(x, p, collecting=False, info=1, dot_fn=_f32dot):
    T, B, _ = x.shape
    z = _lstm_ref(x, p["lstm1_wih"], p["lstm1_whh"], p["lstm1_bih"],
                  p["lstm1_bhh"], jnp.zeros((B, H1)), jnp.zeros((B, H1)), dot_fn)
    z = jnp.maximum(dot_fn(z, p["lin1_w"].T) + p["lin1_b"], 0.0)
    z = _lstm_ref(z, p["lstm2_wih"], p["lstm2_whh"], p["lstm2_bih"],
                  p["lstm2_bhh"], jnp.zeros((B, H2)), jnp.zeros((B, H2)), dot_fn)
    if not collecting:
        zz = z.reshape(B, info * H2)
        zz = jnp.maximum(dot_fn(zz, p["lin2_w"].T) + p["lin2_b"], 0.0)
        zz = dot_fn(zz, p["lin3_w"].T) + p["lin3_b"]
        z = zz.reshape(1, B, 2)
    return z


# --------------------------------------------------------------------------

if __name__ == "__main__":
    key = jax.random.PRNGKey(0)
    pkey, xkey1, xkey2 = jax.random.split(key, 3)
    params = init_params(pkey)
    prep = prepare_params(params)    # one-time layout/bf16 prep (off latency path)

    # Default (non-collecting) path: seq_len must be 1 (torch .view constraint).
    x1 = jax.random.normal(xkey1, (1, 4, 185), jnp.float32)   # [T=1, B=4, F=185]
    out1 = jax.block_until_ready(lstm_linear_forward(x1, prep, collecting=False))

    # Collecting path exercises the in-kernel fori_loop recurrence (T > 4).
    x2 = jax.random.normal(xkey2, (6, 2, 185), jnp.float32)   # [T=6, B=2, F=185]
    out2 = jax.block_until_ready(lstm_linear_forward(x2, prep, collecting=True))

    assert out1.shape == (1, 4, 2)
    assert out2.shape == (6, 2, 300)

    # Primary check: against a reference applying the same bf16-weight numerics.
    ref1_q = lstm_linear_forward_ref(x1, params, collecting=False, dot_fn=_bdot)
    ref2_q = lstm_linear_forward_ref(x2, params, collecting=True, dot_fn=_bdot)
    if not bool(jnp.allclose(out1, ref1_q, rtol=5e-3, atol=5e-3)):
        raise AssertionError("Pallas output (non-collecting) mismatch vs bf16 reference")
    if not bool(jnp.allclose(out2, ref2_q, rtol=5e-3, atol=5e-3)):
        raise AssertionError("Pallas output (collecting) mismatch vs bf16 reference")

    # Coarse sanity bound vs the pure-f32 torch-semantics reference
    # (difference here is bf16 weight quantization only, not a kernel error).
    ref1 = lstm_linear_forward_ref(x1, params, collecting=False)
    ref2 = lstm_linear_forward_ref(x2, params, collecting=True)
    if not bool(jnp.allclose(out1, ref1, rtol=2e-1, atol=2e-1)):
        raise AssertionError("bf16 quantization drift too large (non-collecting)")
    if not bool(jnp.allclose(out2, ref2, rtol=2e-1, atol=2e-1)):
        raise AssertionError("bf16 quantization drift too large (collecting)")

    print("KERNEL_OK")
</pallas_src>

<mosaic_0001>
module attributes {stable_mosaic.version = 11 : i64} {
  func.func @_fused_forward_kernel(%arg0: memref<8x185xf32, #tpu.memory_space<vmem>>, %arg1: memref<185x2048xbf16, #tpu.memory_space<vmem>>, %arg2: memref<512x2048xbf16, #tpu.memory_space<any>>, %arg3: memref<1x2048xf32, #tpu.memory_space<vmem>>, %arg4: memref<512x128xbf16, #tpu.memory_space<any>>, %arg5: memref<1x128xf32, #tpu.memory_space<vmem>>, %arg6: memref<128x1536xbf16, #tpu.memory_space<any>>, %arg7: memref<384x1536xbf16, #tpu.memory_space<any>>, %arg8: memref<1x1536xf32, #tpu.memory_space<vmem>>, %arg9: memref<384x128xbf16, #tpu.memory_space<vmem>>, %arg10: memref<1x128xf32, #tpu.memory_space<vmem>>, %arg11: memref<128x128xbf16, #tpu.memory_space<vmem>>, %arg12: memref<1x128xf32, #tpu.memory_space<vmem>>, %arg13: memref<8x128xf32, #tpu.memory_space<vmem>>, %arg14: memref<8x2048xf32, #tpu.memory_space<vmem>>, %arg15: memref<8x512xf32, #tpu.memory_space<vmem>>, %arg16: memref<8x1536xf32, #tpu.memory_space<vmem>>, %arg17: memref<512x2048xbf16, #tpu.memory_space<vmem>>, %arg18: memref<512x128xbf16, #tpu.memory_space<vmem>>, %arg19: memref<128x1536xbf16, #tpu.memory_space<vmem>>, %arg20: memref<384x1536xbf16, #tpu.memory_space<vmem>>, %arg21: memref<4x!tpu.dma_semaphore, #tpu.memory_space<semaphore_mem>>) attributes {dimension_semantics = [], scalar_prefetch = 0 : i64, scratch_operands = 8 : i64, tpu.core_type = #tpu.core_type<tc>} {
    %c0_i32 = arith.constant 0 : i32
    %0 = tpu.memref_slice %arg21[%c0_i32] : memref<4x!tpu.dma_semaphore, #tpu.memory_space<semaphore_mem>> -> memref<1x!tpu.dma_semaphore, #tpu.memory_space<semaphore_mem>>
    %1 = tpu.memref_squeeze %0 : memref<1x!tpu.dma_semaphore, #tpu.memory_space<semaphore_mem>> -> memref<!tpu.dma_semaphore, #tpu.memory_space<semaphore_mem>>
    tpu.enqueue_dma source(%arg2 : memref<512x2048xbf16, #tpu.memory_space<any>>) target(%arg17 : memref<512x2048xbf16, #tpu.memory_space<vmem>>) target_semaphore(%1 : memref<!tpu.dma_semaphore, #tpu.memory_space<semaphore_mem>>)
    %c1_i32 = arith.constant 1 : i32
    %2 = tpu.memref_slice %arg21[%c1_i32] : memref<4x!tpu.dma_semaphore, #tpu.memory_space<semaphore_mem>> -> memref<1x!tpu.dma_semaphore, #tpu.memory_space<semaphore_mem>>
    %3 = tpu.memref_squeeze %2 : memref<1x!tpu.dma_semaphore, #tpu.memory_space<semaphore_mem>> -> memref<!tpu.dma_semaphore, #tpu.memory_space<semaphore_mem>>
    tpu.enqueue_dma source(%arg4 : memref<512x128xbf16, #tpu.memory_space<any>>) target(%arg18 : memref<512x128xbf16, #tpu.memory_space<vmem>>) target_semaphore(%3 : memref<!tpu.dma_semaphore, #tpu.memory_space<semaphore_mem>>)
    %c2_i32 = arith.constant 2 : i32
    %4 = tpu.memref_slice %arg21[%c2_i32] : memref<4x!tpu.dma_semaphore, #tpu.memory_space<semaphore_mem>> -> memref<1x!tpu.dma_semaphore, #tpu.memory_space<semaphore_mem>>
    %5 = tpu.memref_squeeze %4 : memref<1x!tpu.dma_semaphore, #tpu.memory_space<semaphore_mem>> -> memref<!tpu.dma_semaphore, #tpu.memory_space<semaphore_mem>>
    tpu.enqueue_dma source(%arg6 : memref<128x1536xbf16, #tpu.memory_space<any>>) target(%arg19 : memref<128x1536xbf16, #tpu.memory_space<vmem>>) target_semaphore(%5 : memref<!tpu.dma_semaphore, #tpu.memory_space<semaphore_mem>>)
    %c3_i32 = arith.constant 3 : i32
    %6 = tpu.memref_slice %arg21[%c3_i32] : memref<4x!tpu.dma_semaphore, #tpu.memory_space<semaphore_mem>> -> memref<1x!tpu.dma_semaphore, #tpu.memory_space<semaphore_mem>>
    %7 = tpu.memref_squeeze %6 : memref<1x!tpu.dma_semaphore, #tpu.memory_space<semaphore_mem>> -> memref<!tpu.dma_semaphore, #tpu.memory_space<semaphore_mem>>
    tpu.enqueue_dma source(%arg7 : memref<384x1536xbf16, #tpu.memory_space<any>>) target(%arg20 : memref<384x1536xbf16, #tpu.memory_space<vmem>>) target_semaphore(%7 : memref<!tpu.dma_semaphore, #tpu.memory_space<semaphore_mem>>)
    %c0 = arith.constant 0 : index
    %c0_0 = arith.constant 0 : index
    %8 = vector.load %arg0[%c0, %c0_0] : memref<8x185xf32, #tpu.memory_space<vmem>>, vector<8x185xf32>
    %9 = arith.truncf %8 : vector<8x185xf32> to vector<8x185xbf16>
    %c0_1 = arith.constant 0 : index
    %c0_2 = arith.constant 0 : index
    %10 = vector.load %arg1[%c0_1, %c0_2] : memref<185x2048xbf16, #tpu.memory_space<vmem>>, vector<185x2048xbf16>
    %cst = arith.constant dense<0.000000e+00> : vector<8x2048xf32>
    %11 = tpu.matmul %9, %10, %cst {dimension_numbers = #tpu.dot_dimension_numbers<[1], [0], [0], [1], [0, 0, 1, 1], [], []>} : vector<8x185xbf16>, vector<185x2048xbf16>, vector<8x2048xf32> -> vector<8x2048xf32>
    %c0_3 = arith.constant 0 : index
    %c0_4 = arith.constant 0 : index
    %12 = vector.load %arg3[%c0_3, %c0_4] : memref<1x2048xf32, #tpu.memory_space<vmem>>, vector<1x2048xf32>
    %13 = vector.broadcast %12 : vector<1x2048xf32> to vector<8x2048xf32>
    %14 = arith.addf %11, %13 : vector<8x2048xf32>
    %c0_5 = arith.constant 0 : index
    %c0_6 = arith.constant 0 : index
    %15 = vector.load %arg14[%c0_5, %c0_6] : memref<8x2048xf32, #tpu.memory_space<vmem>>, vector<8x2048xf32>
    tpu.vector_store %arg14[%c0_5, %c0_6], %14 {strides = array<i32>} : memref<8x2048xf32, #tpu.memory_space<vmem>>, vector<8x2048xf32>,
    %c0_i32_7 = arith.constant 0 : i32
    %16 = tpu.memref_slice %arg21[%c0_i32_7] : memref<4x!tpu.dma_semaphore, #tpu.memory_space<semaphore_mem>> -> memref<1x!tpu.dma_semaphore, #tpu.memory_space<semaphore_mem>>
    %17 = tpu.memref_squeeze %16 : memref<1x!tpu.dma_semaphore, #tpu.memory_space<semaphore_mem>> -> memref<!tpu.dma_semaphore, #tpu.memory_space<semaphore_mem>>
    tpu.wait_dma2 semaphore(%17 : memref<!tpu.dma_semaphore, #tpu.memory_space<semaphore_mem>>) src(%arg2 : memref<512x2048xbf16, #tpu.memory_space<any>>) dst(%arg17 : memref<512x2048xbf16, #tpu.memory_space<vmem>>)
    %cst_8 = arith.constant 0.000000e+00 : f32
    %18 = vector.broadcast %cst_8 : f32 to vector<8x512xf32>
    %cst_9 = arith.constant 0.000000e+00 : f32
    %19 = vector.broadcast %cst_9 : f32 to vector<8x512xf32>
    %c0_10 = arith.constant 0 : index
    %c0_11 = arith.constant 0 : index
    %20 = vector.load %arg14[%c0_10, %c0_11] : memref<8x2048xf32, #tpu.memory_space<vmem>>, vector<8x2048xf32>
    %21 = arith.truncf %18 : vector<8x512xf32> to vector<8x512xbf16>
    %c0_12 = arith.constant 0 : index
    %c0_13 = arith.constant 0 : index
    %22 = vector.load %arg17[%c0_12, %c0_13] : memref<512x2048xbf16, #tpu.memory_space<vmem>>, vector<512x2048xbf16>
    %cst_14 = arith.constant dense<0.000000e+00> : vector<8x2048xf32>
    %23 = tpu.matmul %21, %22, %cst_14 {dimension_numbers = #tpu.dot_dimension_numbers<[1], [0], [0], [1], [0, 0, 1, 1], [], []>} : vector<8x512xbf16>, vector<512x2048xbf16>, vector<8x2048xf32> -> vector<8x2048xf32>
    %24 = arith.addf %20, %23 : vector<8x2048xf32>
    %25 = vector.extract_strided_slice %24 {offsets = [0, 0], sizes = [8, 512], strides = [1, 1]} : vector<8x2048xf32> to vector<8x512xf32>
    %26 = arith.negf %25 : vector<8x512xf32>
    %27 = math.exp %26 : vector<8x512xf32>
    %cst_15 = arith.constant 1.000000e+00 : f32
    %28 = vector.broadcast %cst_15 : f32 to vector<8x512xf32>
    %29 = arith.addf %28, %27 : vector<8x512xf32>
    %30 = arith.divf %28, %29 : vector<8x512xf32>
    %31 = vector.extract_strided_slice %24 {offsets = [0, 512], sizes = [8, 512], strides = [1, 1]} : vector<8x2048xf32> to vector<8x512xf32>
    %32 = arith.negf %31 : vector<8x512xf32>
    %33 = math.exp %32 : vector<8x512xf32>
    %cst_16 = arith.constant 1.000000e+00 : f32
    %34 = vector.broadcast %cst_16 : f32 to vector<8x512xf32>
    %35 = arith.addf %34, %33 : vector<8x512xf32>
    %36 = arith.divf %34, %35 : vector<8x512xf32>
    %37 = vector.extract_strided_slice %24 {offsets = [0, 1024], sizes = [8, 512], strides = [1, 1]} : vector<8x2048xf32> to vector<8x512xf32>
    %38 = math.tanh %37 : vector<8x512xf32>
    %39 = vector.extract_strided_slice %24 {offsets = [0, 1536], sizes = [8, 512], strides = [1, 1]} : vector<8x2048xf32> to vector<8x512xf32>
    %40 = arith.negf %39 : vector<8x512xf32>
    %41 = math.exp %40 : vector<8x512xf32>
    %cst_17 = arith.constant 1.000000e+00 : f32
    %42 = vector.broadcast %cst_17 : f32 to vector<8x512xf32>
    %43 = arith.addf %42, %41 : vector<8x512xf32>
    %44 = arith.divf %42, %43 : vector<8x512xf32>
    %45 = arith.mulf %36, %19 : vector<8x512xf32>
    %46 = arith.mulf %30, %38 : vector<8x512xf32>
    %47 = arith.addf %45, %46 : vector<8x512xf32>
    %48 = math.tanh %47 : vector<8x512xf32>
    %49 = arith.mulf %44, %48 : vector<8x512xf32>
    %c0_18 = arith.constant 0 : index
    %c0_19 = arith.constant 0 : index
    %50 = vector.load %arg15[%c0_18, %c0_19] : memref<8x512xf32, #tpu.memory_space<vmem>>, vector<8x512xf32>
    tpu.vector_store %arg15[%c0_18, %c0_19], %49 {strides = array<i32>} : memref<8x512xf32, #tpu.memory_space<vmem>>, vector<8x512xf32>,
    %c1_i32_20 = arith.constant 1 : i32
    %51 = tpu.memref_slice %arg21[%c1_i32_20] : memref<4x!tpu.dma_semaphore, #tpu.memory_space<semaphore_mem>> -> memref<1x!tpu.dma_semaphore, #tpu.memory_space<semaphore_mem>>
    %52 = tpu.memref_squeeze %51 : memref<1x!tpu.dma_semaphore, #tpu.memory_space<semaphore_mem>> -> memref<!tpu.dma_semaphore, #tpu.memory_space<semaphore_mem>>
    tpu.wait_dma2 semaphore(%52 : memref<!tpu.dma_semaphore, #tpu.memory_space<semaphore_mem>>) src(%arg4 : memref<512x128xbf16, #tpu.memory_space<any>>) dst(%arg18 : memref<512x128xbf16, #tpu.memory_space<vmem>>)
    %c2_i32_21 = arith.constant 2 : i32
    %53 = tpu.memref_slice %arg21[%c2_i32_21] : memref<4x!tpu.dma_semaphore, #tpu.memory_space<semaphore_mem>> -> memref<1x!tpu.dma_semaphore, #tpu.memory_space<semaphore_mem>>
    %54 = tpu.memref_squeeze %53 : memref<1x!tpu.dma_semaphore, #tpu.memory_space<semaphore_mem>> -> memref<!tpu.dma_semaphore, #tpu.memory_space<semaphore_mem>>
    tpu.wait_dma2 semaphore(%54 : memref<!tpu.dma_semaphore, #tpu.memory_space<semaphore_mem>>) src(%arg6 : memref<128x1536xbf16, #tpu.memory_space<any>>) dst(%arg19 : memref<128x1536xbf16, #tpu.memory_space<vmem>>)
    %c3_i32_22 = arith.constant 3 : i32
    %55 = tpu.memref_slice %arg21[%c3_i32_22] : memref<4x!tpu.dma_semaphore, #tpu.memory_space<semaphore_mem>> -> memref<1x!tpu.dma_semaphore, #tpu.memory_space<semaphore_mem>>
    %56 = tpu.memref_squeeze %55 : memref<1x!tpu.dma_semaphore, #tpu.memory_space<semaphore_mem>> -> memref<!tpu.dma_semaphore, #tpu.memory_space<semaphore_mem>>
    tpu.wait_dma2 semaphore(%56 : memref<!tpu.dma_semaphore, #tpu.memory_space<semaphore_mem>>) src(%arg7 : memref<384x1536xbf16, #tpu.memory_space<any>>) dst(%arg20 : memref<384x1536xbf16, #tpu.memory_space<vmem>>)
    %c0_23 = arith.constant 0 : index
    %c0_24 = arith.constant 0 : index
    %57 = vector.load %arg15[%c0_23, %c0_24] : memref<8x512xf32, #tpu.memory_space<vmem>>, vector<8x512xf32>
    %58 = arith.truncf %57 : vector<8x512xf32> to vector<8x512xbf16>
    %c0_25 = arith.constant 0 : index
    %c0_26 = arith.constant 0 : index
    %59 = vector.load %arg18[%c0_25, %c0_26] : memref<512x128xbf16, #tpu.memory_space<vmem>>, vector<512x128xbf16>
    %cst_27 = arith.constant dense<0.000000e+00> : vector<8x128xf32>
    %60 = tpu.matmul %58, %59, %cst_27 {dimension_numbers = #tpu.dot_dimension_numbers<[1], [0], [0], [1], [0, 0, 1, 1], [], []>} : vector<8x512xbf16>, vector<512x128xbf16>, vector<8x128xf32> -> vector<8x128xf32>
    %c0_28 = arith.constant 0 : index
    %c0_29 = arith.constant 0 : index
    %61 = vector.load %arg5[%c0_28, %c0_29] : memref<1x128xf32, #tpu.memory_space<vmem>>, vector<1x128xf32>
    %62 = vector.broadcast %61 : vector<1x128xf32> to vector<8x128xf32>
    %63 = arith.addf %60, %62 : vector<8x128xf32>
    %cst_30 = arith.constant 0.000000e+00 : f32
    %64 = vector.broadcast %cst_30 : f32 to vector<8x128xf32>
    %65 = arith.maximumf %63, %64 : vector<8x128xf32>
    %66 = arith.truncf %65 : vector<8x128xf32> to vector<8x128xbf16>
    %c0_31 = arith.constant 0 : index
    %c0_32 = arith.constant 0 : index
    %67 = vector.load %arg19[%c0_31, %c0_32] : memref<128x1536xbf16, #tpu.memory_space<vmem>>, vector<128x1536xbf16>
    %cst_33 = arith.constant dense<0.000000e+00> : vector<8x1536xf32>
    %68 = tpu.matmul %66, %67, %cst_33 {dimension_numbers = #tpu.dot_dimension_numbers<[1], [0], [0], [1], [0, 0, 1, 1], [], []>} : vector<8x128xbf16>, vector<128x1536xbf16>, vector<8x1536xf32> -> vector<8x1536xf32>
    %c0_34 = arith.constant 0 : index
    %c0_35 = arith.constant 0 : index
    %69 = vector.load %arg8[%c0_34, %c0_35] : memref<1x1536xf32, #tpu.memory_space<vmem>>, vector<1x1536xf32>
    %70 = vector.broadcast %69 : vector<1x1536xf32> to vector<8x1536xf32>
    %71 = arith.addf %68, %70 : vector<8x1536xf32>
    %c0_36 = arith.constant 0 : index
    %c0_37 = arith.constant 0 : index
    %72 = vector.load %arg16[%c0_36, %c0_37] : memref<8x1536xf32, #tpu.memory_space<vmem>>, vector<8x1536xf32>
    tpu.vector_store %arg16[%c0_36, %c0_37], %71 {strides = array<i32>} : memref<8x1536xf32, #tpu.memory_space<vmem>>, vector<8x1536xf32>,
    %cst_38 = arith.constant 0.000000e+00 : f32
    %73 = vector.broadcast %cst_38 : f32 to vector<8x384xf32>
    %cst_39 = arith.constant 0.000000e+00 : f32
    %74 = vector.broadcast %cst_39 : f32 to vector<8x384xf32>
    %c0_40 = arith.constant 0 : index
    %c0_41 = arith.constant 0 : index
    %75 = vector.load %arg16[%c0_40, %c0_41] : memref<8x1536xf32, #tpu.memory_space<vmem>>, vector<8x1536xf32>
    %76 = arith.truncf %73 : vector<8x384xf32> to vector<8x384xbf16>
    %c0_42 = arith.constant 0 : index
    %c0_43 = arith.constant 0 : index
    %77 = vector.load %arg20[%c0_42, %c0_43] : memref<384x1536xbf16, #tpu.memory_space<vmem>>, vector<384x1536xbf16>
    %cst_44 = arith.constant dense<0.000000e+00> : vector<8x1536xf32>
    %78 = tpu.matmul %76, %77, %cst_44 {dimension_numbers = #tpu.dot_dimension_numbers<[1], [0], [0], [1], [0, 0, 1, 1], [], []>} : vector<8x384xbf16>, vector<384x1536xbf16>, vector<8x1536xf32> -> vector<8x1536xf32>
    %79 = arith.addf %75, %78 : vector<8x1536xf32>
    %80 = vector.extract_strided_slice %79 {offsets = [0, 0], sizes = [8, 384], strides = [1, 1]} : vector<8x1536xf32> to vector<8x384xf32>
    %81 = arith.negf %80 : vector<8x384xf32>
    %82 = math.exp %81 : vector<8x384xf32>
    %cst_45 = arith.constant 1.000000e+00 : f32
    %83 = vector.broadcast %cst_45 : f32 to vector<8x384xf32>
    %84 = arith.addf %83, %82 : vector<8x384xf32>
    %85 = arith.divf %83, %84 : vector<8x384xf32>
    %86 = vector.extract_strided_slice %79 {offsets = [0, 384], sizes = [8, 384], strides = [1, 1]} : vector<8x1536xf32> to vector<8x384xf32>
    %87 = arith.negf %86 : vector<8x384xf32>
    %88 = math.exp %87 : vector<8x384xf32>
    %cst_46 = arith.constant 1.000000e+00 : f32
    %89 = vector.broadcast %cst_46 : f32 to vector<8x384xf32>
    %90 = arith.addf %89, %88 : vector<8x384xf32>
    %91 = arith.divf %89, %90 : vector<8x384xf32>
    %92 = vector.extract_strided_slice %79 {offsets = [0, 768], sizes = [8, 384], strides = [1, 1]} : vector<8x1536xf32> to vector<8x384xf32>
    %93 = math.tanh %92 : vector<8x384xf32>
    %94 = vector.extract_strided_slice %79 {offsets = [0, 1152], sizes = [8, 384], strides = [1, 1]} : vector<8x1536xf32> to vector<8x384xf32>
    %95 = arith.negf %94 : vector<8x384xf32>
    %96 = math.exp %95 : vector<8x384xf32>
    %cst_47 = arith.constant 1.000000e+00 : f32
    %97 = vector.broadcast %cst_47 : f32 to vector<8x384xf32>
    %98 = arith.addf %97, %96 : vector<8x384xf32>
    %99 = arith.divf %97, %98 : vector<8x384xf32>
    %100 = arith.mulf %91, %74 : vector<8x384xf32>
    %101 = arith.mulf %85, %93 : vector<8x384xf32>
    %102 = arith.addf %100, %101 : vector<8x384xf32>
    %103 = math.tanh %102 : vector<8x384xf32>
    %104 = arith.mulf %99, %103 : vector<8x384xf32>
    %105 = arith.truncf %104 : vector<8x384xf32> to vector<8x384xbf16>
    %c0_48 = arith.constant 0 : index
    %c0_49 = arith.constant 0 : index
    %106 = vector.load %arg9[%c0_48, %c0_49] : memref<384x128xbf16, #tpu.memory_space<vmem>>, vector<384x128xbf16>
    %cst_50 = arith.constant dense<0.000000e+00> : vector<8x128xf32>
    %107 = tpu.matmul %105, %106, %cst_50 {dimension_numbers = #tpu.dot_dimension_numbers<[1], [0], [0], [1], [0, 0, 1, 1], [], []>} : vector<8x384xbf16>, vector<384x128xbf16>, vector<8x128xf32> -> vector<8x128xf32>
    %c0_51 = arith.constant 0 : index
    %c0_52 = arith.constant 0 : index
    %108 = vector.load %arg10[%c0_51, %c0_52] : memref<1x128xf32, #tpu.memory_space<vmem>>, vector<1x128xf32>
    %109 = vector.broadcast %108 : vector<1x128xf32> to vector<8x128xf32>
    %110 = arith.addf %107, %109 : vector<8x128xf32>
    %cst_53 = arith.constant 0.000000e+00 : f32
    %111 = vector.broadcast %cst_53 : f32 to vector<8x128xf32>
    %112 = arith.maximumf %110, %111 : vector<8x128xf32>
    %113 = arith.truncf %112 : vector<8x128xf32> to vector<8x128xbf16>
    %c0_54 = arith.constant 0 : index
    %c0_55 = arith.constant 0 : index
    %114 = vector.load %arg11[%c0_54, %c0_55] : memref<128x128xbf16, #tpu.memory_space<vmem>>, vector<128x128xbf16>
    %cst_56 = arith.constant dense<0.000000e+00> : vector<8x128xf32>
    %115 = tpu.matmul %113, %114, %cst_56 {dimension_numbers = #tpu.dot_dimension_numbers<[1], [0], [0], [1], [0, 0, 1, 1], [], []>} : vector<8x128xbf16>, vector<128x128xbf16>, vector<8x128xf32> -> vector<8x128xf32>
    %c0_57 = arith.constant 0 : index
    %c0_58 = arith.constant 0 : index
    %116 = vector.load %arg12[%c0_57, %c0_58] : memref<1x128xf32, #tpu.memory_space<vmem>>, vector<1x128xf32>
    %117 = vector.broadcast %116 : vector<1x128xf32> to vector<8x128xf32>
    %118 = arith.addf %115, %117 : vector<8x128xf32>
    %c0_59 = arith.constant 0 : index
    %c0_60 = arith.constant 0 : index
    %119 = vector.load %arg13[%c0_59, %c0_60] : memref<8x128xf32, #tpu.memory_space<vmem>>, vector<8x128xf32>
    tpu.vector_store %arg13[%c0_59, %c0_60], %118 {strides = array<i32>} : memref<8x128xf32, #tpu.memory_space<vmem>>, vector<8x128xf32>,
    return
  }
}

</mosaic_0001>

<llo_original>
// kernel: tpu_custom_call.1
$region0: #{tpu_custom_call.1}
  #allocation0 [shape = 'u32[]', space=smem, size = 0x4, offset = 0x4, fixed_abs, tag = 'smem constant byte address 0x4 - core index']
  #allocation1 [shape = 'u32[144,128]{1,0:T(1,128)}', space=vmem, size = 0x12000, scoped, tag = 'internal scratch']
  #allocation2 [shape = 'f32[8,2048]{1,0:T(8,128)}', space=vmem, size = 0x10000, scoped, tag = 'scratch operand']
  #allocation3 [shape = 'f32[8,512]{1,0:T(8,128)}', space=vmem, size = 0x4000, scoped, tag = 'scratch operand']
  #allocation4 [shape = 'f32[8,1536]{1,0:T(8,128)}', space=vmem, size = 0xc000, scoped, tag = 'scratch operand']
  #allocation5 [shape = 'bf16[512,2048]{1,0:T(16,128)(2,1)}', space=vmem, size = 0x200000, scoped, tag = 'scratch operand']
  #allocation6 [shape = 'bf16[512,128]{1,0:T(16,128)(2,1)}', space=vmem, size = 0x20000, scoped, tag = 'scratch operand']
  #allocation7 [shape = 'bf16[128,1536]{1,0:T(16,128)(2,1)}', space=vmem, size = 0x60000, scoped, tag = 'scratch operand']
  #allocation8 [shape = 'bf16[384,1536]{1,0:T(16,128)(2,1)}', space=vmem, size = 0x120000, scoped, tag = 'scratch operand']
  #allocation9 [shape = 's32[4]{0}', space=sflag, size = 0x10, scoped, tag = 'scratch operand']
  #allocation26 [shape = 's32[]', space=sflag, size = 0x4, offset = 0, fixed_abs, tag = 'sflag constant byte address 0x0 - dummy sync flag']
  #allocation28 [shape = 's32[]', space=sflag, size = 0x4, offset = 0, fixed_abs, tag = 'sflag constant byte address 0x0 - dummy sync flag']
  #allocation29 [shape = 's32[]', space=sflag, size = 0x4, offset = 0, fixed_abs, tag = 'sflag constant byte address 0x0 - dummy sync flag']
  #allocation30 [shape = 'u32[]', space=smem, size = 0x4, offset = 0x44, fixed_abs, tag = 'smem constant byte address 0x44 - assertion arg 0']
  #allocation31 [shape = 'u32[]', space=smem, size = 0x4, offset = 0x48, fixed_abs, tag = 'smem constant byte address 0x48 - assertion arg 1']
  #allocation32 [shape = 's32[]', space=sflag, size = 0x4, offset = 0, fixed_abs, tag = 'sflag constant byte address 0x0 - dummy sync flag']
  #allocation34 [shape = 's32[]', space=sflag, size = 0x4, offset = 0, fixed_abs, tag = 'sflag constant byte address 0x0 - dummy sync flag']
  %s0 = inlined_call_operand.hbm [shape: f32[8,185], index: 0, kind: input, shape index: {}]
  %s1 = inlined_call_operand.hbm [shape: bf16[185,2048], index: 1, kind: input, shape index: {}]
  %s2 = inlined_call_operand.hbm [shape: bf16[512,2048], index: 2, kind: input, shape index: {}]
  %s3 = inlined_call_operand.hbm [shape: f32[1,2048], index: 3, kind: input, shape index: {}]
  %s4 = inlined_call_operand.hbm [shape: bf16[512,128], index: 4, kind: input, shape index: {}]
  %s5 = inlined_call_operand.hbm [shape: f32[1,128], index: 5, kind: input, shape index: {}]
  %s6 = inlined_call_operand.hbm [shape: bf16[128,1536], index: 6, kind: input, shape index: {}]
  %s7 = inlined_call_operand.hbm [shape: bf16[384,1536], index: 7, kind: input, shape index: {}]
  %s8 = inlined_call_operand.hbm [shape: f32[1,1536], index: 8, kind: input, shape index: {}]
  %s9 = inlined_call_operand.hbm [shape: bf16[384,128], index: 9, kind: input, shape index: {}]
  %s10 = inlined_call_operand.hbm [shape: f32[1,128], index: 10, kind: input, shape index: {}]
  %s11 = inlined_call_operand.hbm [shape: bf16[128,128], index: 11, kind: input, shape index: {}]
  %s12 = inlined_call_operand.hbm [shape: f32[1,128], index: 12, kind: input, shape index: {}]
  %s13 = inlined_call_operand.hbm [shape: f32[8,128], index: 13, kind: output, shape index: {}]
  %s14 = sld [smem:[#allocation0]]
  $region86: #{tpu_custom_call.1} parent=0
    _
  %s16 = ssub.s32 1, %s14
  %s17 = scalar_select 0, %s16, %s14
  $region1: #{tpu_custom_call.1} parent=0
    #allocation10 [shape = 'u8[8192]{0}', space=vmem, size = 0x2000, scoped, tag = 'input window, operand 0, single buffered']
    #allocation11 [shape = 's32[1]{0}', space=sflag, size = 0x4, scoped, tag = 'scoped memory for tpu_custom_call.1']
    #allocation12 [shape = 's32[1]{0}', space=sflag, size = 0x4, scoped, tag = 'scoped memory for tpu_custom_call.1']
    #allocation13 [shape = 'u8[786432]{0}', space=vmem, size = 0xc0000, scoped, tag = 'input window, operand 1, single buffered']
    #allocation14 [shape = 's32[1]{0}', space=sflag, size = 0x4, scoped, tag = 'scoped memory for tpu_custom_call.1']
    #allocation15 [shape = 'u8[8192]{0}', space=vmem, size = 0x2000, scoped, tag = 'input window, operand 3, single buffered']
    #allocation16 [shape = 'u8[512]{0}', space=vmem, size = 0x400, scoped, tag = 'input window, operand 5, single buffered']
    #allocation17 [shape = 's32[1]{0}', space=sflag, size = 0x4, scoped, tag = 'scoped memory for tpu_custom_call.1']
    #allocation18 [shape = 'u8[6144]{0}', space=vmem, size = 0x1800, scoped, tag = 'input window, operand 8, single buffered']
    #allocation19 [shape = 'u8[98304]{0}', space=vmem, size = 0x18000, scoped, tag = 'input window, operand 9, single buffered']
    #allocation20 [shape = 's32[1]{0}', space=sflag, size = 0x4, scoped, tag = 'scoped memory for tpu_custom_call.1']
    #allocation21 [shape = 'u8[512]{0}', space=vmem, size = 0x400, scoped, tag = 'input window, operand 10, single buffered']
    #allocation22 [shape = 'u8[32768]{0}', space=vmem, size = 0x8000, scoped, tag = 'input window, operand 11, single buffered']
    #allocation23 [shape = 's32[1]{0}', space=sflag, size = 0x4, scoped, tag = 'scoped memory for tpu_custom_call.1']
    #allocation24 [shape = 'u8[512]{0}', space=vmem, size = 0x400, scoped, tag = 'input window, operand 12, single buffered']
    #allocation25 [shape = 'u8[4096]{0}', space=vmem, size = 0x1000, scoped, tag = 'output window, operand 0, single buffered']
    #allocation27 [shape = 'u32[9]{0}', space=smem, size = 0x24, scoped, tag = 'DMA stride descriptor']
    #allocation33 [shape = 'u32[9]{0}', space=smem, size = 0x24, scoped, tag = 'DMA stride descriptor']
    #allocation35 [shape = 'u32[9]{0}', space=smem, size = 0x24, scoped, tag = 'DMA stride descriptor']
    %18 = vsyncpa [#allocation11], 0
    %19 = vsyncpa [#allocation14], 0
    %20 = vsyncpa [#allocation17], 0
    %21 = vsyncpa [#allocation20], 0
    %22 = vsyncpa [#allocation23], 0
    %23 = vsyncpa [#allocation12], 0
    // Predicated region
    $region2: #{tpu_custom_call.1} parent=1 // pred_check
      _
    $region3: #{tpu_custom_call.1} parent=1 // pred_check_branch
      %25 = sbr.rel (0) target = $region5
    $region4: #{tpu_custom_call.1} parent=1 // pred_region
      %s27 = ssub.s32 256, 256
      %28 = vsyncadd [#allocation11], %s27
      %s30 = sshll.u32 [#allocation10], 4
      %s31 = int_to_ptr.vmem [resolvable:$true] %s30
      %33 = dma.hbm_to_vmem [thread:$0]  %s0, 256, %s31, [#allocation11]
    $region5: #{tpu_custom_call.1} parent=1 // pred_fallthru
      _
    // Predicated region
    $region6: #{tpu_custom_call.1} parent=1 // pred_check
      _
    $region7: #{tpu_custom_call.1} parent=1 // pred_check_branch
      %35 = sbr.rel (0) target = $region9
    $region8: #{tpu_custom_call.1} parent=1 // pred_region
      %s37 = ssub.s32 24576, 24576
      %38 = vsyncadd [#allocation14], %s37
      %s39 = sshll.u32 [#allocation13], 4
      %s40 = int_to_ptr.vmem [resolvable:$true] %s39
      %45 = dma.hbm_to_vmem [thread:$0]  %s1, 24576, %s40, [#allocation14], 1024, 1024, 64
    $region9: #{tpu_custom_call.1} parent=1 // pred_fallthru
      _
    // Predicated region
    $region10: #{tpu_custom_call.1} parent=1 // pred_check
      _
    $region11: #{tpu_custom_call.1} parent=1 // pred_check_branch
      %47 = sbr.rel (0) target = $region13
    $region12: #{tpu_custom_call.1} parent=1 // pred_region
      %s49 = ssub.s32 256, 256
      %50 = vsyncadd [#allocation14], %s49
      %s52 = sshll.u32 [#allocation15], 4
      %s53 = int_to_ptr.vmem [resolvable:$true] %s52
      %55 = dma.hbm_to_vmem [thread:$0]  %s3, 256, %s53, [#allocation14]
    $region13: #{tpu_custom_call.1} parent=1 // pred_fallthru
      _
    // Predicated region
    $region14: #{tpu_custom_call.1} parent=1 // pred_check
      _
    $region15: #{tpu_custom_call.1} parent=1 // pred_check_branch
      %57 = sbr.rel (0) target = $region17
    $region16: #{tpu_custom_call.1} parent=1 // pred_region
      %s59 = ssub.s32 16, 16
      %60 = vsyncadd [#allocation17], %s59
      %s62 = sshll.u32 [#allocation16], 4
      %s63 = int_to_ptr.vmem [resolvable:$true] %s62
      %65 = dma.hbm_to_vmem [thread:$0]  %s5, 16, %s63, [#allocation17]
    $region17: #{tpu_custom_call.1} parent=1 // pred_fallthru
      _
    // Predicated region
    $region18: #{tpu_custom_call.1} parent=1 // pred_check
      _
    $region19: #{tpu_custom_call.1} parent=1 // pred_check_branch
      %67 = sbr.rel (0) target = $region21
    $region20: #{tpu_custom_call.1} parent=1 // pred_region
      %s69 = ssub.s32 192, 192
      %70 = vsyncadd [#allocation17], %s69
      %s72 = sshll.u32 [#allocation18], 4
      %s73 = int_to_ptr.vmem [resolvable:$true] %s72
      %75 = dma.hbm_to_vmem [thread:$0]  %s8, 192, %s73, [#allocation17]
    $region21: #{tpu_custom_call.1} parent=1 // pred_fallthru
      _
    // Predicated region
    $region22: #{tpu_custom_call.1} parent=1 // pred_check
      _
    $region23: #{tpu_custom_call.1} parent=1 // pred_check_branch
      %77 = sbr.rel (0) target = $region25
    $region24: #{tpu_custom_call.1} parent=1 // pred_region
      %s79 = ssub.s32 3072, 3072
      %80 = vsyncadd [#allocation20], %s79
      %s81 = sshll.u32 [#allocation19], 4
      %s82 = int_to_ptr.vmem [resolvable:$true] %s81
      %87 = dma.hbm_to_vmem [thread:$0]  %s9, 3072, %s82, [#allocation20], 64, 64, 4
    $region25: #{tpu_custom_call.1} parent=1 // pred_fallthru
      _
    // Predicated region
    $region26: #{tpu_custom_call.1} parent=1 // pred_check
      _
    $region27: #{tpu_custom_call.1} parent=1 // pred_check_branch
      %89 = sbr.rel (0) target = $region29
    $region28: #{tpu_custom_call.1} parent=1 // pred_region
      %s91 = ssub.s32 16, 16
      %92 = vsyncadd [#allocation20], %s91
      %s94 = sshll.u32 [#allocation21], 4
      %s95 = int_to_ptr.vmem [resolvable:$true] %s94
      %97 = dma.hbm_to_vmem [thread:$0]  %s10, 16, %s95, [#allocation20]
    $region29: #{tpu_custom_call.1} parent=1 // pred_fallthru
      _
    // Predicated region
    $region30: #{tpu_custom_call.1} parent=1 // pred_check
      _
    $region31: #{tpu_custom_call.1} parent=1 // pred_check_branch
      %99 = sbr.rel (0) target = $region33
    $region32: #{tpu_custom_call.1} parent=1 // pred_region
      %s101 = ssub.s32 1024, 1024
      %102 = vsyncadd [#allocation23], %s101
      %s103 = sshll.u32 [#allocation22], 4
      %s104 = int_to_ptr.vmem [resolvable:$true] %s103
      %109 = dma.hbm_to_vmem [thread:$0]  %s11, 1024, %s104, [#allocation23], 64, 64, 4
    $region33: #{tpu_custom_call.1} parent=1 // pred_fallthru
      _
    // Predicated region
    $region34: #{tpu_custom_call.1} parent=1 // pred_check
      _
    $region35: #{tpu_custom_call.1} parent=1 // pred_check_branch
      %111 = sbr.rel (0) target = $region37
    $region36: #{tpu_custom_call.1} parent=1 // pred_region
      %s113 = ssub.s32 16, 16
      %114 = vsyncadd [#allocation23], %s113
      %s116 = sshll.u32 [#allocation24], 4
      %s117 = int_to_ptr.vmem [resolvable:$true] %s116
      %119 = dma.hbm_to_vmem [thread:$0]  %s12, 16, %s117, [#allocation23]
    $region37: #{tpu_custom_call.1} parent=1 // pred_fallthru
      _
    // Predicated region
    $region38: #{tpu_custom_call.1} parent=1 // pred_check
      _
    $region39: #{tpu_custom_call.1} parent=1 // pred_check_branch
      %121 = sbr.rel (0) target = $region41
    $region40: #{tpu_custom_call.1} parent=1 // pred_region
      %122 = dma.done [#allocation11], 256
    $region41: #{tpu_custom_call.1} parent=1 // pred_fallthru
      _
    // Predicated region
    $region42: #{tpu_custom_call.1} parent=1 // pred_check
      _
    $region43: #{tpu_custom_call.1} parent=1 // pred_check_branch
      %124 = sbr.rel (0) target = $region45
    $region44: #{tpu_custom_call.1} parent=1 // pred_region
      %125 = dma.done [#allocation14], 24576
    $region45: #{tpu_custom_call.1} parent=1 // pred_fallthru
      _
    // Predicated region
    $region46: #{tpu_custom_call.1} parent=1 // pred_check
      _
    $region47: #{tpu_custom_call.1} parent=1 // pred_check_branch
      %127 = sbr.rel (0) target = $region49
    $region48: #{tpu_custom_call.1} parent=1 // pred_region
      %128 = dma.done [#allocation14], 256
    $region49: #{tpu_custom_call.1} parent=1 // pred_fallthru
      _
    // Predicated region
    $region50: #{tpu_custom_call.1} parent=1 // pred_check
      _
    $region51: #{tpu_custom_call.1} parent=1 // pred_check_branch
      %130 = sbr.rel (0) target = $region53
    $region52: #{tpu_custom_call.1} parent=1 // pred_region
      %131 = dma.done [#allocation17], 16
    $region53: #{tpu_custom_call.1} parent=1 // pred_fallthru
      _
    // Predicated region
    $region54: #{tpu_custom_call.1} parent=1 // pred_check
      _
    $region55: #{tpu_custom_call.1} parent=1 // pred_check_branch
      %133 = sbr.rel (0) target = $region57
    $region56: #{tpu_custom_call.1} parent=1 // pred_region
      %134 = dma.done [#allocation17], 192
    $region57: #{tpu_custom_call.1} parent=1 // pred_fallthru
      _
    // Predicated region
    $region58: #{tpu_custom_call.1} parent=1 // pred_check
      _
    $region59: #{tpu_custom_call.1} parent=1 // pred_check_branch
      %136 = sbr.rel (0) target = $region61
    $region60: #{tpu_custom_call.1} parent=1 // pred_region
      %137 = dma.done [#allocation20], 3072
    $region61: #{tpu_custom_call.1} parent=1 // pred_fallthru
      _
    // Predicated region
    $region62: #{tpu_custom_call.1} parent=1 // pred_check
      _
    $region63: #{tpu_custom_call.1} parent=1 // pred_check_branch
      %139 = sbr.rel (0) target = $region65
    $region64: #{tpu_custom_call.1} parent=1 // pred_region
      %140 = dma.done [#allocation20], 16
    $region65: #{tpu_custom_call.1} parent=1 // pred_fallthru
      _
    // Predicated region
    $region66: #{tpu_custom_call.1} parent=1 // pred_check
      _
    $region67: #{tpu_custom_call.1} parent=1 // pred_check_branch
      %142 = sbr.rel (0) target = $region69
    $region68: #{tpu_custom_call.1} parent=1 // pred_region
      %143 = dma.done [#allocation23], 1024
    $region69: #{tpu_custom_call.1} parent=1 // pred_fallthru
      _
    // Predicated region
    $region70: #{tpu_custom_call.1} parent=1 // pred_check
      _
    $region71: #{tpu_custom_call.1} parent=1 // pred_check_branch
      %145 = sbr.rel (0) target = $region73
    $region72: #{tpu_custom_call.1} parent=1 // pred_region
      %146 = dma.done [#allocation23], 16
    $region73: #{tpu_custom_call.1} parent=1 // pred_fallthru
      _
    %s149 = sshll.u32 1, 14
    %s150 = sxor.u32 4294967295, %s149
    %s152 = sld [smem:[#allocation0]]
    %s153 = sadd.s32 2, %s152
    %s155 = sshll.u32 7, 26
    %s156 = sxor.u32 4294967295, %s155
    %s157 = sand.u32 0, %s156
    %s158 = sshll.u32 %s153, 26
    %s159 = sor.u32 %s157, %s158
    %s160 = sshll.u32 [#allocation5], 4
    %s161 = int_to_ptr.vmem [resolvable:$true] %s160
    %164 = sst [smem:[#allocation27]] 2048
    %s165 = scalar_lea.smem [#allocation27], 1
    %166 = sst [smem:[%s165]] 2048
    %s167 = scalar_lea.smem [#allocation27], 2
    %168 = sst [smem:[%s167]] 16
    %s169 = scalar_lea.smem [#allocation27], 3
    %170 = sst [smem:[%s169]] 64
    %s171 = scalar_lea.smem [#allocation27], 4
    %172 = sst [smem:[%s171]] 128
    %s173 = scalar_lea.smem [#allocation27], 5
    %174 = sst [smem:[%s173]] 2
    %s175 = scalar_lea.smem [#allocation27], 6
    %176 = sst [smem:[%s175]] 1024
    %s177 = scalar_lea.smem [#allocation27], 7
    %178 = sst [smem:[%s177]] 64
    %s179 = scalar_lea.smem [#allocation27], 8
    %180 = sst [smem:[%s179]] 4
    %182 = dma.general %s2, 65536, %s161, [#allocation9], [#allocation26], [#allocation27], %s159, 0
    %s183 = scalar_lea.sflag [#allocation9], 1
    // Predicated region
    $region74: #{tpu_custom_call.1} parent=1 // pred_check
      _
    $region75: #{tpu_custom_call.1} parent=1 // pred_check_branch
      %185 = sbr.rel target = $region77
    $region76: #{tpu_custom_call.1} parent=1 // pred_region
      %186 = sst [smem:[#allocation30]] [#allocation29]
      %187 = sst [smem:[#allocation31]] [#allocation28]
    $region77: #{tpu_custom_call.1} parent=1 // pred_fallthru
      _
    %189 = shalt.err (0)
    %s191 = sshll.u32 [#allocation6], 4
    %s192 = int_to_ptr.vmem [resolvable:$true] %s191
    %194 = dma.hbm_to_vmem [thread:$0]  %s4, 4096, %s192, %s183
    %s195 = scalar_lea.sflag [#allocation9], 2
    %s197 = sshll.u32 1, 14
    %s198 = sxor.u32 4294967295, %s197
    %s200 = sadd.s32 2, %s152
    %s202 = sshll.u32 7, 26
    %s203 = sxor.u32 4294967295, %s202
    %s204 = sand.u32 0, %s203
    %s205 = sshll.u32 %s200, 26
    %s206 = sor.u32 %s204, %s205
    %s207 = sshll.u32 [#allocation7], 4
    %s208 = int_to_ptr.vmem [resolvable:$true] %s207
    %211 = sst [smem:[#allocation33]] 1536
    %s212 = scalar_lea.smem [#allocation33], 1
    %213 = sst [smem:[%s212]] 1536
    %s214 = scalar_lea.smem [#allocation33], 2
    %215 = sst [smem:[%s214]] 12
    %s216 = scalar_lea.smem [#allocation33], 3
    %217 = sst [smem:[%s216]] 64
    %s218 = scalar_lea.smem [#allocation33], 4
    %219 = sst [smem:[%s218]] 128
    %s220 = scalar_lea.smem [#allocation33], 5
    %221 = sst [smem:[%s220]] 2
    %s222 = scalar_lea.smem [#allocation33], 6
    %223 = sst [smem:[%s222]] 768
    %s224 = scalar_lea.smem [#allocation33], 7
    %225 = sst [smem:[%s224]] 64
    %s226 = scalar_lea.smem [#allocation33], 8
    %227 = sst [smem:[%s226]] 4
    %229 = dma.general %s6, 12288, %s208, %s195, [#allocation32], [#allocation33], %s206, 0
    %s230 = scalar_lea.sflag [#allocation9], 3
    %s232 = sshll.u32 1, 14
    %s233 = sxor.u32 4294967295, %s232
    %s235 = sadd.s32 2, %s152
    %s237 = sshll.u32 7, 26
    %s238 = sxor.u32 4294967295, %s237
    %s239 = sand.u32 0, %s238
    %s240 = sshll.u32 %s235, 26
    %s241 = sor.u32 %s239, %s240
    %s242 = sshll.u32 [#allocation8], 4
    %s243 = int_to_ptr.vmem [resolvable:$true] %s242
    %246 = sst [smem:[#allocation35]] 1536
    %s247 = scalar_lea.smem [#allocation35], 1
    %248 = sst [smem:[%s247]] 1536
    %s249 = scalar_lea.smem [#allocation35], 2
    %250 = sst [smem:[%s249]] 12
    %s251 = scalar_lea.smem [#allocation35], 3
    %252 = sst [smem:[%s251]] 64
    %s253 = scalar_lea.smem [#allocation35], 4
    %254 = sst [smem:[%s253]] 128
    %s255 = scalar_lea.smem [#allocation35], 5
    %256 = sst [smem:[%s255]] 2
    %s257 = scalar_lea.smem [#allocation35], 6
    %258 = sst [smem:[%s257]] 768
    %s259 = scalar_lea.smem [#allocation35], 7
    %260 = sst [smem:[%s259]] 64
    %s261 = scalar_lea.smem [#allocation35], 8
    %262 = sst [smem:[%s261]] 4
    %264 = dma.general %s7, 36864, %s243, %s230, [#allocation34], [#allocation35], %s241, 0
    %v265 = vld [vmem:[#allocation10] sm:$0xff]
    %v266 = vld [vmem:[#allocation10 + $0x8] sm:$0xff]
    %v267 = vpack.c.bf16 %v265, %v265
    %v268 = vpack.c.bf16 %v266, %v266
    %v269 = vld [vmem:[#allocation13] sm:$0xff]
    %v270 = vld [vmem:[#allocation13 + $0x8] sm:$0xff]
    %v271 = vld [vmem:[#allocation13 + $0x10] sm:$0xff]
    %v272 = vld [vmem:[#allocation13 + $0x18] sm:$0xff]
    %v273 = vld [vmem:[#allocation13 + $0x20] sm:$0xff]
    %v274 = vld [vmem:[#allocation13 + $0x28] sm:$0xff]
    %v275 = vld [vmem:[#allocation13 + $0x30] sm:$0xff]
    %v276 = vld [vmem:[#allocation13 + $0x38] sm:$0xff]
    %v277 = vld [vmem:[#allocation13 + $0x40] sm:$0xff]
    %v278 = vld [vmem:[#allocation13 + $0x48] sm:$0xff]
    %v279 = vld [vmem:[#allocation13 + $0x50] sm:$0xff]
    %v280 = vld [vmem:[#allocation13 + $0x58] sm:$0xff]
    %v281 = vld [vmem:[#allocation13 + $0x60] sm:$0xff]
    %v282 = vld [vmem:[#allocation13 + $0x68] sm:$0xff]
    %v283 = vld [vmem:[#allocation13 + $0x70] sm:$0xff]
    %v284 = vld [vmem:[#allocation13 + $0x78] sm:$0xff]
    %v285 = vld [vmem:[#allocation13 + $0x80] sm:$0xff]
    %v286 = vld [vmem:[#allocation13 + $0x88] sm:$0xff]
    %v287 = vld [vmem:[#allocation13 + $0x90] sm:$0xff]
    %v288 = vld [vmem:[#allocation13 + $0x98] sm:$0xff]
    %v289 = vld [vmem:[#allocation13 + $0xa0] sm:$0xff]
    %v290 = vld [vmem:[#allocation13 + $0xa8] sm:$0xff]
    %v291 = vld [vmem:[#allocation13 + $0xb0] sm:$0xff]
    %v292 = vld [vmem:[#allocation13 + $0xb8] sm:$0xff]
    %v293 = vld [vmem:[#allocation13 + $0xc0] sm:$0xff]
    %v294 = vld [vmem:[#allocation13 + $0xc8] sm:$0xff]
    %v295 = vld [vmem:[#allocation13 + $0xd0] sm:$0xff]
    %v296 = vld [vmem:[#allocation13 + $0xd8] sm:$0xff]
    %v297 = vld [vmem:[#allocation13 + $0xe0] sm:$0xff]
    %v298 = vld [vmem:[#allocation13 + $0xe8] sm:$0xff]
    %v299 = vld [vmem:[#allocation13 + $0xf0] sm:$0xff]
    %v300 = vld [vmem:[#allocation13 + $0xf8] sm:$0xff]
    %v301 = vld [vmem:[#allocation13 + $0x100] sm:$0xff]
    %v302 = vld [vmem:[#allocation13 + $0x108] sm:$0xff]
    %v303 = vld [vmem:[#allocation13 + $0x110] sm:$0xff]
    %v304 = vld [vmem:[#allocation13 + $0x118] sm:$0xff]
    %v305 = vld [vmem:[#allocation13 + $0x120] sm:$0xff]
    %v306 = vld [vmem:[#allocation13 + $0x128] sm:$0xff]
    %v307 = vld [vmem:[#allocation13 + $0x130] sm:$0xff]
    %v308 = vld [vmem:[#allocation13 + $0x138] sm:$0xff]
    %v309 = vld [vmem:[#allocation13 + $0x140] sm:$0xff]
    %v310 = vld [vmem:[#allocation13 + $0x148] sm:$0xff]
    %v311 = vld [vmem:[#allocation13 + $0x150] sm:$0xff]
    %v312 = vld [vmem:[#allocation13 + $0x158] sm:$0xff]
    %v313 = vld [vmem:[#allocation13 + $0x160] sm:$0xff]
    %v314 = vld [vmem:[#allocation13 + $0x168] sm:$0xff]
    %v315 = vld [vmem:[#allocation13 + $0x170] sm:$0xff]
    %v316 = vld [vmem:[#allocation13 + $0x178] sm:$0xff]
    %v317 = vld [vmem:[#allocation13 + $0x180] sm:$0xff]
    %v318 = vld [vmem:[#allocation13 + $0x188] sm:$0xff]
    %v319 = vld [vmem:[#allocation13 + $0x190] sm:$0xff]
    %v320 = vld [vmem:[#allocation13 + $0x198] sm:$0xff]
    %v321 = vld [vmem:[#allocation13 + $0x1a0] sm:$0xff]
    %v322 = vld [vmem:[#allocation13 + $0x1a8] sm:$0xff]
    %v323 = vld [vmem:[#allocation13 + $0x1b0] sm:$0xff]
    %v324 = vld [vmem:[#allocation13 + $0x1b8] sm:$0xff]
    %v325 = vld [vmem:[#allocation13 + $0x1c0] sm:$0xff]
    %v326 = vld [vmem:[#allocation13 + $0x1c8] sm:$0xff]
    %v327 = vld [vmem:[#allocation13 + $0x1d0] sm:$0xff]
    %v328 = vld [vmem:[#allocation13 + $0x1d8] sm:$0xff]
    %v329 = vld [vmem:[#allocation13 + $0x1e0] sm:$0xff]
    %v330 = vld [vmem:[#allocation13 + $0x1e8] sm:$0xff]
    %v331 = vld [vmem:[#allocation13 + $0x1f0] sm:$0xff]
    %v332 = vld [vmem:[#allocation13 + $0x1f8] sm:$0xff]
    %v333 = vld [vmem:[#allocation13 + $0x200] sm:$0xff]
    %v334 = vld [vmem:[#allocation13 + $0x208] sm:$0xff]
    %v335 = vld [vmem:[#allocation13 + $0x210] sm:$0xff]
    %v336 = vld [vmem:[#allocation13 + $0x218] sm:$0xff]
    %v337 = vld [vmem:[#allocation13 + $0x220] sm:$0xff]
    %v338 = vld [vmem:[#allocation13 + $0x228] sm:$0xff]
    %v339 = vld [vmem:[#allocation13 + $0x230] sm:$0xff]
    %v340 = vld [vmem:[#allocation13 + $0x238] sm:$0xff]
    %v341 = vld [vmem:[#allocation13 + $0x240] sm:$0xff]
    %v342 = vld [vmem:[#allocation13 + $0x248] sm:$0xff]
    %v343 = vld [vmem:[#allocation13 + $0x250] sm:$0xff]
    %v344 = vld [vmem:[#allocation13 + $0x258] sm:$0xff]
    %v345 = vld [vmem:[#allocation13 + $0x260] sm:$0xff]
    %v346 = vld [vmem:[#allocation13 + $0x268] sm:$0xff]
    %v347 = vld [vmem:[#allocation13 + $0x270] sm:$0xff]
    %v348 = vld [vmem:[#allocation13 + $0x278] sm:$0xff]
    %v349 = vld [vmem:[#allocation13 + $0x280] sm:$0xff]
    %v350 = vld [vmem:[#allocation13 + $0x288] sm:$0xff]
    %v351 = vld [vmem:[#allocation13 + $0x290] sm:$0xff]
    %v352 = vld [vmem:[#allocation13 + $0x298] sm:$0xff]
    %v353 = vld [vmem:[#allocation13 + $0x2a0] sm:$0xff]
    %v354 = vld [vmem:[#allocation13 + $0x2a8] sm:$0xff]
    %v355 = vld [vmem:[#allocation13 + $0x2b0] sm:$0xff]
    %v356 = vld [vmem:[#allocation13 + $0x2b8] sm:$0xff]
    %v357 = vld [vmem:[#allocation13 + $0x2c0] sm:$0xff]
    %v358 = vld [vmem:[#allocation13 + $0x2c8] sm:$0xff]
    %v359 = vld [vmem:[#allocation13 + $0x2d0] sm:$0xff]
    %v360 = vld [vmem:[#allocation13 + $0x2d8] sm:$0xff]
    %v361 = vld [vmem:[#allocation13 + $0x2e0] sm:$0xff]
    %v362 = vld [vmem:[#allocation13 + $0x2e8] sm:$0xff]
    %v363 = vld [vmem:[#allocation13 + $0x2f0] sm:$0xff]
    %v364 = vld [vmem:[#allocation13 + $0x2f8] sm:$0xff]
    %v365 = vld [vmem:[#allocation13 + $0x300] sm:$0xff]
    %v366 = vld [vmem:[#allocation13 + $0x308] sm:$0xff]
    %v367 = vld [vmem:[#allocation13 + $0x310] sm:$0xff]
    %v368 = vld [vmem:[#allocation13 + $0x318] sm:$0xff]
    %v369 = vld [vmem:[#allocation13 + $0x320] sm:$0xff]
    %v370 = vld [vmem:[#allocation13 + $0x328] sm:$0xff]
    %v371 = vld [vmem:[#allocation13 + $0x330] sm:$0xff]
    %v372 = vld [vmem:[#allocation13 + $0x338] sm:$0xff]
    %v373 = vld [vmem:[#allocation13 + $0x340] sm:$0xff]
    %v374 = vld [vmem:[#allocation13 + $0x348] sm:$0xff]
    %v375 = vld [vmem:[#allocation13 + $0x350] sm:$0xff]
    %v376 = vld [vmem:[#allocation13 + $0x358] sm:$0xff]
    %v377 = vld [vmem:[#allocation13 + $0x360] sm:$0xff]
    %v378 = vld [vmem:[#allocation13 + $0x368] sm:$0xff]
    %v379 = vld [vmem:[#allocation13 + $0x370] sm:$0xff]
    %v380 = vld [vmem:[#allocation13 + $0x378] sm:$0xff]
    %v381 = vld [vmem:[#allocation13 + $0x380] sm:$0xff]
    %v382 = vld [vmem:[#allocation13 + $0x388] sm:$0xff]
    %v383 = vld [vmem:[#allocation13 + $0x390] sm:$0xff]
    %v384 = vld [vmem:[#allocation13 + $0x398] sm:$0xff]
    %v385 = vld [vmem:[#allocation13 + $0x3a0] sm:$0xff]
    %v386 = vld [vmem:[#allocation13 + $0x3a8] sm:$0xff]
    %v387 = vld [vmem:[#allocation13 + $0x3b0] sm:$0xff]
    %v388 = vld [vmem:[#allocation13 + $0x3b8] sm:$0xff]
    %v389 = vld [vmem:[#allocation13 + $0x3c0] sm:$0xff]
    %v390 = vld [vmem:[#allocation13 + $0x3c8] sm:$0xff]
    %v391 = vld [vmem:[#allocation13 + $0x3d0] sm:$0xff]
    %v392 = vld [vmem:[#allocation13 + $0x3d8] sm:$0xff]
    %v393 = vld [vmem:[#allocation13 + $0x3e0] sm:$0xff]
    %v394 = vld [vmem:[#allocation13 + $0x3e8] sm:$0xff]
    %v395 = vld [vmem:[#allocation13 + $0x3f0] sm:$0xff]
    %v396 = vld [vmem:[#allocation13 + $0x3f8] sm:$0xff]
    %v397 = vld [vmem:[#allocation13 + $0x400] sm:$0xff]
    %v398 = vld [vmem:[#allocation13 + $0x408] sm:$0xff]
    %v399 = vld [vmem:[#allocation13 + $0x410] sm:$0xff]
    %v400 = vld [vmem:[#allocation13 + $0x418] sm:$0xff]
    %v401 = vld [vmem:[#allocation13 + $0x420] sm:$0xff]
    %v402 = vld [vmem:[#allocation13 + $0x428] sm:$0xff]
    %v403 = vld [vmem:[#allocation13 + $0x430] sm:$0xff]
    %v404 = vld [vmem:[#allocation13 + $0x438] sm:$0xff]
    %v405 = vld [vmem:[#allocation13 + $0x440] sm:$0xff]
    %v406 = vld [vmem:[#allocation13 + $0x448] sm:$0xff]
    %v407 = vld [vmem:[#allocation13 + $0x450] sm:$0xff]
    %v408 = vld [vmem:[#allocation13 + $0x458] sm:$0xff]
    %v409 = vld [vmem:[#allocation13 + $0x460] sm:$0xff]
    %v410 = vld [vmem:[#allocation13 + $0x468] sm:$0xff]
    %v411 = vld [vmem:[#allocation13 + $0x470] sm:$0xff]
    %v412 = vld [vmem:[#allocation13 + $0x478] sm:$0xff]
    %v413 = vld [vmem:[#allocation13 + $0x480] sm:$0xff]
    %v414 = vld [vmem:[#allocation13 + $0x488] sm:$0xff]
    %v415 = vld [vmem:[#allocation13 + $0x490] sm:$0xff]
    %v416 = vld [vmem:[#allocation13 + $0x498] sm:$0xff]
    %v417 = vld [vmem:[#allocation13 + $0x4a0] sm:$0xff]
    %v418 = vld [vmem:[#allocation13 + $0x4a8] sm:$0xff]
    %v419 = vld [vmem:[#allocation13 + $0x4b0] sm:$0xff]
    %v420 = vld [vmem:[#allocation13 + $0x4b8] sm:$0xff]
    %v421 = vld [vmem:[#allocation13 + $0x4c0] sm:$0xff]
    %v422 = vld [vmem:[#allocation13 + $0x4c8] sm:$0xff]
    %v423 = vld [vmem:[#allocation13 + $0x4d0] sm:$0xff]
    %v424 = vld [vmem:[#allocation13 + $0x4d8] sm:$0xff]
    %v425 = vld [vmem:[#allocation13 + $0x4e0] sm:$0xff]
    %v426 = vld [vmem:[#allocation13 + $0x4e8] sm:$0xff]
    %v427 = vld [vmem:[#allocation13 + $0x4f0] sm:$0xff]
    %v428 = vld [vmem:[#allocation13 + $0x4f8] sm:$0xff]
    %v429 = vld [vmem:[#allocation13 + $0x500] sm:$0xff]
    %v430 = vld [vmem:[#allocation13 + $0x508] sm:$0xff]
    %v431 = vld [vmem:[#allocation13 + $0x510] sm:$0xff]
    %v432 = vld [vmem:[#allocation13 + $0x518] sm:$0xff]
    %v433 = vld [vmem:[#allocation13 + $0x520] sm:$0xff]
    %v434 = vld [vmem:[#allocation13 + $0x528] sm:$0xff]
    %v435 = vld [vmem:[#allocation13 + $0x530] sm:$0xff]
    %v436 = vld [vmem:[#allocation13 + $0x538] sm:$0xff]
    %v437 = vld [vmem:[#allocation13 + $0x540] sm:$0xff]
    %v438 = vld [vmem:[#allocation13 + $0x548] sm:$0xff]
    %v439 = vld [vmem:[#allocation13 + $0x550] sm:$0xff]
    %v440 = vld [vmem:[#allocation13 + $0x558] sm:$0xff]
    %v441 = vld [vmem:[#allocation13 + $0x560] sm:$0xff]
    %v442 = vld [vmem:[#allocation13 + $0x568] sm:$0xff]
    %v443 = vld [vmem:[#allocation13 + $0x570] sm:$0xff]
    %v444 = vld [vmem:[#allocation13 + $0x578] sm:$0xff]
    %v445 = vld [vmem:[#allocation13 + $0x580] sm:$0xff]
    %v446 = vld [vmem:[#allocation13 + $0x588] sm:$0xff]
    %v447 = vld [vmem:[#allocation13 + $0x590] sm:$0xff]
    %v448 = vld [vmem:[#allocation13 + $0x598] sm:$0xff]
    %v449 = vld [vmem:[#allocation13 + $0x5a0] sm:$0xff]
    %v450 = vld [vmem:[#allocation13 + $0x5a8] sm:$0xff]
    %v451 = vld [vmem:[#allocation13 + $0x5b0] sm:$0xff]
    %v452 = vld [vmem:[#allocation13 + $0x5b8] sm:$0xff]
    %v453 = vld [vmem:[#allocation13 + $0x5c0] sm:$0x11]
    %v454 = vld [vmem:[#allocation13 + $0x5c8] sm:$0x11]
    %v455 = vld [vmem:[#allocation13 + $0x5d0] sm:$0x11]
    %v456 = vld [vmem:[#allocation13 + $0x5d8] sm:$0x11]
    %v457 = vld [vmem:[#allocation13 + $0x5e0] sm:$0x11]
    %v458 = vld [vmem:[#allocation13 + $0x5e8] sm:$0x11]
    %v459 = vld [vmem:[#allocation13 + $0x5f0] sm:$0x11]
    %v460 = vld [vmem:[#allocation13 + $0x5f8] sm:$0x11]
    %v461 = vld [vmem:[#allocation15] sm:$0xff]
    %v462 = vld [vmem:[#allocation15 + $0x8] sm:$0xff]
    %v465 = vlaneseq
    %v466 = vshrl.u32 %v465, 7
    %v467 = vsub.s32 0, %v466
    %v468 = vrot.slane %v461, %v467
    %v469 = vlaneseq
    %v470 = vshrl.u32 %v469, 7
    %v471 = vsub.s32 1, %v470
    %v472 = vrot.slane %v461, %v471
    %v473 = vlaneseq
    %v474 = vshrl.u32 %v473, 7
    %v475 = vsub.s32 2, %v474
    %v476 = vrot.slane %v461, %v475
    %v477 = vlaneseq
    %v478 = vshrl.u32 %v477, 7
    %v479 = vsub.s32 3, %v478
    %v480 = vrot.slane %v461, %v479
    %v481 = vlaneseq
    %v482 = vshrl.u32 %v481, 7
    %v483 = vsub.s32 4, %v482
    %v484 = vrot.slane %v461, %v483
    %v485 = vlaneseq
    %v486 = vshrl.u32 %v485, 7
    %v487 = vsub.s32 5, %v486
    %v488 = vrot.slane %v461, %v487
    %v489 = vlaneseq
    %v490 = vshrl.u32 %v489, 7
    %v491 = vsub.s32 6, %v490
    %v492 = vrot.slane %v461, %v491
    %v493 = vlaneseq
    %v494 = vshrl.u32 %v493, 7
    %v495 = vsub.s32 7, %v494
    %v496 = vrot.slane %v461, %v495
    %v497 = vlaneseq
    %v498 = vshrl.u32 %v497, 7
    %v499 = vsub.s32 0, %v498
    %v500 = vrot.slane %v462, %v499
    %v501 = vlaneseq
    %v502 = vshrl.u32 %v501, 7
    %v503 = vsub.s32 1, %v502
    %v504 = vrot.slane %v462, %v503
    %v505 = vlaneseq
    %v506 = vshrl.u32 %v505, 7
    %v507 = vsub.s32 2, %v506
    %v508 = vrot.slane %v462, %v507
    %v509 = vlaneseq
    %v510 = vshrl.u32 %v509, 7
    %v511 = vsub.s32 3, %v510
    %v512 = vrot.slane %v462, %v511
    %v513 = vlaneseq
    %v514 = vshrl.u32 %v513, 7
    %v515 = vsub.s32 4, %v514
    %v516 = vrot.slane %v462, %v515
    %v517 = vlaneseq
    %v518 = vshrl.u32 %v517, 7
    %v519 = vsub.s32 5, %v518
    %v520 = vrot.slane %v462, %v519
    %v521 = vlaneseq
    %v522 = vshrl.u32 %v521, 7
    %v523 = vsub.s32 6, %v522
    %v524 = vrot.slane %v462, %v523
    %v525 = vlaneseq
    %v526 = vshrl.u32 %v525, 7
    %v527 = vsub.s32 7, %v526
    %v528 = vrot.slane %v462, %v527
    %v737 = vunpack.c.l.b16 %v269
    %v738 = vunpack.c.h.b16 %v269
    %v739 = vunpack.c.l.b16 %v270
    %v740 = vunpack.c.h.b16 %v270
    %v741 = vunpack.c.l.b16 %v271
    %v742 = vunpack.c.h.b16 %v271
    %v743 = vunpack.c.l.b16 %v272
    %v744 = vunpack.c.h.b16 %v272
    %v745 = vunpack.c.l.b16 %v273
    %v746 = vunpack.c.h.b16 %v273
    %v747 = vunpack.c.l.b16 %v274
    %v748 = vunpack.c.h.b16 %v274
    %v749 = vunpack.c.l.b16 %v275
    %v750 = vunpack.c.h.b16 %v275
    %v751 = vunpack.c.l.b16 %v276
    %v752 = vunpack.c.h.b16 %v276
    %v753 = vunpack.c.l.b16 %v277
    %v754 = vunpack.c.h.b16 %v277
    %v755 = vunpack.c.l.b16 %v278
    %v756 = vunpack.c.h.b16 %v278
    %v757 = vunpack.c.l.b16 %v279
    %v758 = vunpack.c.h.b16 %v279
    %v759 = vunpack.c.l.b16 %v280
    %v760 = vunpack.c.h.b16 %v280
    %v761 = vunpack.c.l.b16 %v281
    %v762 = vunpack.c.h.b16 %v281
    %v763 = vunpack.c.l.b16 %v282
    %v764 = vunpack.c.h.b16 %v282
    %v765 = vunpack.c.l.b16 %v283
    %v766 = vunpack.c.h.b16 %v283
    %v767 = vunpack.c.l.b16 %v284
    %v768 = vunpack.c.h.b16 %v284
    %v769 = vunpack.c.l.b16 %v285
    %v770 = vunpack.c.h.b16 %v285
    %v771 = vunpack.c.l.b16 %v286
    %v772 = vunpack.c.h.b16 %v286
    %v773 = vunpack.c.l.b16 %v287
    %v774 = vunpack.c.h.b16 %v287
    %v775 = vunpack.c.l.b16 %v288
    %v776 = vunpack.c.h.b16 %v288
    %v777 = vunpack.c.l.b16 %v289
    %v778 = vunpack.c.h.b16 %v289
    %v779 = vunpack.c.l.b16 %v290
    %v780 = vunpack.c.h.b16 %v290
    %v781 = vunpack.c.l.b16 %v291
    %v782 = vunpack.c.h.b16 %v291
    %v783 = vunpack.c.l.b16 %v292
    %v784 = vunpack.c.h.b16 %v292
    %v785 = vunpack.c.l.b16 %v293
    %v786 = vunpack.c.h.b16 %v293
    %v787 = vunpack.c.l.b16 %v294
    %v788 = vunpack.c.h.b16 %v294
    %v789 = vunpack.c.l.b16 %v295
    %v790 = vunpack.c.h.b16 %v295
    %v791 = vunpack.c.l.b16 %v296
    %v792 = vunpack.c.h.b16 %v296
    %v793 = vunpack.c.l.b16 %v297
    %v794 = vunpack.c.h.b16 %v297
    %v795 = vunpack.c.l.b16 %v298
    %v796 = vunpack.c.h.b16 %v298
    %v797 = vunpack.c.l.b16 %v299
    %v798 = vunpack.c.h.b16 %v299
    %v799 = vunpack.c.l.b16 %v300
    %v800 = vunpack.c.h.b16 %v300
    %v801 = vunpack.c.l.b16 %v301
    %v802 = vunpack.c.h.b16 %v301
    %v803 = vunpack.c.l.b16 %v302
    %v804 = vunpack.c.h.b16 %v302
    %v805 = vunpack.c.l.b16 %v303
    %v806 = vunpack.c.h.b16 %v303
    %v807 = vunpack.c.l.b16 %v304
    %v808 = vunpack.c.h.b16 %v304
    %v809 = vunpack.c.l.b16 %v305
    %v810 = vunpack.c.h.b16 %v305
    %v811 = vunpack.c.l.b16 %v306
    %v812 = vunpack.c.h.b16 %v306
    %v813 = vunpack.c.l.b16 %v307
    %v814 = vunpack.c.h.b16 %v307
    %v815 = vunpack.c.l.b16 %v308
    %v816 = vunpack.c.h.b16 %v308
    %v817 = vunpack.c.l.b16 %v309
    %v818 = vunpack.c.h.b16 %v309
    %v819 = vunpack.c.l.b16 %v310
    %v820 = vunpack.c.h.b16 %v310
    %v821 = vunpack.c.l.b16 %v311
    %v822 = vunpack.c.h.b16 %v311
    %v823 = vunpack.c.l.b16 %v312
    %v824 = vunpack.c.h.b16 %v312
    %v825 = vunpack.c.l.b16 %v313
    %v826 = vunpack.c.h.b16 %v313
    %v827 = vunpack.c.l.b16 %v314
    %v828 = vunpack.c.h.b16 %v314
    %v829 = vunpack.c.l.b16 %v315
    %v830 = vunpack.c.h.b16 %v315
    %v831 = vunpack.c.l.b16 %v316
    %v832 = vunpack.c.h.b16 %v316
    %v833 = vunpack.c.l.b16 %v317
    %v834 = vunpack.c.h.b16 %v317
    %v835 = vunpack.c.l.b16 %v318
    %v836 = vunpack.c.h.b16 %v318
    %v837 = vunpack.c.l.b16 %v319
    %v838 = vunpack.c.h.b16 %v319
    %v839 = vunpack.c.l.b16 %v320
    %v840 = vunpack.c.h.b16 %v320
    %v841 = vunpack.c.l.b16 %v321
    %v842 = vunpack.c.h.b16 %v321
    %v843 = vunpack.c.l.b16 %v322
    %v844 = vunpack.c.h.b16 %v322
    %v845 = vunpack.c.l.b16 %v323
    %v846 = vunpack.c.h.b16 %v323
    %v847 = vunpack.c.l.b16 %v324
    %v848 = vunpack.c.h.b16 %v324
    %v849 = vunpack.c.l.b16 %v325
    %v850 = vunpack.c.h.b16 %v325
    %v851 = vunpack.c.l.b16 %v326
    %v852 = vunpack.c.h.b16 %v326
    %v853 = vunpack.c.l.b16 %v327
    %v854 = vunpack.c.h.b16 %v327
    %v855 = vunpack.c.l.b16 %v328
    %v856 = vunpack.c.h.b16 %v328
    %v857 = vunpack.c.l.b16 %v329
    %v858 = vunpack.c.h.b16 %v329
    %v859 = vunpack.c.l.b16 %v330
    %v860 = vunpack.c.h.b16 %v330
    %v861 = vunpack.c.l.b16 %v331
    %v862 = vunpack.c.h.b16 %v331
    %v863 = vunpack.c.l.b16 %v332
    %v864 = vunpack.c.h.b16 %v332
    %v865 = vunpack.c.l.b16 %v333
    %v866 = vunpack.c.h.b16 %v333
    %v867 = vunpack.c.l.b16 %v334
    %v868 = vunpack.c.h.b16 %v334
    %v869 = vunpack.c.l.b16 %v335
    %v870 = vunpack.c.h.b16 %v335
    %v871 = vunpack.c.l.b16 %v336
    %v872 = vunpack.c.h.b16 %v336
    %v873 = vunpack.c.l.b16 %v337
    %v874 = vunpack.c.h.b16 %v337
    %v875 = vunpack.c.l.b16 %v338
    %v876 = vunpack.c.h.b16 %v338
    %v877 = vunpack.c.l.b16 %v339
    %v878 = vunpack.c.h.b16 %v339
    %v879 = vunpack.c.l.b16 %v340
    %v880 = vunpack.c.h.b16 %v340
    %v881 = vunpack.c.l.b16 %v341
    %v882 = vunpack.c.h.b16 %v341
    %v883 = vunpack.c.l.b16 %v342
    %v884 = vunpack.c.h.b16 %v342
    %v885 = vunpack.c.l.b16 %v343
    %v886 = vunpack.c.h.b16 %v343
    %v887 = vunpack.c.l.b16 %v344
    %v888 = vunpack.c.h.b16 %v344
    %v889 = vunpack.c.l.b16 %v345
    %v890 = vunpack.c.h.b16 %v345
    %v891 = vunpack.c.l.b16 %v346
    %v892 = vunpack.c.h.b16 %v346
    %v893 = vunpack.c.l.b16 %v347
    %v894 = vunpack.c.h.b16 %v347
    %v895 = vunpack.c.l.b16 %v348
    %v896 = vunpack.c.h.b16 %v348
    %v897 = vunpack.c.l.b16 %v349
    %v898 = vunpack.c.h.b16 %v349
    %v899 = vunpack.c.l.b16 %v350
    %v900 = vunpack.c.h.b16 %v350
    %v901 = vunpack.c.l.b16 %v351
    %v902 = vunpack.c.h.b16 %v351
    %v903 = vunpack.c.l.b16 %v352
    %v904 = vunpack.c.h.b16 %v352
    %v905 = vunpack.c.l.b16 %v353
    %v906 = vunpack.c.h.b16 %v353
    %v907 = vunpack.c.l.b16 %v354
    %v908 = vunpack.c.h.b16 %v354
    %v909 = vunpack.c.l.b16 %v355
    %v910 = vunpack.c.h.b16 %v355
    %v911 = vunpack.c.l.b16 %v356
    %v912 = vunpack.c.h.b16 %v356
    %v913 = vunpack.c.l.b16 %v357
    %v914 = vunpack.c.h.b16 %v357
    %v915 = vunpack.c.l.b16 %v358
    %v916 = vunpack.c.h.b16 %v358
    %v917 = vunpack.c.l.b16 %v359
    %v918 = vunpack.c.h.b16 %v359
    %v919 = vunpack.c.l.b16 %v360
    %v920 = vunpack.c.h.b16 %v360
    %v921 = vunpack.c.l.b16 %v361
    %v922 = vunpack.c.h.b16 %v361
    %v923 = vunpack.c.l.b16 %v362
    %v924 = vunpack.c.h.b16 %v362
    %v925 = vunpack.c.l.b16 %v363
    %v926 = vunpack.c.h.b16 %v363
    %v927 = vunpack.c.l.b16 %v364
    %v928 = vunpack.c.h.b16 %v364
    %v929 = vunpack.c.l.b16 %v365
    %v930 = vunpack.c.h.b16 %v365
    %v931 = vunpack.c.l.b16 %v366
    %v932 = vunpack.c.h.b16 %v366
    %v933 = vunpack.c.l.b16 %v367
    %v934 = vunpack.c.h.b16 %v367
    %v935 = vunpack.c.l.b16 %v368
    %v936 = vunpack.c.h.b16 %v368
    %v937 = vunpack.c.l.b16 %v369
    %v938 = vunpack.c.h.b16 %v369
    %v939 = vunpack.c.l.b16 %v370
    %v940 = vunpack.c.h.b16 %v370
    %v941 = vunpack.c.l.b16 %v371
    %v942 = vunpack.c.h.b16 %v371
    %v943 = vunpack.c.l.b16 %v372
    %v944 = vunpack.c.h.b16 %v372
    %v945 = vunpack.c.l.b16 %v373
    %v946 = vunpack.c.h.b16 %v373
    %v947 = vunpack.c.l.b16 %v374
    %v948 = vunpack.c.h.b16 %v374
    %v949 = vunpack.c.l.b16 %v375
    %v950 = vunpack.c.h.b16 %v375
    %v951 = vunpack.c.l.b16 %v376
    %v952 = vunpack.c.h.b16 %v376
    %v953 = vunpack.c.l.b16 %v377
    %v954 = vunpack.c.h.b16 %v377
    %v955 = vunpack.c.l.b16 %v378
    %v956 = vunpack.c.h.b16 %v378
    %v957 = vunpack.c.l.b16 %v379
    %v958 = vunpack.c.h.b16 %v379
    %v959 = vunpack.c.l.b16 %v380
    %v960 = vunpack.c.h.b16 %v380
    %v961 = vunpack.c.l.b16 %v381
    %v962 = vunpack.c.h.b16 %v381
    %v963 = vunpack.c.l.b16 %v382
    %v964 = vunpack.c.h.b16 %v382
    %v965 = vunpack.c.l.b16 %v383
    %v966 = vunpack.c.h.b16 %v383
    %v967 = vunpack.c.l.b16 %v384
    %v968 = vunpack.c.h.b16 %v384
    %v969 = vunpack.c.l.b16 %v385
    %v970 = vunpack.c.h.b16 %v385
    %v971 = vunpack.c.l.b16 %v386
    %v972 = vunpack.c.h.b16 %v386
    %v973 = vunpack.c.l.b16 %v387
    %v974 = vunpack.c.h.b16 %v387
    %v975 = vunpack.c.l.b16 %v388
    %v976 = vunpack.c.h.b16 %v388
    %v977 = vunpack.c.l.b16 %v389
    %v978 = vunpack.c.h.b16 %v389
    %v979 = vunpack.c.l.b16 %v390
    %v980 = vunpack.c.h.b16 %v390
    %v981 = vunpack.c.l.b16 %v391
    %v982 = vunpack.c.h.b16 %v391
    %v983 = vunpack.c.l.b16 %v392
    %v984 = vunpack.c.h.b16 %v392
    %v985 = vunpack.c.l.b16 %v393
    %v986 = vunpack.c.h.b16 %v393
    %v987 = vunpack.c.l.b16 %v394
    %v988 = vunpack.c.h.b16 %v394
    %v989 = vunpack.c.l.b16 %v395
    %v990 = vunpack.c.h.b16 %v395
    %v991 = vunpack.c.l.b16 %v396
    %v992 = vunpack.c.h.b16 %v396
    %v993 = vunpack.c.l.b16 %v397
    %v994 = vunpack.c.h.b16 %v397
    %v995 = vunpack.c.l.b16 %v398
    %v996 = vunpack.c.h.b16 %v398
    %v997 = vunpack.c.l.b16 %v399
    %v998 = vunpack.c.h.b16 %v399
    %v999 = vunpack.c.l.b16 %v400
    %v1000 = vunpack.c.h.b16 %v400
    %v1001 = vunpack.c.l.b16 %v401
    %v1002 = vunpack.c.h.b16 %v401
    %v1003 = vunpack.c.l.b16 %v402
    %v1004 = vunpack.c.h.b16 %v402
    %v1005 = vunpack.c.l.b16 %v403
    %v1006 = vunpack.c.h.b16 %v403
    %v1007 = vunpack.c.l.b16 %v404
    %v1008 = vunpack.c.h.b16 %v404
    %v1009 = vunpack.c.l.b16 %v405
    %v1010 = vunpack.c.h.b16 %v405
    %v1011 = vunpack.c.l.b16 %v406
    %v1012 = vunpack.c.h.b16 %v406
    %v1013 = vunpack.c.l.b16 %v407
    %v1014 = vunpack.c.h.b16 %v407
    %v1015 = vunpack.c.l.b16 %v408
    %v1016 = vunpack.c.h.b16 %v408
    %v1017 = vunpack.c.l.b16 %v409
    %v1018 = vunpack.c.h.b16 %v409
    %v1019 = vunpack.c.l.b16 %v410
    %v1020 = vunpack.c.h.b16 %v410
    %v1021 = vunpack.c.l.b16 %v411
    %v1022 = vunpack.c.h.b16 %v411
    %v1023 = vunpack.c.l.b16 %v412
    %v1024 = vunpack.c.h.b16 %v412
    %v1025 = vunpack.c.l.b16 %v413
    %v1026 = vunpack.c.h.b16 %v413
    %v1027 = vunpack.c.l.b16 %v414
    %v1028 = vunpack.c.h.b16 %v414
    %v1029 = vunpack.c.l.b16 %v415
    %v1030 = vunpack.c.h.b16 %v415
    %v1031 = vunpack.c.l.b16 %v416
    %v1032 = vunpack.c.h.b16 %v416
    %v1033 = vunpack.c.l.b16 %v417
    %v1034 = vunpack.c.h.b16 %v417
    %v1035 = vunpack.c.l.b16 %v418
    %v1036 = vunpack.c.h.b16 %v418
    %v1037 = vunpack.c.l.b16 %v419
    %v1038 = vunpack.c.h.b16 %v419
    %v1039 = vunpack.c.l.b16 %v420
    %v1040 = vunpack.c.h.b16 %v420
    %v1041 = vunpack.c.l.b16 %v421
    %v1042 = vunpack.c.h.b16 %v421
    %v1043 = vunpack.c.l.b16 %v422
    %v1044 = vunpack.c.h.b16 %v422
    %v1045 = vunpack.c.l.b16 %v423
    %v1046 = vunpack.c.h.b16 %v423
    %v1047 = vunpack.c.l.b16 %v424
    %v1048 = vunpack.c.h.b16 %v424
    %v1049 = vunpack.c.l.b16 %v425
    %v1050 = vunpack.c.h.b16 %v425
    %v1051 = vunpack.c.l.b16 %v426
    %v1052 = vunpack.c.h.b16 %v426
    %v1053 = vunpack.c.l.b16 %v427
    %v1054 = vunpack.c.h.b16 %v427
    %v1055 = vunpack.c.l.b16 %v428
    %v1056 = vunpack.c.h.b16 %v428
    %v1057 = vunpack.c.l.b16 %v429
    %v1058 = vunpack.c.h.b16 %v429
    %v1059 = vunpack.c.l.b16 %v430
    %v1060 = vunpack.c.h.b16 %v430
    %v1061 = vunpack.c.l.b16 %v431
    %v1062 = vunpack.c.h.b16 %v431
    %v1063 = vunpack.c.l.b16 %v432
    %v1064 = vunpack.c.h.b16 %v432
    %v1065 = vunpack.c.l.b16 %v433
    %v1066 = vunpack.c.h.b16 %v433
    %v1067 = vunpack.c.l.b16 %v434
    %v1068 = vunpack.c.h.b16 %v434
    %v1069 = vunpack.c.l.b16 %v435
    %v1070 = vunpack.c.h.b16 %v435
    %v1071 = vunpack.c.l.b16 %v436
    %v1072 = vunpack.c.h.b16 %v436
    %v1073 = vunpack.c.l.b16 %v437
    %v1074 = vunpack.c.h.b16 %v437
    %v1075 = vunpack.c.l.b16 %v438
    %v1076 = vunpack.c.h.b16 %v438
    %v1077 = vunpack.c.l.b16 %v439
    %v1078 = vunpack.c.h.b16 %v439
    %v1079 = vunpack.c.l.b16 %v440
    %v1080 = vunpack.c.h.b16 %v440
    %v1081 = vunpack.c.l.b16 %v441
    %v1082 = vunpack.c.h.b16 %v441
    %v1083 = vunpack.c.l.b16 %v442
    %v1084 = vunpack.c.h.b16 %v442
    %v1085 = vunpack.c.l.b16 %v443
    %v1086 = vunpack.c.h.b16 %v443
    %v1087 = vunpack.c.l.b16 %v444
    %v1088 = vunpack.c.h.b16 %v444
    %v1089 = vunpack.c.l.b16 %v445
    %v1090 = vunpack.c.h.b16 %v445
    %v1091 = vunpack.c.l.b16 %v446
    %v1092 = vunpack.c.h.b16 %v446
    %v1093 = vunpack.c.l.b16 %v447
    %v1094 = vunpack.c.h.b16 %v447
    %v1095 = vunpack.c.l.b16 %v448
    %v1096 = vunpack.c.h.b16 %v448
    %v1097 = vunpack.c.l.b16 %v449
    %v1098 = vunpack.c.h.b16 %v449
    %v1099 = vunpack.c.l.b16 %v450
    %v1100 = vunpack.c.h.b16 %v450
    %v1101 = vunpack.c.l.b16 %v451
    %v1102 = vunpack.c.h.b16 %v451
    %v1103 = vunpack.c.l.b16 %v452
    %v1104 = vunpack.c.h.b16 %v452
    %v1105 = vunpack.c.l.b16 %v453
    %v1106 = vunpack.c.h.b16 %v453
    %v1107 = vunpack.c.l.b16 %v454
    %v1108 = vunpack.c.h.b16 %v454
    %v1109 = vunpack.c.l.b16 %v455
    %v1110 = vunpack.c.h.b16 %v455
    %v1111 = vunpack.c.l.b16 %v456
    %v1112 = vunpack.c.h.b16 %v456
    %v1113 = vunpack.c.l.b16 %v457
    %v1114 = vunpack.c.h.b16 %v457
    %v1115 = vunpack.c.l.b16 %v458
    %v1116 = vunpack.c.h.b16 %v458
    %v1117 = vunpack.c.l.b16 %v459
    %v1118 = vunpack.c.h.b16 %v459
    %v1119 = vunpack.c.l.b16 %v460
    %v1120 = vunpack.c.h.b16 %v460
    %v1121 = vpack.c.b16 %v753, %v737
    %v1122 = vpack.c.b16 %v754, %v738
    %v1123 = vpack.c.b16 %v755, %v739
    %v1124 = vpack.c.b16 %v756, %v740
    %v1125 = vpack.c.b16 %v757, %v741
    %v1126 = vpack.c.b16 %v758, %v742
    %v1127 = vpack.c.b16 %v759, %v743
    %v1128 = vpack.c.b16 %v760, %v744
    %v1129 = vpack.c.b16 %v761, %v745
    %v1130 = vpack.c.b16 %v762, %v746
    %v1131 = vpack.c.b16 %v763, %v747
    %v1132 = vpack.c.b16 %v764, %v748
    %v1133 = vpack.c.b16 %v765, %v749
    %v1134 = vpack.c.b16 %v766, %v750
    %v1135 = vpack.c.b16 %v767, %v751
    %v1136 = vpack.c.b16 %v768, %v752
    %v1137 = vpack.c.b16 %v785, %v769
    %v1138 = vpack.c.b16 %v786, %v770
    %v1139 = vpack.c.b16 %v787, %v771
    %v1140 = vpack.c.b16 %v788, %v772
    %v1141 = vpack.c.b16 %v789, %v773
    %v1142 = vpack.c.b16 %v790, %v774
    %v1143 = vpack.c.b16 %v791, %v775
    %v1144 = vpack.c.b16 %v792, %v776
    %v1145 = vpack.c.b16 %v793, %v777
    %v1146 = vpack.c.b16 %v794, %v778
    %v1147 = vpack.c.b16 %v795, %v779
    %v1148 = vpack.c.b16 %v796, %v780
    %v1149 = vpack.c.b16 %v797, %v781
    %v1150 = vpack.c.b16 %v798, %v782
    %v1151 = vpack.c.b16 %v799, %v783
    %v1152 = vpack.c.b16 %v800, %v784
    %v1153 = vpack.c.b16 %v817, %v801
    %v1154 = vpack.c.b16 %v818, %v802
    %v1155 = vpack.c.b16 %v819, %v803
    %v1156 = vpack.c.b16 %v820, %v804
    %v1157 = vpack.c.b16 %v821, %v805
    %v1158 = vpack.c.b16 %v822, %v806
    %v1159 = vpack.c.b16 %v823, %v807
    %v1160 = vpack.c.b16 %v824, %v808
    %v1161 = vpack.c.b16 %v825, %v809
    %v1162 = vpack.c.b16 %v826, %v810
    %v1163 = vpack.c.b16 %v827, %v811
    %v1164 = vpack.c.b16 %v828, %v812
    %v1165 = vpack.c.b16 %v829, %v813
    %v1166 = vpack.c.b16 %v830, %v814
    %v1167 = vpack.c.b16 %v831, %v815
    %v1168 = vpack.c.b16 %v832, %v816
    %v1169 = vpack.c.b16 %v849, %v833
    %v1170 = vpack.c.b16 %v850, %v834
    %v1171 = vpack.c.b16 %v851, %v835
    %v1172 = vpack.c.b16 %v852, %v836
    %v1173 = vpack.c.b16 %v853, %v837
    %v1174 = vpack.c.b16 %v854, %v838
    %v1175 = vpack.c.b16 %v855, %v839
    %v1176 = vpack.c.b16 %v856, %v840
    %v1177 = vpack.c.b16 %v857, %v841
    %v1178 = vpack.c.b16 %v858, %v842
    %v1179 = vpack.c.b16 %v859, %v843
    %v1180 = vpack.c.b16 %v860, %v844
    %v1181 = vpack.c.b16 %v861, %v845
    %v1182 = vpack.c.b16 %v862, %v846
    %v1183 = vpack.c.b16 %v863, %v847
    %v1184 = vpack.c.b16 %v864, %v848
    %v1185 = vpack.c.b16 %v881, %v865
    %v1186 = vpack.c.b16 %v882, %v866
    %v1187 = vpack.c.b16 %v883, %v867
    %v1188 = vpack.c.b16 %v884, %v868
    %v1189 = vpack.c.b16 %v885, %v869
    %v1190 = vpack.c.b16 %v886, %v870
    %v1191 = vpack.c.b16 %v887, %v871
    %v1192 = vpack.c.b16 %v888, %v872
    %v1193 = vpack.c.b16 %v889, %v873
    %v1194 = vpack.c.b16 %v890, %v874
    %v1195 = vpack.c.b16 %v891, %v875
    %v1196 = vpack.c.b16 %v892, %v876
    %v1197 = vpack.c.b16 %v893, %v877
    %v1198 = vpack.c.b16 %v894, %v878
    %v1199 = vpack.c.b16 %v895, %v879
    %v1200 = vpack.c.b16 %v896, %v880
    %v1201 = vpack.c.b16 %v913, %v897
    %v1202 = vpack.c.b16 %v914, %v898
    %v1203 = vpack.c.b16 %v915, %v899
    %v1204 = vpack.c.b16 %v916, %v900
    %v1205 = vpack.c.b16 %v917, %v901
    %v1206 = vpack.c.b16 %v918, %v902
    %v1207 = vpack.c.b16 %v919, %v903
    %v1208 = vpack.c.b16 %v920, %v904
    %v1209 = vpack.c.b16 %v921, %v905
    %v1210 = vpack.c.b16 %v922, %v906
    %v1211 = vpack.c.b16 %v923, %v907
    %v1212 = vpack.c.b16 %v924, %v908
    %v1213 = vpack.c.b16 %v925, %v909
    %v1214 = vpack.c.b16 %v926, %v910
    %v1215 = vpack.c.b16 %v927, %v911
    %v1216 = vpack.c.b16 %v928, %v912
    %v1217 = vpack.c.b16 %v945, %v929
    %v1218 = vpack.c.b16 %v946, %v930
    %v1219 = vpack.c.b16 %v947, %v931
    %v1220 = vpack.c.b16 %v948, %v932
    %v1221 = vpack.c.b16 %v949, %v933
    %v1222 = vpack.c.b16 %v950, %v934
    %v1223 = vpack.c.b16 %v951, %v935
    %v1224 = vpack.c.b16 %v952, %v936
    %v1225 = vpack.c.b16 %v953, %v937
    %v1226 = vpack.c.b16 %v954, %v938
    %v1227 = vpack.c.b16 %v955, %v939
    %v1228 = vpack.c.b16 %v956, %v940
    %v1229 = vpack.c.b16 %v957, %v941
    %v1230 = vpack.c.b16 %v958, %v942
    %v1231 = vpack.c.b16 %v959, %v943
    %v1232 = vpack.c.b16 %v960, %v944
    %v1233 = vpack.c.b16 %v977, %v961
    %v1234 = vpack.c.b16 %v978, %v962
    %v1235 = vpack.c.b16 %v979, %v963
    %v1236 = vpack.c.b16 %v980, %v964
    %v1237 = vpack.c.b16 %v981, %v965
    %v1238 = vpack.c.b16 %v982, %v966
    %v1239 = vpack.c.b16 %v983, %v967
    %v1240 = vpack.c.b16 %v984, %v968
    %v1241 = vpack.c.b16 %v985, %v969
    %v1242 = vpack.c.b16 %v986, %v970
    %v1243 = vpack.c.b16 %v987, %v971
    %v1244 = vpack.c.b16 %v988, %v972
    %v1245 = vpack.c.b16 %v989, %v973
    %v1246 = vpack.c.b16 %v990, %v974
    %v1247 = vpack.c.b16 %v991, %v975
    %v1248 = vpack.c.b16 %v992, %v976
    %v1249 = vpack.c.b16 %v1009, %v993
    %v1250 = vpack.c.b16 %v1010, %v994
    %v1251 = vpack.c.b16 %v1011, %v995
    %v1252 = vpack.c.b16 %v1012, %v996
    %v1253 = vpack.c.b16 %v1013, %v997
    %v1254 = vpack.c.b16 %v1014, %v998
    %v1255 = vpack.c.b16 %v1015, %v999
    %v1256 = vpack.c.b16 %v1016, %v1000
    %v1257 = vpack.c.b16 %v1017, %v1001
    %v1258 = vpack.c.b16 %v1018, %v1002
    %v1259 = vpack.c.b16 %v1019, %v1003
    %v1260 = vpack.c.b16 %v1020, %v1004
    %v1261 = vpack.c.b16 %v1021, %v1005
    %v1262 = vpack.c.b16 %v1022, %v1006
    %v1263 = vpack.c.b16 %v1023, %v1007
    %v1264 = vpack.c.b16 %v1024, %v1008
    %v1265 = vpack.c.b16 %v1041, %v1025
    %v1266 = vpack.c.b16 %v1042, %v1026
    %v1267 = vpack.c.b16 %v1043, %v1027
    %v1268 = vpack.c.b16 %v1044, %v1028
    %v1269 = vpack.c.b16 %v1045, %v1029
    %v1270 = vpack.c.b16 %v1046, %v1030
    %v1271 = vpack.c.b16 %v1047, %v1031
    %v1272 = vpack.c.b16 %v1048, %v1032
    %v1273 = vpack.c.b16 %v1049, %v1033
    %v1274 = vpack.c.b16 %v1050, %v1034
    %v1275 = vpack.c.b16 %v1051, %v1035
    %v1276 = vpack.c.b16 %v1052, %v1036
    %v1277 = vpack.c.b16 %v1053, %v1037
    %v1278 = vpack.c.b16 %v1054, %v1038
    %v1279 = vpack.c.b16 %v1055, %v1039
    %v1280 = vpack.c.b16 %v1056, %v1040
    %v1281 = vpack.c.b16 %v1073, %v1057
    %v1282 = vpack.c.b16 %v1074, %v1058
    %v1283 = vpack.c.b16 %v1075, %v1059
    %v1284 = vpack.c.b16 %v1076, %v1060
    %v1285 = vpack.c.b16 %v1077, %v1061
    %v1286 = vpack.c.b16 %v1078, %v1062
    %v1287 = vpack.c.b16 %v1079, %v1063
    %v1288 = vpack.c.b16 %v1080, %v1064
    %v1289 = vpack.c.b16 %v1081, %v1065
    %v1290 = vpack.c.b16 %v1082, %v1066
    %v1291 = vpack.c.b16 %v1083, %v1067
    %v1292 = vpack.c.b16 %v1084, %v1068
    %v1293 = vpack.c.b16 %v1085, %v1069
    %v1294 = vpack.c.b16 %v1086, %v1070
    %v1295 = vpack.c.b16 %v1087, %v1071
    %v1296 = vpack.c.b16 %v1088, %v1072
    %v1297 = vpack.c.b16 %v1105, %v1089
    %v1298 = vpack.c.b16 %v1106, %v1090
    %v1299 = vpack.c.b16 %v1107, %v1091
    %v1300 = vpack.c.b16 %v1108, %v1092
    %v1301 = vpack.c.b16 %v1109, %v1093
    %v1302 = vpack.c.b16 %v1110, %v1094
    %v1303 = vpack.c.b16 %v1111, %v1095
    %v1304 = vpack.c.b16 %v1112, %v1096
    %v1305 = vpack.c.b16 %v1113, %v1097
    %v1306 = vpack.c.b16 %v1114, %v1098
    %v1307 = vpack.c.b16 %v1115, %v1099
    %v1308 = vpack.c.b16 %v1116, %v1100
    %v1309 = vpack.c.b16 %v1117, %v1101
    %v1310 = vpack.c.b16 %v1118, %v1102
    %v1311 = vpack.c.b16 %v1119, %v1103
    %v1312 = vpack.c.b16 %v1120, %v1104
    %vm1489 = vcmask 465920
    %v1491 = vsel %vm1489, %v268, 0
    %vm1493 = vcmask 1043456
    %vm1494 = vcmask 1044480
    %v1495 = vsel %vm1493, 4294967295, 65535
    %v1496 = vsel %vm1494, %v1495, 0
    %v1498 = vand.u32 %v1297, %v1496
    %v1501 = vand.u32 %v1298, %v1496
    %v1504 = vand.u32 %v1299, %v1496
    %v1507 = vand.u32 %v1300, %v1496
    %v1510 = vand.u32 %v1301, %v1496
    %v1513 = vand.u32 %v1302, %v1496
    %v1516 = vand.u32 %v1303, %v1496
    %v1519 = vand.u32 %v1304, %v1496
    %v1522 = vand.u32 %v1305, %v1496
    %v1525 = vand.u32 %v1306, %v1496
    %v1528 = vand.u32 %v1307, %v1496
    %v1531 = vand.u32 %v1308, %v1496
    %v1534 = vand.u32 %v1309, %v1496
    %v1537 = vand.u32 %v1310, %v1496
    %v1540 = vand.u32 %v1311, %v1496
    %v1543 = vand.u32 %v1312, %v1496
    %1545 = vmatprep.subr.bf16.mxu0 %v1122
    %1546 = vmatpush1.bf16.msra.mxu0 %v1121
    %1547 = vmatprep.subr.bf16.mxu0 %v1138
    %1548 = vmatpush1.bf16.msra.mxu0 %v1137
    %1549 = vmatprep.subr.bf16.mxu0 %v1154
    %1550 = vmatpush1.bf16.msra.mxu0 %v1153
    %1551 = vmatprep.subr.bf16.mxu0 %v1170
    %1552 = vmatpush1.bf16.msra.mxu0 %v1169
    %1553 = vmatprep.subr.bf16.mxu0 %v1186
    %1554 = vmatpush1.bf16.msra.mxu0 %v1185
    %1555 = vmatprep.subr.bf16.mxu0 %v1202
    %1556 = vmatpush1.bf16.msra.mxu0 %v1201
    %1557 = vmatprep.subr.bf16.mxu0 %v1218
    %1558 = vmatpush1.bf16.msra.mxu0 %v1217
    %1559 = vmatprep.subr.bf16.mxu0 %v1234
    %1560 = vmatpush1.bf16.msra.mxu0 %v1233
    %1561 = vmatprep.subr.bf16.mxu0 %v1250
    %1562 = vmatpush1.bf16.msra.mxu0 %v1249
    %1563 = vmatprep.subr.bf16.mxu0 %v1266
    %1564 = vmatpush1.bf16.msra.mxu0 %v1265
    %1565 = vmatprep.subr.bf16.mxu0 %v1282
    %1566 = vmatpush1.bf16.msra.mxu0 %v1281
    %1567 = vmatprep.subr.bf16.mxu0 %v1501
    %1568 = vmatpush1.bf16.msra.mxu0 %v1498
    %1569 = vmatprep.subr.bf16.mxu0 0
    %1570 = vmatpush1.bf16.msra.mxu0 0
    %1571 = vmatprep.subr.bf16.mxu0 0
    %1572 = vmatpush1.bf16.msra.mxu0 0
    %1573 = vmatprep.subr.bf16.mxu0 0
    %1574 = vmatpush1.bf16.msra.mxu0 0
    %1575 = vmatprep.subr.bf16.mxu0 0
    %1576 = vmatpush1.bf16.msra.mxu0 0
    %1577 = vmatprep.mubr.bf16.mxu0 %v1491
    %1578 = vmatmul.mubr.bf16.gmra.mrb[0].mxu0 %v267
    %v1579 = vpop.f32.mrb[0].mxu0
    %v1580 = vadd.f32 %v468, %v1579
    %v1581 = vpop.f32.mrb[0].mxu0
    %v1582 = vadd.f32 %v472, %v1581
    %v1583 = vpop.f32.mrb[0].mxu0
    %v1584 = vpop.f32.mrb[0].mxu0
    %1585 = vdwg.mxu0
    %1586 = vmatprep.subr.bf16.mxu0 %v1124
    %1587 = vmatpush1.bf16.msra.mxu0 %v1123
    %1588 = vmatprep.subr.bf16.mxu0 %v1140
    %1589 = vmatpush1.bf16.msra.mxu0 %v1139
    %1590 = vmatprep.subr.bf16.mxu0 %v1156
    %1591 = vmatpush1.bf16.msra.mxu0 %v1155
    %1592 = vmatprep.subr.bf16.mxu0 %v1172
    %1593 = vmatpush1.bf16.msra.mxu0 %v1171
    %1594 = vmatprep.subr.bf16.mxu0 %v1188
    %1595 = vmatpush1.bf16.msra.mxu0 %v1187
    %1596 = vmatprep.subr.bf16.mxu0 %v1204
    %1597 = vmatpush1.bf16.msra.mxu0 %v1203
    %1598 = vmatprep.subr.bf16.mxu0 %v1220
    %1599 = vmatpush1.bf16.msra.mxu0 %v1219
    %1600 = vmatprep.subr.bf16.mxu0 %v1236
    %1601 = vmatpush1.bf16.msra.mxu0 %v1235
    %1602 = vmatprep.subr.bf16.mxu0 %v1252
    %1603 = vmatpush1.bf16.msra.mxu0 %v1251
    %1604 = vmatprep.subr.bf16.mxu0 %v1268
    %1605 = vmatpush1.bf16.msra.mxu0 %v1267
    %1606 = vmatprep.subr.bf16.mxu0 %v1284
    %1607 = vmatpush1.bf16.msra.mxu0 %v1283
    %1608 = vmatprep.subr.bf16.mxu0 %v1507
    %1609 = vmatpush1.bf16.msra.mxu0 %v1504
    %1610 = vmatprep.subr.bf16.mxu0 0
    %1611 = vmatpush1.bf16.msra.mxu0 0
    %1612 = vmatprep.subr.bf16.mxu0 0
    %1613 = vmatpush1.bf16.msra.mxu0 0
    %1614 = vmatprep.subr.bf16.mxu0 0
    %1615 = vmatpush1.bf16.msra.mxu0 0
    %1616 = vmatprep.subr.bf16.mxu0 0
    %1617 = vmatpush1.bf16.msra.mxu0 0
    %1618 = vmatprep.mubr.bf16.mxu0 %v1491
    %1619 = vmatmul.mubr.bf16.gmra.mrb[0].mxu0 %v267
    %v1620 = vpop.f32.mrb[0].mxu0
    %v1621 = vadd.f32 %v476, %v1620
    %v1622 = vpop.f32.mrb[0].mxu0
    %v1623 = vadd.f32 %v480, %v1622
    %v1624 = vpop.f32.mrb[0].mxu0
    %v1625 = vpop.f32.mrb[0].mxu0
    %1626 = vdwg.mxu0
    %1627 = vmatprep.subr.bf16.mxu0 %v1126
    %1628 = vmatpush1.bf16.msra.mxu0 %v1125
    %1629 = vmatprep.subr.bf16.mxu0 %v1142
    %1630 = vmatpush1.bf16.msra.mxu0 %v1141
    %1631 = vmatprep.subr.bf16.mxu0 %v1158
    %1632 = vmatpush1.bf16.msra.mxu0 %v1157
    %1633 = vmatprep.subr.bf16.mxu0 %v1174
    %1634 = vmatpush1.bf16.msra.mxu0 %v1173
    %1635 = vmatprep.subr.bf16.mxu0 %v1190
    %1636 = vmatpush1.bf16.msra.mxu0 %v1189
    %1637 = vmatprep.subr.bf16.mxu0 %v1206
    %1638 = vmatpush1.bf16.msra.mxu0 %v1205
    %1639 = vmatprep.subr.bf16.mxu0 %v1222
    %1640 = vmatpush1.bf16.msra.mxu0 %v1221
    %1641 = vmatprep.subr.bf16.mxu0 %v1238
    %1642 = vmatpush1.bf16.msra.mxu0 %v1237
    %1643 = vmatprep.subr.bf16.mxu0 %v1254
    %1644 = vmatpush1.bf16.msra.mxu0 %v1253
    %1645 = vmatprep.subr.bf16.mxu0 %v1270
    %1646 = vmatpush1.bf16.msra.mxu0 %v1269
    %1647 = vmatprep.subr.bf16.mxu0 %v1286
    %1648 = vmatpush1.bf16.msra.mxu0 %v1285
    %1649 = vmatprep.subr.bf16.mxu0 %v1513
    %1650 = vmatpush1.bf16.msra.mxu0 %v1510
    %1651 = vmatprep.subr.bf16.mxu0 0
    %1652 = vmatpush1.bf16.msra.mxu0 0
    %1653 = vmatprep.subr.bf16.mxu0 0
    %1654 = vmatpush1.bf16.msra.mxu0 0
    %1655 = vmatprep.subr.bf16.mxu0 0
    %1656 = vmatpush1.bf16.msra.mxu0 0
    %1657 = vmatprep.subr.bf16.mxu0 0
    %1658 = vmatpush1.bf16.msra.mxu0 0
    %1659 = vmatprep.mubr.bf16.mxu0 %v1491
    %1660 = vmatmul.mubr.bf16.gmra.mrb[0].mxu0 %v267
    %v1661 = vpop.f32.mrb[0].mxu0
    %v1662 = vadd.f32 %v484, %v1661
    %v1663 = vpop.f32.mrb[0].mxu0
    %v1664 = vadd.f32 %v488, %v1663
    %v1665 = vpop.f32.mrb[0].mxu0
    %v1666 = vpop.f32.mrb[0].mxu0
    %1667 = vdwg.mxu0
    %1668 = vmatprep.subr.bf16.mxu0 %v1128
    %1669 = vmatpush1.bf16.msra.mxu0 %v1127
    %1670 = vmatprep.subr.bf16.mxu0 %v1144
    %1671 = vmatpush1.bf16.msra.mxu0 %v1143
    %1672 = vmatprep.subr.bf16.mxu0 %v1160
    %1673 = vmatpush1.bf16.msra.mxu0 %v1159
    %1674 = vmatprep.subr.bf16.mxu0 %v1176
    %1675 = vmatpush1.bf16.msra.mxu0 %v1175
    %1676 = vmatprep.subr.bf16.mxu0 %v1192
    %1677 = vmatpush1.bf16.msra.mxu0 %v1191
    %1678 = vmatprep.subr.bf16.mxu0 %v1208
    %1679 = vmatpush1.bf16.msra.mxu0 %v1207
    %1680 = vmatprep.subr.bf16.mxu0 %v1224
    %1681 = vmatpush1.bf16.msra.mxu0 %v1223
    %1682 = vmatprep.subr.bf16.mxu0 %v1240
    %1683 = vmatpush1.bf16.msra.mxu0 %v1239
    %1684 = vmatprep.subr.bf16.mxu0 %v1256
    %1685 = vmatpush1.bf16.msra.mxu0 %v1255
    %1686 = vmatprep.subr.bf16.mxu0 %v1272
    %1687 = vmatpush1.bf16.msra.mxu0 %v1271
    %1688 = vmatprep.subr.bf16.mxu0 %v1288
    %1689 = vmatpush1.bf16.msra.mxu0 %v1287
    %1690 = vmatprep.subr.bf16.mxu0 %v1519
    %1691 = vmatpush1.bf16.msra.mxu0 %v1516
    %1692 = vmatprep.subr.bf16.mxu0 0
    %1693 = vmatpush1.bf16.msra.mxu0 0
    %1694 = vmatprep.subr.bf16.mxu0 0
    %1695 = vmatpush1.bf16.msra.mxu0 0
    %1696 = vmatprep.subr.bf16.mxu0 0
    %1697 = vmatpush1.bf16.msra.mxu0 0
    %1698 = vmatprep.subr.bf16.mxu0 0
    %1699 = vmatpush1.bf16.msra.mxu0 0
    %1700 = vmatprep.mubr.bf16.mxu0 %v1491
    %1701 = vmatmul.mubr.bf16.gmra.mrb[0].mxu0 %v267
    %v1702 = vpop.f32.mrb[0].mxu0
    %v1703 = vadd.f32 %v492, %v1702
    %v1704 = vpop.f32.mrb[0].mxu0
    %v1705 = vadd.f32 %v496, %v1704
    %v1706 = vpop.f32.mrb[0].mxu0
    %v1707 = vpop.f32.mrb[0].mxu0
    %1708 = vdwg.mxu0
    %1709 = vmatprep.subr.bf16.mxu0 %v1130
    %1710 = vmatpush1.bf16.msra.mxu0 %v1129
    %1711 = vmatprep.subr.bf16.mxu0 %v1146
    %1712 = vmatpush1.bf16.msra.mxu0 %v1145
    %1713 = vmatprep.subr.bf16.mxu0 %v1162
    %1714 = vmatpush1.bf16.msra.mxu0 %v1161
    %1715 = vmatprep.subr.bf16.mxu0 %v1178
    %1716 = vmatpush1.bf16.msra.mxu0 %v1177
    %1717 = vmatprep.subr.bf16.mxu0 %v1194
    %1718 = vmatpush1.bf16.msra.mxu0 %v1193
    %1719 = vmatprep.subr.bf16.mxu0 %v1210
    %1720 = vmatpush1.bf16.msra.mxu0 %v1209
    %1721 = vmatprep.subr.bf16.mxu0 %v1226
    %1722 = vmatpush1.bf16.msra.mxu0 %v1225
    %1723 = vmatprep.subr.bf16.mxu0 %v1242
    %1724 = vmatpush1.bf16.msra.mxu0 %v1241
    %1725 = vmatprep.subr.bf16.mxu0 %v1258
    %1726 = vmatpush1.bf16.msra.mxu0 %v1257
    %1727 = vmatprep.subr.bf16.mxu0 %v1274
    %1728 = vmatpush1.bf16.msra.mxu0 %v1273
    %1729 = vmatprep.subr.bf16.mxu0 %v1290
    %1730 = vmatpush1.bf16.msra.mxu0 %v1289
    %1731 = vmatprep.subr.bf16.mxu0 %v1525
    %1732 = vmatpush1.bf16.msra.mxu0 %v1522
    %1733 = vmatprep.subr.bf16.mxu0 0
    %1734 = vmatpush1.bf16.msra.mxu0 0
    %1735 = vmatprep.subr.bf16.mxu0 0
    %1736 = vmatpush1.bf16.msra.mxu0 0
    %1737 = vmatprep.subr.bf16.mxu0 0
    %1738 = vmatpush1.bf16.msra.mxu0 0
    %1739 = vmatprep.subr.bf16.mxu0 0
    %1740 = vmatpush1.bf16.msra.mxu0 0
    %1741 = vmatprep.mubr.bf16.mxu0 %v1491
    %1742 = vmatmul.mubr.bf16.gmra.mrb[0].mxu0 %v267
    %v1743 = vpop.f32.mrb[0].mxu0
    %v1744 = vadd.f32 %v500, %v1743
    %v1745 = vpop.f32.mrb[0].mxu0
    %v1746 = vadd.f32 %v504, %v1745
    %v1747 = vpop.f32.mrb[0].mxu0
    %v1748 = vpop.f32.mrb[0].mxu0
    %1749 = vdwg.mxu0
    %1750 = vmatprep.subr.bf16.mxu0 %v1132
    %1751 = vmatpush1.bf16.msra.mxu0 %v1131
    %1752 = vmatprep.subr.bf16.mxu0 %v1148
    %1753 = vmatpush1.bf16.msra.mxu0 %v1147
    %1754 = vmatprep.subr.bf16.mxu0 %v1164
    %1755 = vmatpush1.bf16.msra.mxu0 %v1163
    %1756 = vmatprep.subr.bf16.mxu0 %v1180
    %1757 = vmatpush1.bf16.msra.mxu0 %v1179
    %1758 = vmatprep.subr.bf16.mxu0 %v1196
    %1759 = vmatpush1.bf16.msra.mxu0 %v1195
    %1760 = vmatprep.subr.bf16.mxu0 %v1212
    %1761 = vmatpush1.bf16.msra.mxu0 %v1211
    %1762 = vmatprep.subr.bf16.mxu0 %v1228
    %1763 = vmatpush1.bf16.msra.mxu0 %v1227
    %1764 = vmatprep.subr.bf16.mxu0 %v1244
    %1765 = vmatpush1.bf16.msra.mxu0 %v1243
    %1766 = vmatprep.subr.bf16.mxu0 %v1260
    %1767 = vmatpush1.bf16.msra.mxu0 %v1259
    %1768 = vmatprep.subr.bf16.mxu0 %v1276
    %1769 = vmatpush1.bf16.msra.mxu0 %v1275
    %1770 = vmatprep.subr.bf16.mxu0 %v1292
    %1771 = vmatpush1.bf16.msra.mxu0 %v1291
    %1772 = vmatprep.subr.bf16.mxu0 %v1531
    %1773 = vmatpush1.bf16.msra.mxu0 %v1528
    %1774 = vmatprep.subr.bf16.mxu0 0
    %1775 = vmatpush1.bf16.msra.mxu0 0
    %1776 = vmatprep.subr.bf16.mxu0 0
    %1777 = vmatpush1.bf16.msra.mxu0 0
    %1778 = vmatprep.subr.bf16.mxu0 0
    %1779 = vmatpush1.bf16.msra.mxu0 0
    %1780 = vmatprep.subr.bf16.mxu0 0
    %1781 = vmatpush1.bf16.msra.mxu0 0
    %1782 = vmatprep.mubr.bf16.mxu0 %v1491
    %1783 = vmatmul.mubr.bf16.gmra.mrb[0].mxu0 %v267
    %v1784 = vpop.f32.mrb[0].mxu0
    %v1785 = vadd.f32 %v508, %v1784
    %v1786 = vpop.f32.mrb[0].mxu0
    %v1787 = vadd.f32 %v512, %v1786
    %v1788 = vpop.f32.mrb[0].mxu0
    %v1789 = vpop.f32.mrb[0].mxu0
    %1790 = vdwg.mxu0
    %1791 = vmatprep.subr.bf16.mxu0 %v1134
    %1792 = vmatpush1.bf16.msra.mxu0 %v1133
    %1793 = vmatprep.subr.bf16.mxu0 %v1150
    %1794 = vmatpush1.bf16.msra.mxu0 %v1149
    %1795 = vmatprep.subr.bf16.mxu0 %v1166
    %1796 = vmatpush1.bf16.msra.mxu0 %v1165
    %1797 = vmatprep.subr.bf16.mxu0 %v1182
    %1798 = vmatpush1.bf16.msra.mxu0 %v1181
    %1799 = vmatprep.subr.bf16.mxu0 %v1198
    %1800 = vmatpush1.bf16.msra.mxu0 %v1197
    %1801 = vmatprep.subr.bf16.mxu0 %v1214
    %1802 = vmatpush1.bf16.msra.mxu0 %v1213
    %1803 = vmatprep.subr.bf16.mxu0 %v1230
    %1804 = vmatpush1.bf16.msra.mxu0 %v1229
    %1805 = vmatprep.subr.bf16.mxu0 %v1246
    %1806 = vmatpush1.bf16.msra.mxu0 %v1245
    %1807 = vmatprep.subr.bf16.mxu0 %v1262
    %1808 = vmatpush1.bf16.msra.mxu0 %v1261
    %1809 = vmatprep.subr.bf16.mxu0 %v1278
    %1810 = vmatpush1.bf16.msra.mxu0 %v1277
    %1811 = vmatprep.subr.bf16.mxu0 %v1294
    %1812 = vmatpush1.bf16.msra.mxu0 %v1293
    %1813 = vmatprep.subr.bf16.mxu0 %v1537
    %1814 = vmatpush1.bf16.msra.mxu0 %v1534
    %1815 = vmatprep.subr.bf16.mxu0 0
    %1816 = vmatpush1.bf16.msra.mxu0 0
    %1817 = vmatprep.subr.bf16.mxu0 0
    %1818 = vmatpush1.bf16.msra.mxu0 0
    %1819 = vmatprep.subr.bf16.mxu0 0
    %1820 = vmatpush1.bf16.msra.mxu0 0
    %1821 = vmatprep.subr.bf16.mxu0 0
    %1822 = vmatpush1.bf16.msra.mxu0 0
    %1823 = vmatprep.mubr.bf16.mxu0 %v1491
    %1824 = vmatmul.mubr.bf16.gmra.mrb[0].mxu0 %v267
    %v1825 = vpop.f32.mrb[0].mxu0
    %v1826 = vadd.f32 %v516, %v1825
    %v1827 = vpop.f32.mrb[0].mxu0
    %v1828 = vadd.f32 %v520, %v1827
    %v1829 = vpop.f32.mrb[0].mxu0
    %v1830 = vpop.f32.mrb[0].mxu0
    %1831 = vdwg.mxu0
    %1832 = vmatprep.subr.bf16.mxu0 %v1136
    %1833 = vmatpush1.bf16.msra.mxu0 %v1135
    %1834 = vmatprep.subr.bf16.mxu0 %v1152
    %1835 = vmatpush1.bf16.msra.mxu0 %v1151
    %1836 = vmatprep.subr.bf16.mxu0 %v1168
    %1837 = vmatpush1.bf16.msra.mxu0 %v1167
    %1838 = vmatprep.subr.bf16.mxu0 %v1184
    %1839 = vmatpush1.bf16.msra.mxu0 %v1183
    %1840 = vmatprep.subr.bf16.mxu0 %v1200
    %1841 = vmatpush1.bf16.msra.mxu0 %v1199
    %1842 = vmatprep.subr.bf16.mxu0 %v1216
    %1843 = vmatpush1.bf16.msra.mxu0 %v1215
    %1844 = vmatprep.subr.bf16.mxu0 %v1232
    %1845 = vmatpush1.bf16.msra.mxu0 %v1231
    %1846 = vmatprep.subr.bf16.mxu0 %v1248
    %1847 = vmatpush1.bf16.msra.mxu0 %v1247
    %1848 = vmatprep.subr.bf16.mxu0 %v1264
    %1849 = vmatpush1.bf16.msra.mxu0 %v1263
    %1850 = vmatprep.subr.bf16.mxu0 %v1280
    %1851 = vmatpush1.bf16.msra.mxu0 %v1279
    %1852 = vmatprep.subr.bf16.mxu0 %v1296
    %1853 = vmatpush1.bf16.msra.mxu0 %v1295
    %1854 = vmatprep.subr.bf16.mxu0 %v1543
    %1855 = vmatpush1.bf16.msra.mxu0 %v1540
    %1856 = vmatprep.subr.bf16.mxu0 0
    %1857 = vmatpush1.bf16.msra.mxu0 0
    %1858 = vmatprep.subr.bf16.mxu0 0
    %1859 = vmatpush1.bf16.msra.mxu0 0
    %1860 = vmatprep.subr.bf16.mxu0 0
    %1861 = vmatpush1.bf16.msra.mxu0 0
    %1862 = vmatprep.subr.bf16.mxu0 0
    %1863 = vmatpush1.bf16.msra.mxu0 0
    %1864 = vmatprep.mubr.bf16.mxu0 %v1491
    %1865 = vmatmul.mubr.bf16.gmra.mrb[0].mxu0 %v267
    %v1866 = vpop.f32.mrb[0].mxu0
    %v1867 = vadd.f32 %v524, %v1866
    %v1868 = vpop.f32.mrb[0].mxu0
    %v1869 = vadd.f32 %v528, %v1868
    %v1870 = vpop.f32.mrb[0].mxu0
    %v1871 = vpop.f32.mrb[0].mxu0
    %1872 = vdwg.mxu0
    %1873 = vst [vmem:[#allocation2] sm:$0xff] %v1580
    %1874 = vst [vmem:[#allocation2 + $0x8] sm:$0xff] %v1582
    %1875 = vst [vmem:[#allocation2 + $0x10] sm:$0xff] %v1621
    %1876 = vst [vmem:[#allocation2 + $0x18] sm:$0xff] %v1623
    %1877 = vst [vmem:[#allocation2 + $0x20] sm:$0xff] %v1662
    %1878 = vst [vmem:[#allocation2 + $0x28] sm:$0xff] %v1664
    %1879 = vst [vmem:[#allocation2 + $0x30] sm:$0xff] %v1703
    %1880 = vst [vmem:[#allocation2 + $0x38] sm:$0xff] %v1705
    %1881 = vst [vmem:[#allocation2 + $0x40] sm:$0xff] %v1744
    %1882 = vst [vmem:[#allocation2 + $0x48] sm:$0xff] %v1746
    %1883 = vst [vmem:[#allocation2 + $0x50] sm:$0xff] %v1785
    %1884 = vst [vmem:[#allocation2 + $0x58] sm:$0xff] %v1787
    %1885 = vst [vmem:[#allocation2 + $0x60] sm:$0xff] %v1826
    %1886 = vst [vmem:[#allocation2 + $0x68] sm:$0xff] %v1828
    %1887 = vst [vmem:[#allocation2 + $0x70] sm:$0xff] %v1867
    %1888 = vst [vmem:[#allocation2 + $0x78] sm:$0xff] %v1869
    %s1889 = smul.u32 4, 64
    %s1890 = smul.u32 %s1889, 16
    %s1891 = sshll.u32 %s1890, 4
    %1892 = dma.done [#allocation9], %s1891
    %v1893 = vld [vmem:[#allocation2] sm:$0xff]
    %v1894 = vld [vmem:[#allocation2 + $0x8] sm:$0xff]
    %v1895 = vld [vmem:[#allocation2 + $0x10] sm:$0xff]
    %v1896 = vld [vmem:[#allocation2 + $0x18] sm:$0xff]
    %v1897 = vld [vmem:[#allocation2 + $0x20] sm:$0xff]
    %v1898 = vld [vmem:[#allocation2 + $0x28] sm:$0xff]
    %v1899 = vld [vmem:[#allocation2 + $0x30] sm:$0xff]
    %v1900 = vld [vmem:[#allocation2 + $0x38] sm:$0xff]
    %v1901 = vld [vmem:[#allocation2 + $0x40] sm:$0xff]
    %v1902 = vld [vmem:[#allocation2 + $0x48] sm:$0xff]
    %v1903 = vld [vmem:[#allocation2 + $0x50] sm:$0xff]
    %v1904 = vld [vmem:[#allocation2 + $0x58] sm:$0xff]
    %v1905 = vld [vmem:[#allocation2 + $0x60] sm:$0xff]
    %v1906 = vld [vmem:[#allocation2 + $0x68] sm:$0xff]
    %v1907 = vld [vmem:[#allocation2 + $0x70] sm:$0xff]
    %v1908 = vld [vmem:[#allocation2 + $0x78] sm:$0xff]
    %v1909 = vld [vmem:[#allocation5] sm:$0xff]
    %v1910 = vld [vmem:[#allocation5 + $0x8] sm:$0xff]
    %v1911 = vld [vmem:[#allocation5 + $0x10] sm:$0xff]
    %v1912 = vld [vmem:[#allocation5 + $0x18] sm:$0xff]
    %v1913 = vld [vmem:[#allocation5 + $0x20] sm:$0xff]
    %v1914 = vld [vmem:[#allocation5 + $0x28] sm:$0xff]
    %v1915 = vld [vmem:[#allocation5 + $0x30] sm:$0xff]
    %v1916 = vld [vmem:[#allocation5 + $0x38] sm:$0xff]
    %v1917 = vld [vmem:[#allocation5 + $0x40] sm:$0xff]
    %v1918 = vld [vmem:[#allocation5 + $0x48] sm:$0xff]
    %v1919 = vld [vmem:[#allocation5 + $0x50] sm:$0xff]
    %v1920 = vld [vmem:[#allocation5 + $0x58] sm:$0xff]
    %v1921 = vld [vmem:[#allocation5 + $0x60] sm:$0xff]
    %v1922 = vld [vmem:[#allocation5 + $0x68] sm:$0xff]
    %v1923 = vld [vmem:[#allocation5 + $0x70] sm:$0xff]
    %v1924 = vld [vmem:[#allocation5 + $0x78] sm:$0xff]
    %v1925 = vld [vmem:[#allocation5 + $0x80] sm:$0xff]
    %v1926 = vld [vmem:[#allocation5 + $0x88] sm:$0xff]
    %v1927 = vld [vmem:[#allocation5 + $0x90] sm:$0xff]
    %v1928 = vld [vmem:[#allocation5 + $0x98] sm:$0xff]
    %v1929 = vld [vmem:[#allocation5 + $0xa0] sm:$0xff]
    %v1930 = vld [vmem:[#allocation5 + $0xa8] sm:$0xff]
    %v1931 = vld [vmem:[#allocation5 + $0xb0] sm:$0xff]
    %v1932 = vld [vmem:[#allocation5 + $0xb8] sm:$0xff]
    %v1933 = vld [vmem:[#allocation5 + $0xc0] sm:$0xff]
    %v1934 = vld [vmem:[#allocation5 + $0xc8] sm:$0xff]
    %v1935 = vld [vmem:[#allocation5 + $0xd0] sm:$0xff]
    %v1936 = vld [vmem:[#allocation5 + $0xd8] sm:$0xff]
    %v1937 = vld [vmem:[#allocation5 + $0xe0] sm:$0xff]
    %v1938 = vld [vmem:[#allocation5 + $0xe8] sm:$0xff]
    %v1939 = vld [vmem:[#allocation5 + $0xf0] sm:$0xff]
    %v1940 = vld [vmem:[#allocation5 + $0xf8] sm:$0xff]
    %v1941 = vld [vmem:[#allocation5 + $0x100] sm:$0xff]
    %v1942 = vld [vmem:[#allocation5 + $0x108] sm:$0xff]
    %v1943 = vld [vmem:[#allocation5 + $0x110] sm:$0xff]
    %v1944 = vld [vmem:[#allocation5 + $0x118] sm:$0xff]
    %v1945 = vld [vmem:[#allocation5 + $0x120] sm:$0xff]
    %v1946 = vld [vmem:[#allocation5 + $0x128] sm:$0xff]
    %v1947 = vld [vmem:[#allocation5 + $0x130] sm:$0xff]
    %v1948 = vld [vmem:[#allocation5 + $0x138] sm:$0xff]
    %v1949 = vld [vmem:[#allocation5 + $0x140] sm:$0xff]
    %v1950 = vld [vmem:[#allocation5 + $0x148] sm:$0xff]
    %v1951 = vld [vmem:[#allocation5 + $0x150] sm:$0xff]
    %v1952 = vld [vmem:[#allocation5 + $0x158] sm:$0xff]
    %v1953 = vld [vmem:[#allocation5 + $0x160] sm:$0xff]
    %v1954 = vld [vmem:[#allocation5 + $0x168] sm:$0xff]
    %v1955 = vld [vmem:[#allocation5 + $0x170] sm:$0xff]
    %v1956 = vld [vmem:[#allocation5 + $0x178] sm:$0xff]
    %v1957 = vld [vmem:[#allocation5 + $0x180] sm:$0xff]
    %v1958 = vld [vmem:[#allocation5 + $0x188] sm:$0xff]
    %v1959 = vld [vmem:[#allocation5 + $0x190] sm:$0xff]
    %v1960 = vld [vmem:[#allocation5 + $0x198] sm:$0xff]
    %v1961 = vld [vmem:[#allocation5 + $0x1a0] sm:$0xff]
    %v1962 = vld [vmem:[#allocation5 + $0x1a8] sm:$0xff]
    %v1963 = vld [vmem:[#allocation5 + $0x1b0] sm:$0xff]
    %v1964 = vld [vmem:[#allocation5 + $0x1b8] sm:$0xff]
    %v1965 = vld [vmem:[#allocation5 + $0x1c0] sm:$0xff]
    %v1966 = vld [vmem:[#allocation5 + $0x1c8] sm:$0xff]
    %v1967 = vld [vmem:[#allocation5 + $0x1d0] sm:$0xff]
    %v1968 = vld [vmem:[#allocation5 + $0x1d8] sm:$0xff]
    %v1969 = vld [vmem:[#allocation5 + $0x1e0] sm:$0xff]
    %v1970 = vld [vmem:[#allocation5 + $0x1e8] sm:$0xff]
    %v1971 = vld [vmem:[#allocation5 + $0x1f0] sm:$0xff]
    %v1972 = vld [vmem:[#allocation5 + $0x1f8] sm:$0xff]
    %v1973 = vld [vmem:[#allocation5 + $0x200] sm:$0xff]
    %v1974 = vld [vmem:[#allocation5 + $0x208] sm:$0xff]
    %v1975 = vld [vmem:[#allocation5 + $0x210] sm:$0xff]
    %v1976 = vld [vmem:[#allocation5 + $0x218] sm:$0xff]
    %v1977 = vld [vmem:[#allocation5 + $0x220] sm:$0xff]
    %v1978 = vld [vmem:[#allocation5 + $0x228] sm:$0xff]
    %v1979 = vld [vmem:[#allocation5 + $0x230] sm:$0xff]
    %v1980 = vld [vmem:[#allocation5 + $0x238] sm:$0xff]
    %v1981 = vld [vmem:[#allocation5 + $0x240] sm:$0xff]
    %v1982 = vld [vmem:[#allocation5 + $0x248] sm:$0xff]
    %v1983 = vld [vmem:[#allocation5 + $0x250] sm:$0xff]
    %v1984 = vld [vmem:[#allocation5 + $0x258] sm:$0xff]
    %v1985 = vld [vmem:[#allocation5 + $0x260] sm:$0xff]
    %v1986 = vld [vmem:[#allocation5 + $0x268] sm:$0xff]
    %v1987 = vld [vmem:[#allocation5 + $0x270] sm:$0xff]
    %v1988 = vld [vmem:[#allocation5 + $0x278] sm:$0xff]
    %v1989 = vld [vmem:[#allocation5 + $0x280] sm:$0xff]
    %v1990 = vld [vmem:[#allocation5 + $0x288] sm:$0xff]
    %v1991 = vld [vmem:[#allocation5 + $0x290] sm:$0xff]
    %v1992 = vld [vmem:[#allocation5 + $0x298] sm:$0xff]
    %v1993 = vld [vmem:[#allocation5 + $0x2a0] sm:$0xff]
    %v1994 = vld [vmem:[#allocation5 + $0x2a8] sm:$0xff]
    %v1995 = vld [vmem:[#allocation5 + $0x2b0] sm:$0xff]
    %v1996 = vld [vmem:[#allocation5 + $0x2b8] sm:$0xff]
    %v1997 = vld [vmem:[#allocation5 + $0x2c0] sm:$0xff]
    %v1998 = vld [vmem:[#allocation5 + $0x2c8] sm:$0xff]
    %v1999 = vld [vmem:[#allocation5 + $0x2d0] sm:$0xff]
    %v2000 = vld [vmem:[#allocation5 + $0x2d8] sm:$0xff]
    %v2001 = vld [vmem:[#allocation5 + $0x2e0] sm:$0xff]
    %v2002 = vld [vmem:[#allocation5 + $0x2e8] sm:$0xff]
    %v2003 = vld [vmem:[#allocation5 + $0x2f0] sm:$0xff]
    %v2004 = vld [vmem:[#allocation5 + $0x2f8] sm:$0xff]
    %v2005 = vld [vmem:[#allocation5 + $0x300] sm:$0xff]
    %v2006 = vld [vmem:[#allocation5 + $0x308] sm:$0xff]
    %v2007 = vld [vmem:[#allocation5 + $0x310] sm:$0xff]
    %v2008 = vld [vmem:[#allocation5 + $0x318] sm:$0xff]
    %v2009 = vld [vmem:[#allocation5 + $0x320] sm:$0xff]
    %v2010 = vld [vmem:[#allocation5 + $0x328] sm:$0xff]
    %v2011 = vld [vmem:[#allocation5 + $0x330] sm:$0xff]
    %v2012 = vld [vmem:[#allocation5 + $0x338] sm:$0xff]
    %v2013 = vld [vmem:[#allocation5 + $0x340] sm:$0xff]
    %v2014 = vld [vmem:[#allocation5 + $0x348] sm:$0xff]
    %v2015 = vld [vmem:[#allocation5 + $0x350] sm:$0xff]
    %v2016 = vld [vmem:[#allocation5 + $0x358] sm:$0xff]
    %v2017 = vld [vmem:[#allocation5 + $0x360] sm:$0xff]
    %v2018 = vld [vmem:[#allocation5 + $0x368] sm:$0xff]
    %v2019 = vld [vmem:[#allocation5 + $0x370] sm:$0xff]
    %v2020 = vld [vmem:[#allocation5 + $0x378] sm:$0xff]
    %v2021 = vld [vmem:[#allocation5 + $0x380] sm:$0xff]
    %v2022 = vld [vmem:[#allocation5 + $0x388] sm:$0xff]
    %v2023 = vld [vmem:[#allocation5 + $0x390] sm:$0xff]
    %v2024 = vld [vmem:[#allocation5 + $0x398] sm:$0xff]
    %v2025 = vld [vmem:[#allocation5 + $0x3a0] sm:$0xff]
    %v2026 = vld [vmem:[#allocation5 + $0x3a8] sm:$0xff]
    %v2027 = vld [vmem:[#allocation5 + $0x3b0] sm:$0xff]
    %v2028 = vld [vmem:[#allocation5 + $0x3b8] sm:$0xff]
    %v2029 = vld [vmem:[#allocation5 + $0x3c0] sm:$0xff]
    %v2030 = vld [vmem:[#allocation5 + $0x3c8] sm:$0xff]
    %v2031 = vld [vmem:[#allocation5 + $0x3d0] sm:$0xff]
    %v2032 = vld [vmem:[#allocation5 + $0x3d8] sm:$0xff]
    %v2033 = vld [vmem:[#allocation5 + $0x3e0] sm:$0xff]
    %v2034 = vld [vmem:[#allocation5 + $0x3e8] sm:$0xff]
    %v2035 = vld [vmem:[#allocation5 + $0x3f0] sm:$0xff]
    %v2036 = vld [vmem:[#allocation5 + $0x3f8] sm:$0xff]
    %v2037 = vld [vmem:[#allocation5 + $0x400] sm:$0xff]
    %v2038 = vld [vmem:[#allocation5 + $0x408] sm:$0xff]
    %v2039 = vld [vmem:[#allocation5 + $0x410] sm:$0xff]
    %v2040 = vld [vmem:[#allocation5 + $0x418] sm:$0xff]
    %v2041 = vld [vmem:[#allocation5 + $0x420] sm:$0xff]
    %v2042 = vld [vmem:[#allocation5 + $0x428] sm:$0xff]
    %v2043 = vld [vmem:[#allocation5 + $0x430] sm:$0xff]
    %v2044 = vld [vmem:[#allocation5 + $0x438] sm:$0xff]
    %v2045 = vld [vmem:[#allocation5 + $0x440] sm:$0xff]
    %v2046 = vld [vmem:[#allocation5 + $0x448] sm:$0xff]
    %v2047 = vld [vmem:[#allocation5 + $0x450] sm:$0xff]
    %v2048 = vld [vmem:[#allocation5 + $0x458] sm:$0xff]
    %v2049 = vld [vmem:[#allocation5 + $0x460] sm:$0xff]
    %v2050 = vld [vmem:[#allocation5 + $0x468] sm:$0xff]
    %v2051 = vld [vmem:[#allocation5 + $0x470] sm:$0xff]
    %v2052 = vld [vmem:[#allocation5 + $0x478] sm:$0xff]
    %v2053 = vld [vmem:[#allocation5 + $0x480] sm:$0xff]
    %v2054 = vld [vmem:[#allocation5 + $0x488] sm:$0xff]
    %v2055 = vld [vmem:[#allocation5 + $0x490] sm:$0xff]
    %v2056 = vld [vmem:[#allocation5 + $0x498] sm:$0xff]
    %v2057 = vld [vmem:[#allocation5 + $0x4a0] sm:$0xff]
    %v2058 = vld [vmem:[#allocation5 + $0x4a8] sm:$0xff]
    %v2059 = vld [vmem:[#allocation5 + $0x4b0] sm:$0xff]
    %v2060 = vld [vmem:[#allocation5 + $0x4b8] sm:$0xff]
    %v2061 = vld [vmem:[#allocation5 + $0x4c0] sm:$0xff]
    %v2062 = vld [vmem:[#allocation5 + $0x4c8] sm:$0xff]
    %v2063 = vld [vmem:[#allocation5 + $0x4d0] sm:$0xff]
    %v2064 = vld [vmem:[#allocation5 + $0x4d8] sm:$0xff]
    %v2065 = vld [vmem:[#allocation5 + $0x4e0] sm:$0xff]
    %v2066 = vld [vmem:[#allocation5 + $0x4e8] sm:$0xff]
    %v2067 = vld [vmem:[#allocation5 + $0x4f0] sm:$0xff]
    %v2068 = vld [vmem:[#allocation5 + $0x4f8] sm:$0xff]
    %v2069 = vld [vmem:[#allocation5 + $0x500] sm:$0xff]
    %v2070 = vld [vmem:[#allocation5 + $0x508] sm:$0xff]
    %v2071 = vld [vmem:[#allocation5 + $0x510] sm:$0xff]
    %v2072 = vld [vmem:[#allocation5 + $0x518] sm:$0xff]
    %v2073 = vld [vmem:[#allocation5 + $0x520] sm:$0xff]
    %v2074 = vld [vmem:[#allocation5 + $0x528] sm:$0xff]
    %v2075 = vld [vmem:[#allocation5 + $0x530] sm:$0xff]
    %v2076 = vld [vmem:[#allocation5 + $0x538] sm:$0xff]
    %v2077 = vld [vmem:[#allocation5 + $0x540] sm:$0xff]
    %v2078 = vld [vmem:[#allocation5 + $0x548] sm:$0xff]
    %v2079 = vld [vmem:[#allocation5 + $0x550] sm:$0xff]
    %v2080 = vld [vmem:[#allocation5 + $0x558] sm:$0xff]
    %v2081 = vld [vmem:[#allocation5 + $0x560] sm:$0xff]
    %v2082 = vld [vmem:[#allocation5 + $0x568] sm:$0xff]
    %v2083 = vld [vmem:[#allocation5 + $0x570] sm:$0xff]
    %v2084 = vld [vmem:[#allocation5 + $0x578] sm:$0xff]
    %v2085 = vld [vmem:[#allocation5 + $0x580] sm:$0xff]
    %v2086 = vld [vmem:[#allocation5 + $0x588] sm:$0xff]
    %v2087 = vld [vmem:[#allocation5 + $0x590] sm:$0xff]
    %v2088 = vld [vmem:[#allocation5 + $0x598] sm:$0xff]
    %v2089 = vld [vmem:[#allocation5 + $0x5a0] sm:$0xff]
    %v2090 = vld [vmem:[#allocation5 + $0x5a8] sm:$0xff]
    %v2091 = vld [vmem:[#allocation5 + $0x5b0] sm:$0xff]
    %v2092 = vld [vmem:[#allocation5 + $0x5b8] sm:$0xff]
    %v2093 = vld [vmem:[#allocation5 + $0x5c0] sm:$0xff]
    %v2094 = vld [vmem:[#allocation5 + $0x5c8] sm:$0xff]
    %v2095 = vld [vmem:[#allocation5 + $0x5d0] sm:$0xff]
    %v2096 = vld [vmem:[#allocation5 + $0x5d8] sm:$0xff]
    %v2097 = vld [vmem:[#allocation5 + $0x5e0] sm:$0xff]
    %v2098 = vld [vmem:[#allocation5 + $0x5e8] sm:$0xff]
    %v2099 = vld [vmem:[#allocation5 + $0x5f0] sm:$0xff]
    %v2100 = vld [vmem:[#allocation5 + $0x5f8] sm:$0xff]
    %v2101 = vld [vmem:[#allocation5 + $0x600] sm:$0xff]
    %v2102 = vld [vmem:[#allocation5 + $0x608] sm:$0xff]
    %v2103 = vld [vmem:[#allocation5 + $0x610] sm:$0xff]
    %v2104 = vld [vmem:[#allocation5 + $0x618] sm:$0xff]
    %v2105 = vld [vmem:[#allocation5 + $0x620] sm:$0xff]
    %v2106 = vld [vmem:[#allocation5 + $0x628] sm:$0xff]
    %v2107 = vld [vmem:[#allocation5 + $0x630] sm:$0xff]
    %v2108 = vld [vmem:[#allocation5 + $0x638] sm:$0xff]
    %v2109 = vld [vmem:[#allocation5 + $0x640] sm:$0xff]
    %v2110 = vld [vmem:[#allocation5 + $0x648] sm:$0xff]
    %v2111 = vld [vmem:[#allocation5 + $0x650] sm:$0xff]
    %v2112 = vld [vmem:[#allocation5 + $0x658] sm:$0xff]
    %v2113 = vld [vmem:[#allocation5 + $0x660] sm:$0xff]
    %v2114 = vld [vmem:[#allocation5 + $0x668] sm:$0xff]
    %v2115 = vld [vmem:[#allocation5 + $0x670] sm:$0xff]
    %v2116 = vld [vmem:[#allocation5 + $0x678] sm:$0xff]
    %v2117 = vld [vmem:[#allocation5 + $0x680] sm:$0xff]
    %v2118 = vld [vmem:[#allocation5 + $0x688] sm:$0xff]
    %v2119 = vld [vmem:[#allocation5 + $0x690] sm:$0xff]
    %v2120 = vld [vmem:[#allocation5 + $0x698] sm:$0xff]
    %v2121 = vld [vmem:[#allocation5 + $0x6a0] sm:$0xff]
    %v2122 = vld [vmem:[#allocation5 + $0x6a8] sm:$0xff]
    %v2123 = vld [vmem:[#allocation5 + $0x6b0] sm:$0xff]
    %v2124 = vld [vmem:[#allocation5 + $0x6b8] sm:$0xff]
    %v2125 = vld [vmem:[#allocation5 + $0x6c0] sm:$0xff]
    %v2126 = vld [vmem:[#allocation5 + $0x6c8] sm:$0xff]
    %v2127 = vld [vmem:[#allocation5 + $0x6d0] sm:$0xff]
    %v2128 = vld [vmem:[#allocation5 + $0x6d8] sm:$0xff]
    %v2129 = vld [vmem:[#allocation5 + $0x6e0] sm:$0xff]
    %v2130 = vld [vmem:[#allocation5 + $0x6e8] sm:$0xff]
    %v2131 = vld [vmem:[#allocation5 + $0x6f0] sm:$0xff]
    %v2132 = vld [vmem:[#allocation5 + $0x6f8] sm:$0xff]
    %v2133 = vld [vmem:[#allocation5 + $0x700] sm:$0xff]
    %v2134 = vld [vmem:[#allocation5 + $0x708] sm:$0xff]
    %v2135 = vld [vmem:[#allocation5 + $0x710] sm:$0xff]
    %v2136 = vld [vmem:[#allocation5 + $0x718] sm:$0xff]
    %v2137 = vld [vmem:[#allocation5 + $0x720] sm:$0xff]
    %v2138 = vld [vmem:[#allocation5 + $0x728] sm:$0xff]
    %v2139 = vld [vmem:[#allocation5 + $0x730] sm:$0xff]
    %v2140 = vld [vmem:[#allocation5 + $0x738] sm:$0xff]
    %v2141 = vld [vmem:[#allocation5 + $0x740] sm:$0xff]
    %v2142 = vld [vmem:[#allocation5 + $0x748] sm:$0xff]
    %v2143 = vld [vmem:[#allocation5 + $0x750] sm:$0xff]
    %v2144 = vld [vmem:[#allocation5 + $0x758] sm:$0xff]
    %v2145 = vld [vmem:[#allocation5 + $0x760] sm:$0xff]
    %v2146 = vld [vmem:[#allocation5 + $0x768] sm:$0xff]
    %v2147 = vld [vmem:[#allocation5 + $0x770] sm:$0xff]
    %v2148 = vld [vmem:[#allocation5 + $0x778] sm:$0xff]
    %v2149 = vld [vmem:[#allocation5 + $0x780] sm:$0xff]
    %v2150 = vld [vmem:[#allocation5 + $0x788] sm:$0xff]
    %v2151 = vld [vmem:[#allocation5 + $0x790] sm:$0xff]
    %v2152 = vld [vmem:[#allocation5 + $0x798] sm:$0xff]
    %v2153 = vld [vmem:[#allocation5 + $0x7a0] sm:$0xff]
    %v2154 = vld [vmem:[#allocation5 + $0x7a8] sm:$0xff]
    %v2155 = vld [vmem:[#allocation5 + $0x7b0] sm:$0xff]
    %v2156 = vld [vmem:[#allocation5 + $0x7b8] sm:$0xff]
    %v2157 = vld [vmem:[#allocation5 + $0x7c0] sm:$0xff]
    %v2158 = vld [vmem:[#allocation5 + $0x7c8] sm:$0xff]
    %v2159 = vld [vmem:[#allocation5 + $0x7d0] sm:$0xff]
    %v2160 = vld [vmem:[#allocation5 + $0x7d8] sm:$0xff]
    %v2161 = vld [vmem:[#allocation5 + $0x7e0] sm:$0xff]
    %v2162 = vld [vmem:[#allocation5 + $0x7e8] sm:$0xff]
    %v2163 = vld [vmem:[#allocation5 + $0x7f0] sm:$0xff]
    %v2164 = vld [vmem:[#allocation5 + $0x7f8] sm:$0xff]
    %v2165 = vld [vmem:[#allocation5 + $0x800] sm:$0xff]
    %v2166 = vld [vmem:[#allocation5 + $0x808] sm:$0xff]
    %v2167 = vld [vmem:[#allocation5 + $0x810] sm:$0xff]
    %v2168 = vld [vmem:[#allocation5 + $0x818] sm:$0xff]
    %v2169 = vld [vmem:[#allocation5 + $0x820] sm:$0xff]
    %v2170 = vld [vmem:[#allocation5 + $0x828] sm:$0xff]
    %v2171 = vld [vmem:[#allocation5 + $0x830] sm:$0xff]
    %v2172 = vld [vmem:[#allocation5 + $0x838] sm:$0xff]
    %v2173 = vld [vmem:[#allocation5 + $0x840] sm:$0xff]
    %v2174 = vld [vmem:[#allocation5 + $0x848] sm:$0xff]
    %v2175 = vld [vmem:[#allocation5 + $0x850] sm:$0xff]
    %v2176 = vld [vmem:[#allocation5 + $0x858] sm:$0xff]
    %v2177 = vld [vmem:[#allocation5 + $0x860] sm:$0xff]
    %v2178 = vld [vmem:[#allocation5 + $0x868] sm:$0xff]
    %v2179 = vld [vmem:[#allocation5 + $0x870] sm:$0xff]
    %v2180 = vld [vmem:[#allocation5 + $0x878] sm:$0xff]
    %v2181 = vld [vmem:[#allocation5 + $0x880] sm:$0xff]
    %v2182 = vld [vmem:[#allocation5 + $0x888] sm:$0xff]
    %v2183 = vld [vmem:[#allocation5 + $0x890] sm:$0xff]
    %v2184 = vld [vmem:[#allocation5 + $0x898] sm:$0xff]
    %v2185 = vld [vmem:[#allocation5 + $0x8a0] sm:$0xff]
    %v2186 = vld [vmem:[#allocation5 + $0x8a8] sm:$0xff]
    %v2187 = vld [vmem:[#allocation5 + $0x8b0] sm:$0xff]
    %v2188 = vld [vmem:[#allocation5 + $0x8b8] sm:$0xff]
    %v2189 = vld [vmem:[#allocation5 + $0x8c0] sm:$0xff]
    %v2190 = vld [vmem:[#allocation5 + $0x8c8] sm:$0xff]
    %v2191 = vld [vmem:[#allocation5 + $0x8d0] sm:$0xff]
    %v2192 = vld [vmem:[#allocation5 + $0x8d8] sm:$0xff]
    %v2193 = vld [vmem:[#allocation5 + $0x8e0] sm:$0xff]
    %v2194 = vld [vmem:[#allocation5 + $0x8e8] sm:$0xff]
    %v2195 = vld [vmem:[#allocation5 + $0x8f0] sm:$0xff]
    %v2196 = vld [vmem:[#allocation5 + $0x8f8] sm:$0xff]
    %v2197 = vld [vmem:[#allocation5 + $0x900] sm:$0xff]
    %v2198 = vld [vmem:[#allocation5 + $0x908] sm:$0xff]
    %v2199 = vld [vmem:[#allocation5 + $0x910] sm:$0xff]
    %v2200 = vld [vmem:[#allocation5 + $0x918] sm:$0xff]
    %v2201 = vld [vmem:[#allocation5 + $0x920] sm:$0xff]
    %v2202 = vld [vmem:[#allocation5 + $0x928] sm:$0xff]
    %v2203 = vld [vmem:[#allocation5 + $0x930] sm:$0xff]
    %v2204 = vld [vmem:[#allocation5 + $0x938] sm:$0xff]
    %v2205 = vld [vmem:[#allocation5 + $0x940] sm:$0xff]
    %v2206 = vld [vmem:[#allocation5 + $0x948] sm:$0xff]
    %v2207 = vld [vmem:[#allocation5 + $0x950] sm:$0xff]
    %v2208 = vld [vmem:[#allocation5 + $0x958] sm:$0xff]
    %v2209 = vld [vmem:[#allocation5 + $0x960] sm:$0xff]
    %v2210 = vld [vmem:[#allocation5 + $0x968] sm:$0xff]
    %v2211 = vld [vmem:[#allocation5 + $0x970] sm:$0xff]
    %v2212 = vld [vmem:[#allocation5 + $0x978] sm:$0xff]
    %v2213 = vld [vmem:[#allocation5 + $0x980] sm:$0xff]
    %v2214 = vld [vmem:[#allocation5 + $0x988] sm:$0xff]
    %v2215 = vld [vmem:[#allocation5 + $0x990] sm:$0xff]
    %v2216 = vld [vmem:[#allocation5 + $0x998] sm:$0xff]
    %v2217 = vld [vmem:[#allocation5 + $0x9a0] sm:$0xff]
    %v2218 = vld [vmem:[#allocation5 + $0x9a8] sm:$0xff]
    %v2219 = vld [vmem:[#allocation5 + $0x9b0] sm:$0xff]
    %v2220 = vld [vmem:[#allocation5 + $0x9b8] sm:$0xff]
    %v2221 = vld [vmem:[#allocation5 + $0x9c0] sm:$0xff]
    %v2222 = vld [vmem:[#allocation5 + $0x9c8] sm:$0xff]
    %v2223 = vld [vmem:[#allocation5 + $0x9d0] sm:$0xff]
    %v2224 = vld [vmem:[#allocation5 + $0x9d8] sm:$0xff]
    %v2225 = vld [vmem:[#allocation5 + $0x9e0] sm:$0xff]
    %v2226 = vld [vmem:[#allocation5 + $0x9e8] sm:$0xff]
    %v2227 = vld [vmem:[#allocation5 + $0x9f0] sm:$0xff]
    %v2228 = vld [vmem:[#allocation5 + $0x9f8] sm:$0xff]
    %v2229 = vld [vmem:[#allocation5 + $0xa00] sm:$0xff]
    %v2230 = vld [vmem:[#allocation5 + $0xa08] sm:$0xff]
    %v2231 = vld [vmem:[#allocation5 + $0xa10] sm:$0xff]
    %v2232 = vld [vmem:[#allocation5 + $0xa18] sm:$0xff]
    %v2233 = vld [vmem:[#allocation5 + $0xa20] sm:$0xff]
    %v2234 = vld [vmem:[#allocation5 + $0xa28] sm:$0xff]
    %v2235 = vld [vmem:[#allocation5 + $0xa30] sm:$0xff]
    %v2236 = vld [vmem:[#allocation5 + $0xa38] sm:$0xff]
    %v2237 = vld [vmem:[#allocation5 + $0xa40] sm:$0xff]
    %v2238 = vld [vmem:[#allocation5 + $0xa48] sm:$0xff]
    %v2239 = vld [vmem:[#allocation5 + $0xa50] sm:$0xff]
    %v2240 = vld [vmem:[#allocation5 + $0xa58] sm:$0xff]
    %v2241 = vld [vmem:[#allocation5 + $0xa60] sm:$0xff]
    %v2242 = vld [vmem:[#allocation5 + $0xa68] sm:$0xff]
    %v2243 = vld [vmem:[#allocation5 + $0xa70] sm:$0xff]
    %v2244 = vld [vmem:[#allocation5 + $0xa78] sm:$0xff]
    %v2245 = vld [vmem:[#allocation5 + $0xa80] sm:$0xff]
    %v2246 = vld [vmem:[#allocation5 + $0xa88] sm:$0xff]
    %v2247 = vld [vmem:[#allocation5 + $0xa90] sm:$0xff]
    %v2248 = vld [vmem:[#allocation5 + $0xa98] sm:$0xff]
    %v2249 = vld [vmem:[#allocation5 + $0xaa0] sm:$0xff]
    %v2250 = vld [vmem:[#allocation5 + $0xaa8] sm:$0xff]
    %v2251 = vld [vmem:[#allocation5 + $0xab0] sm:$0xff]
    %v2252 = vld [vmem:[#allocation5 + $0xab8] sm:$0xff]
    %v2253 = vld [vmem:[#allocation5 + $0xac0] sm:$0xff]
    %v2254 = vld [vmem:[#allocation5 + $0xac8] sm:$0xff]
    %v2255 = vld [vmem:[#allocation5 + $0xad0] sm:$0xff]
    %v2256 = vld [vmem:[#allocation5 + $0xad8] sm:$0xff]
    %v2257 = vld [vmem:[#allocation5 + $0xae0] sm:$0xff]
    %v2258 = vld [vmem:[#allocation5 + $0xae8] sm:$0xff]
    %v2259 = vld [vmem:[#allocation5 + $0xaf0] sm:$0xff]
    %v2260 = vld [vmem:[#allocation5 + $0xaf8] sm:$0xff]
    %v2261 = vld [vmem:[#allocation5 + $0xb00] sm:$0xff]
    %v2262 = vld [vmem:[#allocation5 + $0xb08] sm:$0xff]
    %v2263 = vld [vmem:[#allocation5 + $0xb10] sm:$0xff]
    %v2264 = vld [vmem:[#allocation5 + $0xb18] sm:$0xff]
    %v2265 = vld [vmem:[#allocation5 + $0xb20] sm:$0xff]
    %v2266 = vld [vmem:[#allocation5 + $0xb28] sm:$0xff]
    %v2267 = vld [vmem:[#allocation5 + $0xb30] sm:$0xff]
    %v2268 = vld [vmem:[#allocation5 + $0xb38] sm:$0xff]
    %v2269 = vld [vmem:[#allocation5 + $0xb40] sm:$0xff]
    %v2270 = vld [vmem:[#allocation5 + $0xb48] sm:$0xff]
    %v2271 = vld [vmem:[#allocation5 + $0xb50] sm:$0xff]
    %v2272 = vld [vmem:[#allocation5 + $0xb58] sm:$0xff]
    %v2273 = vld [vmem:[#allocation5 + $0xb60] sm:$0xff]
    %v2274 = vld [vmem:[#allocation5 + $0xb68] sm:$0xff]
    %v2275 = vld [vmem:[#allocation5 + $0xb70] sm:$0xff]
    %v2276 = vld [vmem:[#allocation5 + $0xb78] sm:$0xff]
    %v2277 = vld [vmem:[#allocation5 + $0xb80] sm:$0xff]
    %v2278 = vld [vmem:[#allocation5 + $0xb88] sm:$0xff]
    %v2279 = vld [vmem:[#allocation5 + $0xb90] sm:$0xff]
    %v2280 = vld [vmem:[#allocation5 + $0xb98] sm:$0xff]
    %v2281 = vld [vmem:[#allocation5 + $0xba0] sm:$0xff]
    %v2282 = vld [vmem:[#allocation5 + $0xba8] sm:$0xff]
    %v2283 = vld [vmem:[#allocation5 + $0xbb0] sm:$0xff]
    %v2284 = vld [vmem:[#allocation5 + $0xbb8] sm:$0xff]
    %v2285 = vld [vmem:[#allocation5 + $0xbc0] sm:$0xff]
    %v2286 = vld [vmem:[#allocation5 + $0xbc8] sm:$0xff]
    %v2287 = vld [vmem:[#allocation5 + $0xbd0] sm:$0xff]
    %v2288 = vld [vmem:[#allocation5 + $0xbd8] sm:$0xff]
    %v2289 = vld [vmem:[#allocation5 + $0xbe0] sm:$0xff]
    %v2290 = vld [vmem:[#allocation5 + $0xbe8] sm:$0xff]
    %v2291 = vld [vmem:[#allocation5 + $0xbf0] sm:$0xff]
    %v2292 = vld [vmem:[#allocation5 + $0xbf8] sm:$0xff]
    %v2293 = vld [vmem:[#allocation5 + $0xc00] sm:$0xff]
    %v2294 = vld [vmem:[#allocation5 + $0xc08] sm:$0xff]
    %v2295 = vld [vmem:[#allocation5 + $0xc10] sm:$0xff]
    %v2296 = vld [vmem:[#allocation5 + $0xc18] sm:$0xff]
    %v2297 = vld [vmem:[#allocation5 + $0xc20] sm:$0xff]
    %v2298 = vld [vmem:[#allocation5 + $0xc28] sm:$0xff]
    %v2299 = vld [vmem:[#allocation5 + $0xc30] sm:$0xff]
    %v2300 = vld [vmem:[#allocation5 + $0xc38] sm:$0xff]
    %v2301 = vld [vmem:[#allocation5 + $0xc40] sm:$0xff]
    %v2302 = vld [vmem:[#allocation5 + $0xc48] sm:$0xff]
    %v2303 = vld [vmem:[#allocation5 + $0xc50] sm:$0xff]
    %v2304 = vld [vmem:[#allocation5 + $0xc58] sm:$0xff]
    %v2305 = vld [vmem:[#allocation5 + $0xc60] sm:$0xff]
    %v2306 = vld [vmem:[#allocation5 + $0xc68] sm:$0xff]
    %v2307 = vld [vmem:[#allocation5 + $0xc70] sm:$0xff]
    %v2308 = vld [vmem:[#allocation5 + $0xc78] sm:$0xff]
    %v2309 = vld [vmem:[#allocation5 + $0xc80] sm:$0xff]
    %v2310 = vld [vmem:[#allocation5 + $0xc88] sm:$0xff]
    %v2311 = vld [vmem:[#allocation5 + $0xc90] sm:$0xff]
    %v2312 = vld [vmem:[#allocation5 + $0xc98] sm:$0xff]
    %v2313 = vld [vmem:[#allocation5 + $0xca0] sm:$0xff]
    %v2314 = vld [vmem:[#allocation5 + $0xca8] sm:$0xff]
    %v2315 = vld [vmem:[#allocation5 + $0xcb0] sm:$0xff]
    %v2316 = vld [vmem:[#allocation5 + $0xcb8] sm:$0xff]
    %v2317 = vld [vmem:[#allocation5 + $0xcc0] sm:$0xff]
    %v2318 = vld [vmem:[#allocation5 + $0xcc8] sm:$0xff]
    %v2319 = vld [vmem:[#allocation5 + $0xcd0] sm:$0xff]
    %v2320 = vld [vmem:[#allocation5 + $0xcd8] sm:$0xff]
    %v2321 = vld [vmem:[#allocation5 + $0xce0] sm:$0xff]
    %v2322 = vld [vmem:[#allocation5 + $0xce8] sm:$0xff]
    %v2323 = vld [vmem:[#allocation5 + $0xcf0] sm:$0xff]
    %v2324 = vld [vmem:[#allocation5 + $0xcf8] sm:$0xff]
    %v2325 = vld [vmem:[#allocation5 + $0xd00] sm:$0xff]
    %v2326 = vld [vmem:[#allocation5 + $0xd08] sm:$0xff]
    %v2327 = vld [vmem:[#allocation5 + $0xd10] sm:$0xff]
    %v2328 = vld [vmem:[#allocation5 + $0xd18] sm:$0xff]
    %v2329 = vld [vmem:[#allocation5 + $0xd20] sm:$0xff]
    %v2330 = vld [vmem:[#allocation5 + $0xd28] sm:$0xff]
    %v2331 = vld [vmem:[#allocation5 + $0xd30] sm:$0xff]
    %v2332 = vld [vmem:[#allocation5 + $0xd38] sm:$0xff]
    %v2333 = vld [vmem:[#allocation5 + $0xd40] sm:$0xff]
    %v2334 = vld [vmem:[#allocation5 + $0xd48] sm:$0xff]
    %v2335 = vld [vmem:[#allocation5 + $0xd50] sm:$0xff]
    %v2336 = vld [vmem:[#allocation5 + $0xd58] sm:$0xff]
    %v2337 = vld [vmem:[#allocation5 + $0xd60] sm:$0xff]
    %v2338 = vld [vmem:[#allocation5 + $0xd68] sm:$0xff]
    %v2339 = vld [vmem:[#allocation5 + $0xd70] sm:$0xff]
    %v2340 = vld [vmem:[#allocation5 + $0xd78] sm:$0xff]
    %v2341 = vld [vmem:[#allocation5 + $0xd80] sm:$0xff]
    %v2342 = vld [vmem:[#allocation5 + $0xd88] sm:$0xff]
    %v2343 = vld [vmem:[#allocation5 + $0xd90] sm:$0xff]
    %v2344 = vld [vmem:[#allocation5 + $0xd98] sm:$0xff]
    %v2345 = vld [vmem:[#allocation5 + $0xda0] sm:$0xff]
    %v2346 = vld [vmem:[#allocation5 + $0xda8] sm:$0xff]
    %v2347 = vld [vmem:[#allocation5 + $0xdb0] sm:$0xff]
    %v2348 = vld [vmem:[#allocation5 + $0xdb8] sm:$0xff]
    %v2349 = vld [vmem:[#allocation5 + $0xdc0] sm:$0xff]
    %v2350 = vld [vmem:[#allocation5 + $0xdc8] sm:$0xff]
    %v2351 = vld [vmem:[#allocation5 + $0xdd0] sm:$0xff]
    %v2352 = vld [vmem:[#allocation5 + $0xdd8] sm:$0xff]
    %v2353 = vld [vmem:[#allocation5 + $0xde0] sm:$0xff]
    %v2354 = vld [vmem:[#allocation5 + $0xde8] sm:$0xff]
    %v2355 = vld [vmem:[#allocation5 + $0xdf0] sm:$0xff]
    %v2356 = vld [vmem:[#allocation5 + $0xdf8] sm:$0xff]
    %v2357 = vld [vmem:[#allocation5 + $0xe00] sm:$0xff]
    %v2358 = vld [vmem:[#allocation5 + $0xe08] sm:$0xff]
    %v2359 = vld [vmem:[#allocation5 + $0xe10] sm:$0xff]
    %v2360 = vld [vmem:[#allocation5 + $0xe18] sm:$0xff]
    %v2361 = vld [vmem:[#allocation5 + $0xe20] sm:$0xff]
    %v2362 = vld [vmem:[#allocation5 + $0xe28] sm:$0xff]
    %v2363 = vld [vmem:[#allocation5 + $0xe30] sm:$0xff]
    %v2364 = vld [vmem:[#allocation5 + $0xe38] sm:$0xff]
    %v2365 = vld [vmem:[#allocation5 + $0xe40] sm:$0xff]
    %v2366 = vld [vmem:[#allocation5 + $0xe48] sm:$0xff]
    %v2367 = vld [vmem:[#allocation5 + $0xe50] sm:$0xff]
    %v2368 = vld [vmem:[#allocation5 + $0xe58] sm:$0xff]
    %v2369 = vld [vmem:[#allocation5 + $0xe60] sm:$0xff]
    %v2370 = vld [vmem:[#allocation5 + $0xe68] sm:$0xff]
    %v2371 = vld [vmem:[#allocation5 + $0xe70] sm:$0xff]
    %v2372 = vld [vmem:[#allocation5 + $0xe78] sm:$0xff]
    %v2373 = vld [vmem:[#allocation5 + $0xe80] sm:$0xff]
    %v2374 = vld [vmem:[#allocation5 + $0xe88] sm:$0xff]
    %v2375 = vld [vmem:[#allocation5 + $0xe90] sm:$0xff]
    %v2376 = vld [vmem:[#allocation5 + $0xe98] sm:$0xff]
    %v2377 = vld [vmem:[#allocation5 + $0xea0] sm:$0xff]
    %v2378 = vld [vmem:[#allocation5 + $0xea8] sm:$0xff]
    %v2379 = vld [vmem:[#allocation5 + $0xeb0] sm:$0xff]
    %v2380 = vld [vmem:[#allocation5 + $0xeb8] sm:$0xff]
    %v2381 = vld [vmem:[#allocation5 + $0xec0] sm:$0xff]
    %v2382 = vld [vmem:[#allocation5 + $0xec8] sm:$0xff]
    %v2383 = vld [vmem:[#allocation5 + $0xed0] sm:$0xff]
    %v2384 = vld [vmem:[#allocation5 + $0xed8] sm:$0xff]
    %v2385 = vld [vmem:[#allocation5 + $0xee0] sm:$0xff]
    %v2386 = vld [vmem:[#allocation5 + $0xee8] sm:$0xff]
    %v2387 = vld [vmem:[#allocation5 + $0xef0] sm:$0xff]
    %v2388 = vld [vmem:[#allocation5 + $0xef8] sm:$0xff]
    %v2389 = vld [vmem:[#allocation5 + $0xf00] sm:$0xff]
    %v2390 = vld [vmem:[#allocation5 + $0xf08] sm:$0xff]
    %v2391 = vld [vmem:[#allocation5 + $0xf10] sm:$0xff]
    %v2392 = vld [vmem:[#allocation5 + $0xf18] sm:$0xff]
    %v2393 = vld [vmem:[#allocation5 + $0xf20] sm:$0xff]
    %v2394 = vld [vmem:[#allocation5 + $0xf28] sm:$0xff]
    %v2395 = vld [vmem:[#allocation5 + $0xf30] sm:$0xff]
    %v2396 = vld [vmem:[#allocation5 + $0xf38] sm:$0xff]
    %v2397 = vld [vmem:[#allocation5 + $0xf40] sm:$0xff]
    %v2398 = vld [vmem:[#allocation5 + $0xf48] sm:$0xff]
    %v2399 = vld [vmem:[#allocation5 + $0xf50] sm:$0xff]
    %v2400 = vld [vmem:[#allocation5 + $0xf58] sm:$0xff]
    %v2401 = vld [vmem:[#allocation5 + $0xf60] sm:$0xff]
    %v2402 = vld [vmem:[#allocation5 + $0xf68] sm:$0xff]
    %v2403 = vld [vmem:[#allocation5 + $0xf70] sm:$0xff]
    %v2404 = vld [vmem:[#allocation5 + $0xf78] sm:$0xff]
    %v2405 = vld [vmem:[#allocation5 + $0xf80] sm:$0xff]
    %v2406 = vld [vmem:[#allocation5 + $0xf88] sm:$0xff]
    %v2407 = vld [vmem:[#allocation5 + $0xf90] sm:$0xff]
    %v2408 = vld [vmem:[#allocation5 + $0xf98] sm:$0xff]
    %v2409 = vld [vmem:[#allocation5 + $0xfa0] sm:$0xff]
    %v2410 = vld [vmem:[#allocation5 + $0xfa8] sm:$0xff]
    %v2411 = vld [vmem:[#allocation5 + $0xfb0] sm:$0xff]
    %v2412 = vld [vmem:[#allocation5 + $0xfb8] sm:$0xff]
    %v2413 = vld [vmem:[#allocation5 + $0xfc0] sm:$0xff]
    %v2414 = vld [vmem:[#allocation5 + $0xfc8] sm:$0xff]
    %v2415 = vld [vmem:[#allocation5 + $0xfd0] sm:$0xff]
    %v2416 = vld [vmem:[#allocation5 + $0xfd8] sm:$0xff]
    %v2417 = vld [vmem:[#allocation5 + $0xfe0] sm:$0xff]
    %v2418 = vld [vmem:[#allocation5 + $0xfe8] sm:$0xff]
    %v2419 = vld [vmem:[#allocation5 + $0xff0] sm:$0xff]
    %v2420 = vld [vmem:[#allocation5 + $0xff8] sm:$0xff]
    %2421 = vmatprep.subr.bf16.mxu0 %v1910
    %2422 = vmatpush1.bf16.msra.mxu0 %v1909
    %2423 = vmatprep.subr.bf16.mxu0 %v1926
    %2424 = vmatpush1.bf16.msra.mxu0 %v1925
    %2425 = vmatprep.subr.bf16.mxu0 %v1942
    %2426 = vmatpush1.bf16.msra.mxu0 %v1941
    %2427 = vmatprep.subr.bf16.mxu0 %v1958
    %2428 = vmatpush1.bf16.msra.mxu0 %v1957
    %2429 = vmatprep.subr.bf16.mxu0 %v1974
    %2430 = vmatpush1.bf16.msra.mxu0 %v1973
    %2431 = vmatprep.subr.bf16.mxu0 %v1990
    %2432 = vmatpush1.bf16.msra.mxu0 %v1989
    %2433 = vmatprep.subr.bf16.mxu0 %v2006
    %2434 = vmatpush1.bf16.msra.mxu0 %v2005
    %2435 = vmatprep.subr.bf16.mxu0 %v2022
    %2436 = vmatpush1.bf16.msra.mxu0 %v2021
    %2437 = vmatprep.subr.bf16.mxu0 %v2038
    %2438 = vmatpush1.bf16.msra.mxu0 %v2037
    %2439 = vmatprep.subr.bf16.mxu0 %v2054
    %2440 = vmatpush1.bf16.msra.mxu0 %v2053
    %2441 = vmatprep.subr.bf16.mxu0 %v2070
    %2442 = vmatpush1.bf16.msra.mxu0 %v2069
    %2443 = vmatprep.subr.bf16.mxu0 %v2086
    %2444 = vmatpush1.bf16.msra.mxu0 %v2085
    %2445 = vmatprep.subr.bf16.mxu0 %v2102
    %2446 = vmatpush1.bf16.msra.mxu0 %v2101
    %2447 = vmatprep.subr.bf16.mxu0 %v2118
    %2448 = vmatpush1.bf16.msra.mxu0 %v2117
    %2449 = vmatprep.subr.bf16.mxu0 %v2134
    %2450 = vmatpush1.bf16.msra.mxu0 %v2133
    %2451 = vmatprep.subr.bf16.mxu0 %v2150
    %2452 = vmatpush1.bf16.msra.mxu0 %v2149
    %2453 = vmatprep.mubr.bf16.mxu0 0
    %2454 = vmatmul.mubr.bf16.gmra.mrb[0].mxu0 0
    %v2455 = vpop.f32.mrb[0].mxu0
    %v2456 = vadd.f32 0.0, %v2455
    %v2457 = vpop.f32.mrb[0].mxu0
    %v2458 = vadd.f32 0.0, %v2457
    %v2459 = vpop.f32.mrb[0].mxu0
    %v2460 = vpop.f32.mrb[0].mxu0
    %2461 = vdwg.mxu0
    %2462 = vmatprep.subr.bf16.mxu0 %v2166
    %2463 = vmatpush1.bf16.msra.mxu0 %v2165
    %2464 = vmatprep.subr.bf16.mxu0 %v2182
    %2465 = vmatpush1.bf16.msra.mxu0 %v2181
    %2466 = vmatprep.subr.bf16.mxu0 %v2198
    %2467 = vmatpush1.bf16.msra.mxu0 %v2197
    %2468 = vmatprep.subr.bf16.mxu0 %v2214
    %2469 = vmatpush1.bf16.msra.mxu0 %v2213
    %2470 = vmatprep.subr.bf16.mxu0 %v2230
    %2471 = vmatpush1.bf16.msra.mxu0 %v2229
    %2472 = vmatprep.subr.bf16.mxu0 %v2246
    %2473 = vmatpush1.bf16.msra.mxu0 %v2245
    %2474 = vmatprep.subr.bf16.mxu0 %v2262
    %2475 = vmatpush1.bf16.msra.mxu0 %v2261
    %2476 = vmatprep.subr.bf16.mxu0 %v2278
    %2477 = vmatpush1.bf16.msra.mxu0 %v2277
    %2478 = vmatprep.subr.bf16.mxu0 %v2294
    %2479 = vmatpush1.bf16.msra.mxu0 %v2293
    %2480 = vmatprep.subr.bf16.mxu0 %v2310
    %2481 = vmatpush1.bf16.msra.mxu0 %v2309
    %2482 = vmatprep.subr.bf16.mxu0 %v2326
    %2483 = vmatpush1.bf16.msra.mxu0 %v2325
    %2484 = vmatprep.subr.bf16.mxu0 %v2342
    %2485 = vmatpush1.bf16.msra.mxu0 %v2341
    %2486 = vmatprep.subr.bf16.mxu0 %v2358
    %2487 = vmatpush1.bf16.msra.mxu0 %v2357
    %2488 = vmatprep.subr.bf16.mxu0 %v2374
    %2489 = vmatpush1.bf16.msra.mxu0 %v2373
    %2490 = vmatprep.subr.bf16.mxu0 %v2390
    %2491 = vmatpush1.bf16.msra.mxu0 %v2389
    %2492 = vmatprep.subr.bf16.mxu0 %v2406
    %2493 = vmatpush1.bf16.msra.mxu0 %v2405
    %2494 = vmatprep.mubr.bf16.mxu0 0
    %2495 = vmatmul.mubr.bf16.gmra.mrb[0].mxu0 0
    %v2496 = vpop.f32.mrb[0].mxu0
    %v2497 = vadd.f32 %v2456, %v2496
    %v2498 = vpop.f32.mrb[0].mxu0
    %v2499 = vadd.f32 %v2458, %v2498
    %v2500 = vpop.f32.mrb[0].mxu0
    %v2501 = vpop.f32.mrb[0].mxu0
    %2502 = vdwg.mxu0
    %2503 = vmatprep.subr.bf16.mxu0 %v1912
    %2504 = vmatpush1.bf16.msra.mxu0 %v1911
    %2505 = vmatprep.subr.bf16.mxu0 %v1928
    %2506 = vmatpush1.bf16.msra.mxu0 %v1927
    %2507 = vmatprep.subr.bf16.mxu0 %v1944
    %2508 = vmatpush1.bf16.msra.mxu0 %v1943
    %2509 = vmatprep.subr.bf16.mxu0 %v1960
    %2510 = vmatpush1.bf16.msra.mxu0 %v1959
    %2511 = vmatprep.subr.bf16.mxu0 %v1976
    %2512 = vmatpush1.bf16.msra.mxu0 %v1975
    %2513 = vmatprep.subr.bf16.mxu0 %v1992
    %2514 = vmatpush1.bf16.msra.mxu0 %v1991
    %2515 = vmatprep.subr.bf16.mxu0 %v2008
    %2516 = vmatpush1.bf16.msra.mxu0 %v2007
    %2517 = vmatprep.subr.bf16.mxu0 %v2024
    %2518 = vmatpush1.bf16.msra.mxu0 %v2023
    %2519 = vmatprep.subr.bf16.mxu0 %v2040
    %2520 = vmatpush1.bf16.msra.mxu0 %v2039
    %2521 = vmatprep.subr.bf16.mxu0 %v2056
    %2522 = vmatpush1.bf16.msra.mxu0 %v2055
    %2523 = vmatprep.subr.bf16.mxu0 %v2072
    %2524 = vmatpush1.bf16.msra.mxu0 %v2071
    %2525 = vmatprep.subr.bf16.mxu0 %v2088
    %2526 = vmatpush1.bf16.msra.mxu0 %v2087
    %2527 = vmatprep.subr.bf16.mxu0 %v2104
    %2528 = vmatpush1.bf16.msra.mxu0 %v2103
    %2529 = vmatprep.subr.bf16.mxu0 %v2120
    %2530 = vmatpush1.bf16.msra.mxu0 %v2119
    %2531 = vmatprep.subr.bf16.mxu0 %v2136
    %2532 = vmatpush1.bf16.msra.mxu0 %v2135
    %2533 = vmatprep.subr.bf16.mxu0 %v2152
    %2534 = vmatpush1.bf16.msra.mxu0 %v2151
    %2535 = vmatprep.mubr.bf16.mxu0 0
    %2536 = vmatmul.mubr.bf16.gmra.mrb[0].mxu0 0
    %v2537 = vpop.f32.mrb[0].mxu0
    %v2538 = vadd.f32 0.0, %v2537
    %v2539 = vpop.f32.mrb[0].mxu0
    %v2540 = vadd.f32 0.0, %v2539
    %v2541 = vpop.f32.mrb[0].mxu0
    %v2542 = vpop.f32.mrb[0].mxu0
    %2543 = vdwg.mxu0
    %2544 = vmatprep.subr.bf16.mxu0 %v2168
    %2545 = vmatpush1.bf16.msra.mxu0 %v2167
    %2546 = vmatprep.subr.bf16.mxu0 %v2184
    %2547 = vmatpush1.bf16.msra.mxu0 %v2183
    %2548 = vmatprep.subr.bf16.mxu0 %v2200
    %2549 = vmatpush1.bf16.msra.mxu0 %v2199
    %2550 = vmatprep.subr.bf16.mxu0 %v2216
    %2551 = vmatpush1.bf16.msra.mxu0 %v2215
    %2552 = vmatprep.subr.bf16.mxu0 %v2232
    %2553 = vmatpush1.bf16.msra.mxu0 %v2231
    %2554 = vmatprep.subr.bf16.mxu0 %v2248
    %2555 = vmatpush1.bf16.msra.mxu0 %v2247
    %2556 = vmatprep.subr.bf16.mxu0 %v2264
    %2557 = vmatpush1.bf16.msra.mxu0 %v2263
    %2558 = vmatprep.subr.bf16.mxu0 %v2280
    %2559 = vmatpush1.bf16.msra.mxu0 %v2279
    %2560 = vmatprep.subr.bf16.mxu0 %v2296
    %2561 = vmatpush1.bf16.msra.mxu0 %v2295
    %2562 = vmatprep.subr.bf16.mxu0 %v2312
    %2563 = vmatpush1.bf16.msra.mxu0 %v2311
    %2564 = vmatprep.subr.bf16.mxu0 %v2328
    %2565 = vmatpush1.bf16.msra.mxu0 %v2327
    %2566 = vmatprep.subr.bf16.mxu0 %v2344
    %2567 = vmatpush1.bf16.msra.mxu0 %v2343
    %2568 = vmatprep.subr.bf16.mxu0 %v2360
    %2569 = vmatpush1.bf16.msra.mxu0 %v2359
    %2570 = vmatprep.subr.bf16.mxu0 %v2376
    %2571 = vmatpush1.bf16.msra.mxu0 %v2375
    %2572 = vmatprep.subr.bf16.mxu0 %v2392
    %2573 = vmatpush1.bf16.msra.mxu0 %v2391
    %2574 = vmatprep.subr.bf16.mxu0 %v2408
    %2575 = vmatpush1.bf16.msra.mxu0 %v2407
    %2576 = vmatprep.mubr.bf16.mxu0 0
    %2577 = vmatmul.mubr.bf16.gmra.mrb[0].mxu0 0
    %v2578 = vpop.f32.mrb[0].mxu0
    %v2579 = vadd.f32 %v2538, %v2578
    %v2580 = vpop.f32.mrb[0].mxu0
    %v2581 = vadd.f32 %v2540, %v2580
    %v2582 = vpop.f32.mrb[0].mxu0
    %v2583 = vpop.f32.mrb[0].mxu0
    %2584 = vdwg.mxu0
    %2585 = vmatprep.subr.bf16.mxu0 %v1914
    %2586 = vmatpush1.bf16.msra.mxu0 %v1913
    %2587 = vmatprep.subr.bf16.mxu0 %v1930
    %2588 = vmatpush1.bf16.msra.mxu0 %v1929
    %2589 = vmatprep.subr.bf16.mxu0 %v1946
    %2590 = vmatpush1.bf16.msra.mxu0 %v1945
    %2591 = vmatprep.subr.bf16.mxu0 %v1962
    %2592 = vmatpush1.bf16.msra.mxu0 %v1961
    %2593 = vmatprep.subr.bf16.mxu0 %v1978
    %2594 = vmatpush1.bf16.msra.mxu0 %v1977
    %2595 = vmatprep.subr.bf16.mxu0 %v1994
    %2596 = vmatpush1.bf16.msra.mxu0 %v1993
    %2597 = vmatprep.subr.bf16.mxu0 %v2010
    %2598 = vmatpush1.bf16.msra.mxu0 %v2009
    %2599 = vmatprep.subr.bf16.mxu0 %v2026
    %2600 = vmatpush1.bf16.msra.mxu0 %v2025
    %2601 = vmatprep.subr.bf16.mxu0 %v2042
    %2602 = vmatpush1.bf16.msra.mxu0 %v2041
    %2603 = vmatprep.subr.bf16.mxu0 %v2058
    %2604 = vmatpush1.bf16.msra.mxu0 %v2057
    %2605 = vmatprep.subr.bf16.mxu0 %v2074
    %2606 = vmatpush1.bf16.msra.mxu0 %v2073
    %2607 = vmatprep.subr.bf16.mxu0 %v2090
    %2608 = vmatpush1.bf16.msra.mxu0 %v2089
    %2609 = vmatprep.subr.bf16.mxu0 %v2106
    %2610 = vmatpush1.bf16.msra.mxu0 %v2105
    %2611 = vmatprep.subr.bf16.mxu0 %v2122
    %2612 = vmatpush1.bf16.msra.mxu0 %v2121
    %2613 = vmatprep.subr.bf16.mxu0 %v2138
    %2614 = vmatpush1.bf16.msra.mxu0 %v2137
    %2615 = vmatprep.subr.bf16.mxu0 %v2154
    %2616 = vmatpush1.bf16.msra.mxu0 %v2153
    %2617 = vmatprep.mubr.bf16.mxu0 0
    %2618 = vmatmul.mubr.bf16.gmra.mrb[0].mxu0 0
    %v2619 = vpop.f32.mrb[0].mxu0
    %v2620 = vadd.f32 0.0, %v2619
    %v2621 = vpop.f32.mrb[0].mxu0
    %v2622 = vadd.f32 0.0, %v2621
    %v2623 = vpop.f32.mrb[0].mxu0
    %v2624 = vpop.f32.mrb[0].mxu0
    %2625 = vdwg.mxu0
    %2626 = vmatprep.subr.bf16.mxu0 %v2170
    %2627 = vmatpush1.bf16.msra.mxu0 %v2169
    %2628 = vmatprep.subr.bf16.mxu0 %v2186
    %2629 = vmatpush1.bf16.msra.mxu0 %v2185
    %2630 = vmatprep.subr.bf16.mxu0 %v2202
    %2631 = vmatpush1.bf16.msra.mxu0 %v2201
    %2632 = vmatprep.subr.bf16.mxu0 %v2218
    %2633 = vmatpush1.bf16.msra.mxu0 %v2217
    %2634 = vmatprep.subr.bf16.mxu0 %v2234
    %2635 = vmatpush1.bf16.msra.mxu0 %v2233
    %2636 = vmatprep.subr.bf16.mxu0 %v2250
    %2637 = vmatpush1.bf16.msra.mxu0 %v2249
    %2638 = vmatprep.subr.bf16.mxu0 %v2266
    %2639 = vmatpush1.bf16.msra.mxu0 %v2265
    %2640 = vmatprep.subr.bf16.mxu0 %v2282
    %2641 = vmatpush1.bf16.msra.mxu0 %v2281
    %2642 = vmatprep.subr.bf16.mxu0 %v2298
    %2643 = vmatpush1.bf16.msra.mxu0 %v2297
    %2644 = vmatprep.subr.bf16.mxu0 %v2314
    %2645 = vmatpush1.bf16.msra.mxu0 %v2313
    %2646 = vmatprep.subr.bf16.mxu0 %v2330
    %2647 = vmatpush1.bf16.msra.mxu0 %v2329
    %2648 = vmatprep.subr.bf16.mxu0 %v2346
    %2649 = vmatpush1.bf16.msra.mxu0 %v2345
    %2650 = vmatprep.subr.bf16.mxu0 %v2362
    %2651 = vmatpush1.bf16.msra.mxu0 %v2361
    %2652 = vmatprep.subr.bf16.mxu0 %v2378
    %2653 = vmatpush1.bf16.msra.mxu0 %v2377
    %2654 = vmatprep.subr.bf16.mxu0 %v2394
    %2655 = vmatpush1.bf16.msra.mxu0 %v2393
    %2656 = vmatprep.subr.bf16.mxu0 %v2410
    %2657 = vmatpush1.bf16.msra.mxu0 %v2409
    %2658 = vmatprep.mubr.bf16.mxu0 0
    %2659 = vmatmul.mubr.bf16.gmra.mrb[0].mxu0 0
    %v2660 = vpop.f32.mrb[0].mxu0
    %v2661 = vadd.f32 %v2620, %v2660
    %v2662 = vpop.f32.mrb[0].mxu0
    %v2663 = vadd.f32 %v2622, %v2662
    %v2664 = vpop.f32.mrb[0].mxu0
    %v2665 = vpop.f32.mrb[0].mxu0
    %2666 = vdwg.mxu0
    %2667 = vmatprep.subr.bf16.mxu0 %v1916
    %2668 = vmatpush1.bf16.msra.mxu0 %v1915
    %2669 = vmatprep.subr.bf16.mxu0 %v1932
    %2670 = vmatpush1.bf16.msra.mxu0 %v1931
    %2671 = vmatprep.subr.bf16.mxu0 %v1948
    %2672 = vmatpush1.bf16.msra.mxu0 %v1947
    %2673 = vmatprep.subr.bf16.mxu0 %v1964
    %2674 = vmatpush1.bf16.msra.mxu0 %v1963
    %2675 = vmatprep.subr.bf16.mxu0 %v1980
    %2676 = vmatpush1.bf16.msra.mxu0 %v1979
    %2677 = vmatprep.subr.bf16.mxu0 %v1996
    %2678 = vmatpush1.bf16.msra.mxu0 %v1995
    %2679 = vmatprep.subr.bf16.mxu0 %v2012
    %2680 = vmatpush1.bf16.msra.mxu0 %v2011
    %2681 = vmatprep.subr.bf16.mxu0 %v2028
    %2682 = vmatpush1.bf16.msra.mxu0 %v2027
    %2683 = vmatprep.subr.bf16.mxu0 %v2044
    %2684 = vmatpush1.bf16.msra.mxu0 %v2043
    %2685 = vmatprep.subr.bf16.mxu0 %v2060
    %2686 = vmatpush1.bf16.msra.mxu0 %v2059
    %2687 = vmatprep.subr.bf16.mxu0 %v2076
    %2688 = vmatpush1.bf16.msra.mxu0 %v2075
    %2689 = vmatprep.subr.bf16.mxu0 %v2092
    %2690 = vmatpush1.bf16.msra.mxu0 %v2091
    %2691 = vmatprep.subr.bf16.mxu0 %v2108
    %2692 = vmatpush1.bf16.msra.mxu0 %v2107
    %2693 = vmatprep.subr.bf16.mxu0 %v2124
    %2694 = vmatpush1.bf16.msra.mxu0 %v2123
    %2695 = vmatprep.subr.bf16.mxu0 %v2140
    %2696 = vmatpush1.bf16.msra.mxu0 %v2139
    %2697 = vmatprep.subr.bf16.mxu0 %v2156
    %2698 = vmatpush1.bf16.msra.mxu0 %v2155
    %2699 = vmatprep.mubr.bf16.mxu0 0
    %2700 = vmatmul.mubr.bf16.gmra.mrb[0].mxu0 0
    %v2701 = vpop.f32.mrb[0].mxu0
    %v2702 = vadd.f32 0.0, %v2701
    %v2703 = vpop.f32.mrb[0].mxu0
    %v2704 = vadd.f32 0.0, %v2703
    %v2705 = vpop.f32.mrb[0].mxu0
    %v2706 = vpop.f32.mrb[0].mxu0
    %2707 = vdwg.mxu0
    %2708 = vmatprep.subr.bf16.mxu0 %v2172
    %2709 = vmatpush1.bf16.msra.mxu0 %v2171
    %2710 = vmatprep.subr.bf16.mxu0 %v2188
    %2711 = vmatpush1.bf16.msra.mxu0 %v2187
    %2712 = vmatprep.subr.bf16.mxu0 %v2204
    %2713 = vmatpush1.bf16.msra.mxu0 %v2203
    %2714 = vmatprep.subr.bf16.mxu0 %v2220
    %2715 = vmatpush1.bf16.msra.mxu0 %v2219
    %2716 = vmatprep.subr.bf16.mxu0 %v2236
    %2717 = vmatpush1.bf16.msra.mxu0 %v2235
    %2718 = vmatprep.subr.bf16.mxu0 %v2252
    %2719 = vmatpush1.bf16.msra.mxu0 %v2251
    %2720 = vmatprep.subr.bf16.mxu0 %v2268
    %2721 = vmatpush1.bf16.msra.mxu0 %v2267
    %2722 = vmatprep.subr.bf16.mxu0 %v2284
    %2723 = vmatpush1.bf16.msra.mxu0 %v2283
    %2724 = vmatprep.subr.bf16.mxu0 %v2300
    %2725 = vmatpush1.bf16.msra.mxu0 %v2299
    %2726 = vmatprep.subr.bf16.mxu0 %v2316
    %2727 = vmatpush1.bf16.msra.mxu0 %v2315
    %2728 = vmatprep.subr.bf16.mxu0 %v2332
    %2729 = vmatpush1.bf16.msra.mxu0 %v2331
    %2730 = vmatprep.subr.bf16.mxu0 %v2348
    %2731 = vmatpush1.bf16.msra.mxu0 %v2347
    %2732 = vmatprep.subr.bf16.mxu0 %v2364
    %2733 = vmatpush1.bf16.msra.mxu0 %v2363
    %2734 = vmatprep.subr.bf16.mxu0 %v2380
    %2735 = vmatpush1.bf16.msra.mxu0 %v2379
    %2736 = vmatprep.subr.bf16.mxu0 %v2396
    %2737 = vmatpush1.bf16.msra.mxu0 %v2395
    %2738 = vmatprep.subr.bf16.mxu0 %v2412
    %2739 = vmatpush1.bf16.msra.mxu0 %v2411
    %2740 = vmatprep.mubr.bf16.mxu0 0
    %2741 = vmatmul.mubr.bf16.gmra.mrb[0].mxu0 0
    %v2742 = vpop.f32.mrb[0].mxu0
    %v2743 = vadd.f32 %v2702, %v2742
    %v2744 = vpop.f32.mrb[0].mxu0
    %v2745 = vadd.f32 %v2704, %v2744
    %v2746 = vpop.f32.mrb[0].mxu0
    %v2747 = vpop.f32.mrb[0].mxu0
    %2748 = vdwg.mxu0
    %2749 = vmatprep.subr.bf16.mxu0 %v1918
    %2750 = vmatpush1.bf16.msra.mxu0 %v1917
    %2751 = vmatprep.subr.bf16.mxu0 %v1934
    %2752 = vmatpush1.bf16.msra.mxu0 %v1933
    %2753 = vmatprep.subr.bf16.mxu0 %v1950
    %2754 = vmatpush1.bf16.msra.mxu0 %v1949
    %2755 = vmatprep.subr.bf16.mxu0 %v1966
    %2756 = vmatpush1.bf16.msra.mxu0 %v1965
    %2757 = vmatprep.subr.bf16.mxu0 %v1982
    %2758 = vmatpush1.bf16.msra.mxu0 %v1981
    %2759 = vmatprep.subr.bf16.mxu0 %v1998
    %2760 = vmatpush1.bf16.msra.mxu0 %v1997
    %2761 = vmatprep.subr.bf16.mxu0 %v2014
    %2762 = vmatpush1.bf16.msra.mxu0 %v2013
    %2763 = vmatprep.subr.bf16.mxu0 %v2030
    %2764 = vmatpush1.bf16.msra.mxu0 %v2029
    %2765 = vmatprep.subr.bf16.mxu0 %v2046
    %2766 = vmatpush1.bf16.msra.mxu0 %v2045
    %2767 = vmatprep.subr.bf16.mxu0 %v2062
    %2768 = vmatpush1.bf16.msra.mxu0 %v2061
    %2769 = vmatprep.subr.bf16.mxu0 %v2078
    %2770 = vmatpush1.bf16.msra.mxu0 %v2077
    %2771 = vmatprep.subr.bf16.mxu0 %v2094
    %2772 = vmatpush1.bf16.msra.mxu0 %v2093
    %2773 = vmatprep.subr.bf16.mxu0 %v2110
    %2774 = vmatpush1.bf16.msra.mxu0 %v2109
    %2775 = vmatprep.subr.bf16.mxu0 %v2126
    %2776 = vmatpush1.bf16.msra.mxu0 %v2125
    %2777 = vmatprep.subr.bf16.mxu0 %v2142
    %2778 = vmatpush1.bf16.msra.mxu0 %v2141
    %2779 = vmatprep.subr.bf16.mxu0 %v2158
    %2780 = vmatpush1.bf16.msra.mxu0 %v2157
    %2781 = vmatprep.mubr.bf16.mxu0 0
    %2782 = vmatmul.mubr.bf16.gmra.mrb[0].mxu0 0
    %v2783 = vpop.f32.mrb[0].mxu0
    %v2784 = vadd.f32 0.0, %v2783
    %v2785 = vpop.f32.mrb[0].mxu0
    %v2786 = vadd.f32 0.0, %v2785
    %v2787 = vpop.f32.mrb[0].mxu0
    %v2788 = vpop.f32.mrb[0].mxu0
    %2789 = vdwg.mxu0
    %2790 = vmatprep.subr.bf16.mxu0 %v2174
    %2791 = vmatpush1.bf16.msra.mxu0 %v2173
    %2792 = vmatprep.subr.bf16.mxu0 %v2190
    %2793 = vmatpush1.bf16.msra.mxu0 %v2189
    %2794 = vmatprep.subr.bf16.mxu0 %v2206
    %2795 = vmatpush1.bf16.msra.mxu0 %v2205
    %2796 = vmatprep.subr.bf16.mxu0 %v2222
    %2797 = vmatpush1.bf16.msra.mxu0 %v2221
    %2798 = vmatprep.subr.bf16.mxu0 %v2238
    %2799 = vmatpush1.bf16.msra.mxu0 %v2237
    %2800 = vmatprep.subr.bf16.mxu0 %v2254
    %2801 = vmatpush1.bf16.msra.mxu0 %v2253
    %2802 = vmatprep.subr.bf16.mxu0 %v2270
    %2803 = vmatpush1.bf16.msra.mxu0 %v2269
    %2804 = vmatprep.subr.bf16.mxu0 %v2286
    %2805 = vmatpush1.bf16.msra.mxu0 %v2285
    %2806 = vmatprep.subr.bf16.mxu0 %v2302
    %2807 = vmatpush1.bf16.msra.mxu0 %v2301
    %2808 = vmatprep.subr.bf16.mxu0 %v2318
    %2809 = vmatpush1.bf16.msra.mxu0 %v2317
    %2810 = vmatprep.subr.bf16.mxu0 %v2334
    %2811 = vmatpush1.bf16.msra.mxu0 %v2333
    %2812 = vmatprep.subr.bf16.mxu0 %v2350
    %2813 = vmatpush1.bf16.msra.mxu0 %v2349
    %2814 = vmatprep.subr.bf16.mxu0 %v2366
    %2815 = vmatpush1.bf16.msra.mxu0 %v2365
    %2816 = vmatprep.subr.bf16.mxu0 %v2382
    %2817 = vmatpush1.bf16.msra.mxu0 %v2381
    %2818 = vmatprep.subr.bf16.mxu0 %v2398
    %2819 = vmatpush1.bf16.msra.mxu0 %v2397
    %2820 = vmatprep.subr.bf16.mxu0 %v2414
    %2821 = vmatpush1.bf16.msra.mxu0 %v2413
    %2822 = vmatprep.mubr.bf16.mxu0 0
    %2823 = vmatmul.mubr.bf16.gmra.mrb[0].mxu0 0
    %v2824 = vpop.f32.mrb[0].mxu0
    %v2825 = vadd.f32 %v2784, %v2824
    %v2826 = vpop.f32.mrb[0].mxu0
    %v2827 = vadd.f32 %v2786, %v2826
    %v2828 = vpop.f32.mrb[0].mxu0
    %v2829 = vpop.f32.mrb[0].mxu0
    %2830 = vdwg.mxu0
    %2831 = vmatprep.subr.bf16.mxu0 %v1920
    %2832 = vmatpush1.bf16.msra.mxu0 %v1919
    %2833 = vmatprep.subr.bf16.mxu0 %v1936
    %2834 = vmatpush1.bf16.msra.mxu0 %v1935
    %2835 = vmatprep.subr.bf16.mxu0 %v1952
    %2836 = vmatpush1.bf16.msra.mxu0 %v1951
    %2837 = vmatprep.subr.bf16.mxu0 %v1968
    %2838 = vmatpush1.bf16.msra.mxu0 %v1967
    %2839 = vmatprep.subr.bf16.mxu0 %v1984
    %2840 = vmatpush1.bf16.msra.mxu0 %v1983
    %2841 = vmatprep.subr.bf16.mxu0 %v2000
    %2842 = vmatpush1.bf16.msra.mxu0 %v1999
    %2843 = vmatprep.subr.bf16.mxu0 %v2016
    %2844 = vmatpush1.bf16.msra.mxu0 %v2015
    %2845 = vmatprep.subr.bf16.mxu0 %v2032
    %2846 = vmatpush1.bf16.msra.mxu0 %v2031
    %2847 = vmatprep.subr.bf16.mxu0 %v2048
    %2848 = vmatpush1.bf16.msra.mxu0 %v2047
    %2849 = vmatprep.subr.bf16.mxu0 %v2064
    %2850 = vmatpush1.bf16.msra.mxu0 %v2063
    %2851 = vmatprep.subr.bf16.mxu0 %v2080
    %2852 = vmatpush1.bf16.msra.mxu0 %v2079
    %2853 = vmatprep.subr.bf16.mxu0 %v2096
    %2854 = vmatpush1.bf16.msra.mxu0 %v2095
    %2855 = vmatprep.subr.bf16.mxu0 %v2112
    %2856 = vmatpush1.bf16.msra.mxu0 %v2111
    %2857 = vmatprep.subr.bf16.mxu0 %v2128
    %2858 = vmatpush1.bf16.msra.mxu0 %v2127
    %2859 = vmatprep.subr.bf16.mxu0 %v2144
    %2860 = vmatpush1.bf16.msra.mxu0 %v2143
    %2861 = vmatprep.subr.bf16.mxu0 %v2160
    %2862 = vmatpush1.bf16.msra.mxu0 %v2159
    %2863 = vmatprep.mubr.bf16.mxu0 0
    %2864 = vmatmul.mubr.bf16.gmra.mrb[0].mxu0 0
    %v2865 = vpop.f32.mrb[0].mxu0
    %v2866 = vadd.f32 0.0, %v2865
    %v2867 = vpop.f32.mrb[0].mxu0
    %v2868 = vadd.f32 0.0, %v2867
    %v2869 = vpop.f32.mrb[0].mxu0
    %v2870 = vpop.f32.mrb[0].mxu0
    %2871 = vdwg.mxu0
    %2872 = vmatprep.subr.bf16.mxu0 %v2176
    %2873 = vmatpush1.bf16.msra.mxu0 %v2175
    %2874 = vmatprep.subr.bf16.mxu0 %v2192
    %2875 = vmatpush1.bf16.msra.mxu0 %v2191
    %2876 = vmatprep.subr.bf16.mxu0 %v2208
    %2877 = vmatpush1.bf16.msra.mxu0 %v2207
    %2878 = vmatprep.subr.bf16.mxu0 %v2224
    %2879 = vmatpush1.bf16.msra.mxu0 %v2223
    %2880 = vmatprep.subr.bf16.mxu0 %v2240
    %2881 = vmatpush1.bf16.msra.mxu0 %v2239
    %2882 = vmatprep.subr.bf16.mxu0 %v2256
    %2883 = vmatpush1.bf16.msra.mxu0 %v2255
    %2884 = vmatprep.subr.bf16.mxu0 %v2272
    %2885 = vmatpush1.bf16.msra.mxu0 %v2271
    %2886 = vmatprep.subr.bf16.mxu0 %v2288
    %2887 = vmatpush1.bf16.msra.mxu0 %v2287
    %2888 = vmatprep.subr.bf16.mxu0 %v2304
    %2889 = vmatpush1.bf16.msra.mxu0 %v2303
    %2890 = vmatprep.subr.bf16.mxu0 %v2320
    %2891 = vmatpush1.bf16.msra.mxu0 %v2319
    %2892 = vmatprep.subr.bf16.mxu0 %v2336
    %2893 = vmatpush1.bf16.msra.mxu0 %v2335
    %2894 = vmatprep.subr.bf16.mxu0 %v2352
    %2895 = vmatpush1.bf16.msra.mxu0 %v2351
    %2896 = vmatprep.subr.bf16.mxu0 %v2368
    %2897 = vmatpush1.bf16.msra.mxu0 %v2367
    %2898 = vmatprep.subr.bf16.mxu0 %v2384
    %2899 = vmatpush1.bf16.msra.mxu0 %v2383
    %2900 = vmatprep.subr.bf16.mxu0 %v2400
    %2901 = vmatpush1.bf16.msra.mxu0 %v2399
    %2902 = vmatprep.subr.bf16.mxu0 %v2416
    %2903 = vmatpush1.bf16.msra.mxu0 %v2415
    %2904 = vmatprep.mubr.bf16.mxu0 0
    %2905 = vmatmul.mubr.bf16.gmra.mrb[0].mxu0 0
    %v2906 = vpop.f32.mrb[0].mxu0
    %v2907 = vadd.f32 %v2866, %v2906
    %v2908 = vpop.f32.mrb[0].mxu0
    %v2909 = vadd.f32 %v2868, %v2908
    %v2910 = vpop.f32.mrb[0].mxu0
    %v2911 = vpop.f32.mrb[0].mxu0
    %2912 = vdwg.mxu0
    %2913 = vmatprep.subr.bf16.mxu0 %v1922
    %2914 = vmatpush1.bf16.msra.mxu0 %v1921
    %2915 = vmatprep.subr.bf16.mxu0 %v1938
    %2916 = vmatpush1.bf16.msra.mxu0 %v1937
    %2917 = vmatprep.subr.bf16.mxu0 %v1954
    %2918 = vmatpush1.bf16.msra.mxu0 %v1953
    %2919 = vmatprep.subr.bf16.mxu0 %v1970
    %2920 = vmatpush1.bf16.msra.mxu0 %v1969
    %2921 = vmatprep.subr.bf16.mxu0 %v1986
    %2922 = vmatpush1.bf16.msra.mxu0 %v1985
    %2923 = vmatprep.subr.bf16.mxu0 %v2002
    %2924 = vmatpush1.bf16.msra.mxu0 %v2001
    %2925 = vmatprep.subr.bf16.mxu0 %v2018
    %2926 = vmatpush1.bf16.msra.mxu0 %v2017
    %2927 = vmatprep.subr.bf16.mxu0 %v2034
    %2928 = vmatpush1.bf16.msra.mxu0 %v2033
    %2929 = vmatprep.subr.bf16.mxu0 %v2050
    %2930 = vmatpush1.bf16.msra.mxu0 %v2049
    %2931 = vmatprep.subr.bf16.mxu0 %v2066
    %2932 = vmatpush1.bf16.msra.mxu0 %v2065
    %2933 = vmatprep.subr.bf16.mxu0 %v2082
    %2934 = vmatpush1.bf16.msra.mxu0 %v2081
    %2935 = vmatprep.subr.bf16.mxu0 %v2098
    %2936 = vmatpush1.bf16.msra.mxu0 %v2097
    %2937 = vmatprep.subr.bf16.mxu0 %v2114
    %2938 = vmatpush1.bf16.msra.mxu0 %v2113
    %2939 = vmatprep.subr.bf16.mxu0 %v2130
    %2940 = vmatpush1.bf16.msra.mxu0 %v2129
    %2941 = vmatprep.subr.bf16.mxu0 %v2146
    %2942 = vmatpush1.bf16.msra.mxu0 %v2145
    %2943 = vmatprep.subr.bf16.mxu0 %v2162
    %2944 = vmatpush1.bf16.msra.mxu0 %v2161
    %2945 = vmatprep.mubr.bf16.mxu0 0
    %2946 = vmatmul.mubr.bf16.gmra.mrb[0].mxu0 0
    %v2947 = vpop.f32.mrb[0].mxu0
    %v2948 = vadd.f32 0.0, %v2947
    %v2949 = vpop.f32.mrb[0].mxu0
    %v2950 = vadd.f32 0.0, %v2949
    %v2951 = vpop.f32.mrb[0].mxu0
    %v2952 = vpop.f32.mrb[0].mxu0
    %2953 = vdwg.mxu0
    %2954 = vmatprep.subr.bf16.mxu0 %v2178
    %2955 = vmatpush1.bf16.msra.mxu0 %v2177
    %2956 = vmatprep.subr.bf16.mxu0 %v2194
    %2957 = vmatpush1.bf16.msra.mxu0 %v2193
    %2958 = vmatprep.subr.bf16.mxu0 %v2210
    %2959 = vmatpush1.bf16.msra.mxu0 %v2209
    %2960 = vmatprep.subr.bf16.mxu0 %v2226
    %2961 = vmatpush1.bf16.msra.mxu0 %v2225
    %2962 = vmatprep.subr.bf16.mxu0 %v2242
    %2963 = vmatpush1.bf16.msra.mxu0 %v2241
    %2964 = vmatprep.subr.bf16.mxu0 %v2258
    %2965 = vmatpush1.bf16.msra.mxu0 %v2257
    %2966 = vmatprep.subr.bf16.mxu0 %v2274
    %2967 = vmatpush1.bf16.msra.mxu0 %v2273
    %2968 = vmatprep.subr.bf16.mxu0 %v2290
    %2969 = vmatpush1.bf16.msra.mxu0 %v2289
    %2970 = vmatprep.subr.bf16.mxu0 %v2306
    %2971 = vmatpush1.bf16.msra.mxu0 %v2305
    %2972 = vmatprep.subr.bf16.mxu0 %v2322
    %2973 = vmatpush1.bf16.msra.mxu0 %v2321
    %2974 = vmatprep.subr.bf16.mxu0 %v2338
    %2975 = vmatpush1.bf16.msra.mxu0 %v2337
    %2976 = vmatprep.subr.bf16.mxu0 %v2354
    %2977 = vmatpush1.bf16.msra.mxu0 %v2353
    %2978 = vmatprep.subr.bf16.mxu0 %v2370
    %2979 = vmatpush1.bf16.msra.mxu0 %v2369
    %2980 = vmatprep.subr.bf16.mxu0 %v2386
    %2981 = vmatpush1.bf16.msra.mxu0 %v2385
    %2982 = vmatprep.subr.bf16.mxu0 %v2402
    %2983 = vmatpush1.bf16.msra.mxu0 %v2401
    %2984 = vmatprep.subr.bf16.mxu0 %v2418
    %2985 = vmatpush1.bf16.msra.mxu0 %v2417
    %2986 = vmatprep.mubr.bf16.mxu0 0
    %2987 = vmatmul.mubr.bf16.gmra.mrb[0].mxu0 0
    %v2988 = vpop.f32.mrb[0].mxu0
    %v2989 = vadd.f32 %v2948, %v2988
    %v2990 = vpop.f32.mrb[0].mxu0
    %v2991 = vadd.f32 %v2950, %v2990
    %v2992 = vpop.f32.mrb[0].mxu0
    %v2993 = vpop.f32.mrb[0].mxu0
    %2994 = vdwg.mxu0
    %2995 = vmatprep.subr.bf16.mxu0 %v1924
    %2996 = vmatpush1.bf16.msra.mxu0 %v1923
    %2997 = vmatprep.subr.bf16.mxu0 %v1940
    %2998 = vmatpush1.bf16.msra.mxu0 %v1939
    %2999 = vmatprep.subr.bf16.mxu0 %v1956
    %3000 = vmatpush1.bf16.msra.mxu0 %v1955
    %3001 = vmatprep.subr.bf16.mxu0 %v1972
    %3002 = vmatpush1.bf16.msra.mxu0 %v1971
    %3003 = vmatprep.subr.bf16.mxu0 %v1988
    %3004 = vmatpush1.bf16.msra.mxu0 %v1987
    %3005 = vmatprep.subr.bf16.mxu0 %v2004
    %3006 = vmatpush1.bf16.msra.mxu0 %v2003
    %3007 = vmatprep.subr.bf16.mxu0 %v2020
    %3008 = vmatpush1.bf16.msra.mxu0 %v2019
    %3009 = vmatprep.subr.bf16.mxu0 %v2036
    %3010 = vmatpush1.bf16.msra.mxu0 %v2035
    %3011 = vmatprep.subr.bf16.mxu0 %v2052
    %3012 = vmatpush1.bf16.msra.mxu0 %v2051
    %3013 = vmatprep.subr.bf16.mxu0 %v2068
    %3014 = vmatpush1.bf16.msra.mxu0 %v2067
    %3015 = vmatprep.subr.bf16.mxu0 %v2084
    %3016 = vmatpush1.bf16.msra.mxu0 %v2083
    %3017 = vmatprep.subr.bf16.mxu0 %v2100
    %3018 = vmatpush1.bf16.msra.mxu0 %v2099
    %3019 = vmatprep.subr.bf16.mxu0 %v2116
    %3020 = vmatpush1.bf16.msra.mxu0 %v2115
    %3021 = vmatprep.subr.bf16.mxu0 %v2132
    %3022 = vmatpush1.bf16.msra.mxu0 %v2131
    %3023 = vmatprep.subr.bf16.mxu0 %v2148
    %3024 = vmatpush1.bf16.msra.mxu0 %v2147
    %3025 = vmatprep.subr.bf16.mxu0 %v2164
    %3026 = vmatpush1.bf16.msra.mxu0 %v2163
    %3027 = vmatprep.mubr.bf16.mxu0 0
    %3028 = vmatmul.mubr.bf16.gmra.mrb[0].mxu0 0
    %v3029 = vpop.f32.mrb[0].mxu0
    %v3030 = vadd.f32 0.0, %v3029
    %v3031 = vpop.f32.mrb[0].mxu0
    %v3032 = vadd.f32 0.0, %v3031
    %v3033 = vpop.f32.mrb[0].mxu0
    %v3034 = vpop.f32.mrb[0].mxu0
    %3035 = vdwg.mxu0
    %3036 = vmatprep.subr.bf16.mxu0 %v2180
    %3037 = vmatpush1.bf16.msra.mxu0 %v2179
    %3038 = vmatprep.subr.bf16.mxu0 %v2196
    %3039 = vmatpush1.bf16.msra.mxu0 %v2195
    %3040 = vmatprep.subr.bf16.mxu0 %v2212
    %3041 = vmatpush1.bf16.msra.mxu0 %v2211
    %3042 = vmatprep.subr.bf16.mxu0 %v2228
    %3043 = vmatpush1.bf16.msra.mxu0 %v2227
    %3044 = vmatprep.subr.bf16.mxu0 %v2244
    %3045 = vmatpush1.bf16.msra.mxu0 %v2243
    %3046 = vmatprep.subr.bf16.mxu0 %v2260
    %3047 = vmatpush1.bf16.msra.mxu0 %v2259
    %3048 = vmatprep.subr.bf16.mxu0 %v2276
    %3049 = vmatpush1.bf16.msra.mxu0 %v2275
    %3050 = vmatprep.subr.bf16.mxu0 %v2292
    %3051 = vmatpush1.bf16.msra.mxu0 %v2291
    %3052 = vmatprep.subr.bf16.mxu0 %v2308
    %3053 = vmatpush1.bf16.msra.mxu0 %v2307
    %3054 = vmatprep.subr.bf16.mxu0 %v2324
    %3055 = vmatpush1.bf16.msra.mxu0 %v2323
    %3056 = vmatprep.subr.bf16.mxu0 %v2340
    %3057 = vmatpush1.bf16.msra.mxu0 %v2339
    %3058 = vmatprep.subr.bf16.mxu0 %v2356
    %3059 = vmatpush1.bf16.msra.mxu0 %v2355
    %3060 = vmatprep.subr.bf16.mxu0 %v2372
    %3061 = vmatpush1.bf16.msra.mxu0 %v2371
    %3062 = vmatprep.subr.bf16.mxu0 %v2388
    %3063 = vmatpush1.bf16.msra.mxu0 %v2387
    %3064 = vmatprep.subr.bf16.mxu0 %v2404
    %3065 = vmatpush1.bf16.msra.mxu0 %v2403
    %3066 = vmatprep.subr.bf16.mxu0 %v2420
    %3067 = vmatpush1.bf16.msra.mxu0 %v2419
    %3068 = vmatprep.mubr.bf16.mxu0 0
    %3069 = vmatmul.mubr.bf16.gmra.mrb[0].mxu0 0
    %v3070 = vpop.f32.mrb[0].mxu0
    %v3071 = vadd.f32 %v3030, %v3070
    %v3072 = vpop.f32.mrb[0].mxu0
    %v3073 = vadd.f32 %v3032, %v3072
    %v3074 = vpop.f32.mrb[0].mxu0
    %v3075 = vpop.f32.mrb[0].mxu0
    %3076 = vdwg.mxu0
    %v3077 = vadd.f32 %v1893, %v2497
    %v3078 = vadd.f32 %v1894, %v2499
    %v3079 = vadd.f32 %v1895, %v2579
    %v3080 = vadd.f32 %v1896, %v2581
    %v3081 = vadd.f32 %v1897, %v2661
    %v3082 = vadd.f32 %v1898, %v2663
    %v3083 = vadd.f32 %v1899, %v2743
    %v3084 = vadd.f32 %v1900, %v2745
    %v3085 = vadd.f32 %v1901, %v2825
    %v3086 = vadd.f32 %v1902, %v2827
    %v3087 = vadd.f32 %v1903, %v2907
    %v3088 = vadd.f32 %v1904, %v2909
    %v3089 = vadd.f32 %v1905, %v2989
    %v3090 = vadd.f32 %v1906, %v2991
    %v3091 = vadd.f32 %v1907, %v3071
    %v3092 = vadd.f32 %v1908, %v3073
    %v3093 = vxor.u32 %v3077, 2147483648
    %v3094 = vxor.u32 %v3078, 2147483648
    %v3095 = vxor.u32 %v3079, 2147483648
    %v3096 = vxor.u32 %v3080, 2147483648
    %v3097 = vmul.f32 %v3093, 1.442695
    %v3098 = vpow.pop %v3097
    %v3099 = vmul.f32 %v3094, 1.442695
    %v3100 = vpow.pop %v3099
    %v3101 = vmul.f32 %v3095, 1.442695
    %v3102 = vpow.pop %v3101
    %v3103 = vmul.f32 %v3096, 1.442695
    %v3104 = vpow.pop %v3103
    %v3105 = vadd.f32 %v3098, 1.0
    %v3106 = vadd.f32 %v3100, 1.0
    %v3107 = vadd.f32 %v3102, 1.0
    %v3108 = vadd.f32 %v3104, 1.0
    %v3109 = vrcp.pop %v3105
    %v3110 = vmul.f32 1.0, %v3109
    %v3111 = vrcp.pop %v3106
    %v3112 = vmul.f32 1.0, %v3111
    %v3113 = vrcp.pop %v3107
    %v3114 = vmul.f32 1.0, %v3113
    %v3115 = vrcp.pop %v3108
    %v3116 = vmul.f32 1.0, %v3115
    %v3117 = vxor.u32 %v3081, 2147483648
    %v3118 = vxor.u32 %v3082, 2147483648
    %v3119 = vxor.u32 %v3083, 2147483648
    %v3120 = vxor.u32 %v3084, 2147483648
    %v3121 = vmul.f32 %v3117, 1.442695
    %v3122 = vpow.pop %v3121
    %v3123 = vmul.f32 %v3118, 1.442695
    %v3124 = vpow.pop %v3123
    %v3125 = vmul.f32 %v3119, 1.442695
    %v3126 = vpow.pop %v3125
    %v3127 = vmul.f32 %v3120, 1.442695
    %v3128 = vpow.pop %v3127
    %v3129 = vadd.f32 %v3122, 1.0
    %v3130 = vadd.f32 %v3124, 1.0
    %v3131 = vadd.f32 %v3126, 1.0
    %v3132 = vadd.f32 %v3128, 1.0
    %v3133 = vrcp.pop %v3129
    %v3134 = vmul.f32 1.0, %v3133
    %v3135 = vrcp.pop %v3130
    %v3136 = vmul.f32 1.0, %v3135
    %v3137 = vrcp.pop %v3131
    %v3138 = vmul.f32 1.0, %v3137
    %v3139 = vrcp.pop %v3132
    %v3140 = vmul.f32 1.0, %v3139
    %v3141 = vtanh.pop %v3085
    %v3142 = vtanh.pop %v3086
    %v3143 = vtanh.pop %v3087
    %v3144 = vtanh.pop %v3088
    %v3145 = vxor.u32 %v3089, 2147483648
    %v3146 = vxor.u32 %v3090, 2147483648
    %v3147 = vxor.u32 %v3091, 2147483648
    %v3148 = vxor.u32 %v3092, 2147483648
    %v3149 = vmul.f32 %v3145, 1.442695
    %v3150 = vpow.pop %v3149
    %v3151 = vmul.f32 %v3146, 1.442695
    %v3152 = vpow.pop %v3151
    %v3153 = vmul.f32 %v3147, 1.442695
    %v3154 = vpow.pop %v3153
    %v3155 = vmul.f32 %v3148, 1.442695
    %v3156 = vpow.pop %v3155
    %v3157 = vadd.f32 %v3150, 1.0
    %v3158 = vadd.f32 %v3152, 1.0
    %v3159 = vadd.f32 %v3154, 1.0
    %v3160 = vadd.f32 %v3156, 1.0
    %v3161 = vrcp.pop %v3157
    %v3162 = vmul.f32 1.0, %v3161
    %v3163 = vrcp.pop %v3158
    %v3164 = vmul.f32 1.0, %v3163
    %v3165 = vrcp.pop %v3159
    %v3166 = vmul.f32 1.0, %v3165
    %v3167 = vrcp.pop %v3160
    %v3168 = vmul.f32 1.0, %v3167
    %v3169 = vmul.f32 %v3134, 0.0
    %v3170 = vmul.f32 %v3136, 0.0
    %v3171 = vmul.f32 %v3138, 0.0
    %v3172 = vmul.f32 %v3140, 0.0
    %v3173 = vmul.f32 %v3110, %v3141
    %v3174 = vmul.f32 %v3112, %v3142
    %v3175 = vmul.f32 %v3114, %v3143
    %v3176 = vmul.f32 %v3116, %v3144
    %v3177 = vadd.f32 %v3169, %v3173
    %v3178 = vadd.f32 %v3170, %v3174
    %v3179 = vadd.f32 %v3171, %v3175
    %v3180 = vadd.f32 %v3172, %v3176
    %v3181 = vtanh.pop %v3177
    %v3182 = vtanh.pop %v3178
    %v3183 = vtanh.pop %v3179
    %v3184 = vtanh.pop %v3180
    %v3185 = vmul.f32 %v3162, %v3181
    %v3186 = vmul.f32 %v3164, %v3182
    %v3187 = vmul.f32 %v3166, %v3183
    %v3188 = vmul.f32 %v3168, %v3184
    %3189 = vst [vmem:[#allocation3] sm:$0xff] %v3185
    %3190 = vst [vmem:[#allocation3 + $0x8] sm:$0xff] %v3186
    %3191 = vst [vmem:[#allocation3 + $0x10] sm:$0xff] %v3187
    %3192 = vst [vmem:[#allocation3 + $0x18] sm:$0xff] %v3188
    %s3193 = smul.u32 %s1889, 1
    %s3194 = sshll.u32 %s3193, 4
    %3195 = dma.done %s183, %s3194
    %s3196 = smul.u32 4, 16
    %s3197 = smul.u32 %s3196, 12
    %s3198 = sshll.u32 %s3197, 4
    %3199 = dma.done %s195, %s3198
    %s3200 = smul.u32 4, 48
    %s3201 = smul.u32 %s3200, 12
    %s3202 = sshll.u32 %s3201, 4
    %3203 = dma.done %s230, %s3202
    %v3204 = vld [vmem:[#allocation3] sm:$0xff]
    %v3205 = vld [vmem:[#allocation3 + $0x8] sm:$0xff]
    %v3206 = vld [vmem:[#allocation3 + $0x10] sm:$0xff]
    %v3207 = vld [vmem:[#allocation3 + $0x18] sm:$0xff]
    %v3208 = vpack.c.bf16 %v3204, %v3204
    %v3209 = vpack.c.bf16 %v3205, %v3205
    %v3210 = vpack.c.bf16 %v3206, %v3206
    %v3211 = vpack.c.bf16 %v3207, %v3207
    %v3212 = vld [vmem:[#allocation6] sm:$0xff]
    %v3213 = vld [vmem:[#allocation6 + $0x8] sm:$0xff]
    %v3214 = vld [vmem:[#allocation6 + $0x10] sm:$0xff]
    %v3215 = vld [vmem:[#allocation6 + $0x18] sm:$0xff]
    %v3216 = vld [vmem:[#allocation6 + $0x20] sm:$0xff]
    %v3217 = vld [vmem:[#allocation6 + $0x28] sm:$0xff]
    %v3218 = vld [vmem:[#allocation6 + $0x30] sm:$0xff]
    %v3219 = vld [vmem:[#allocation6 + $0x38] sm:$0xff]
    %v3220 = vld [vmem:[#allocation6 + $0x40] sm:$0xff]
    %v3221 = vld [vmem:[#allocation6 + $0x48] sm:$0xff]
    %v3222 = vld [vmem:[#allocation6 + $0x50] sm:$0xff]
    %v3223 = vld [vmem:[#allocation6 + $0x58] sm:$0xff]
    %v3224 = vld [vmem:[#allocation6 + $0x60] sm:$0xff]
    %v3225 = vld [vmem:[#allocation6 + $0x68] sm:$0xff]
    %v3226 = vld [vmem:[#allocation6 + $0x70] sm:$0xff]
    %v3227 = vld [vmem:[#allocation6 + $0x78] sm:$0xff]
    %v3228 = vld [vmem:[#allocation6 + $0x80] sm:$0xff]
    %v3229 = vld [vmem:[#allocation6 + $0x88] sm:$0xff]
    %v3230 = vld [vmem:[#allocation6 + $0x90] sm:$0xff]
    %v3231 = vld [vmem:[#allocation6 + $0x98] sm:$0xff]
    %v3232 = vld [vmem:[#allocation6 + $0xa0] sm:$0xff]
    %v3233 = vld [vmem:[#allocation6 + $0xa8] sm:$0xff]
    %v3234 = vld [vmem:[#allocation6 + $0xb0] sm:$0xff]
    %v3235 = vld [vmem:[#allocation6 + $0xb8] sm:$0xff]
    %v3236 = vld [vmem:[#allocation6 + $0xc0] sm:$0xff]
    %v3237 = vld [vmem:[#allocation6 + $0xc8] sm:$0xff]
    %v3238 = vld [vmem:[#allocation6 + $0xd0] sm:$0xff]
    %v3239 = vld [vmem:[#allocation6 + $0xd8] sm:$0xff]
    %v3240 = vld [vmem:[#allocation6 + $0xe0] sm:$0xff]
    %v3241 = vld [vmem:[#allocation6 + $0xe8] sm:$0xff]
    %v3242 = vld [vmem:[#allocation6 + $0xf0] sm:$0xff]
    %v3243 = vld [vmem:[#allocation6 + $0xf8] sm:$0xff]
    %v3244 = vld [vmem:[#allocation16] sm:$0x1]
    %v3246 = vlaneseq
    %v3247 = vshrl.u32 %v3246, 7
    %v3248 = vsub.s32 0, %v3247
    %v3249 = vrot.slane %v3244, %v3248
    %3251 = vmatprep.subr.bf16.mxu0 0
    %3252 = vmatpush1.bf16.msra.mxu0 %v3212
    %3253 = vmatprep.subr.bf16.mxu0 0
    %3254 = vmatpush1.bf16.msra.mxu0 %v3213
    %3255 = vmatprep.subr.bf16.mxu0 0
    %3256 = vmatpush1.bf16.msra.mxu0 %v3214
    %3257 = vmatprep.subr.bf16.mxu0 0
    %3258 = vmatpush1.bf16.msra.mxu0 %v3215
    %3259 = vmatprep.subr.bf16.mxu0 0
    %3260 = vmatpush1.bf16.msra.mxu0 %v3216
    %3261 = vmatprep.subr.bf16.mxu0 0
    %3262 = vmatpush1.bf16.msra.mxu0 %v3217
    %3263 = vmatprep.subr.bf16.mxu0 0
    %3264 = vmatpush1.bf16.msra.mxu0 %v3218
    %3265 = vmatprep.subr.bf16.mxu0 0
    %3266 = vmatpush1.bf16.msra.mxu0 %v3219
    %3267 = vmatprep.subr.bf16.mxu0 0
    %3268 = vmatpush1.bf16.msra.mxu0 %v3220
    %3269 = vmatprep.subr.bf16.mxu0 0
    %3270 = vmatpush1.bf16.msra.mxu0 %v3221
    %3271 = vmatprep.subr.bf16.mxu0 0
    %3272 = vmatpush1.bf16.msra.mxu0 %v3222
    %3273 = vmatprep.subr.bf16.mxu0 0
    %3274 = vmatpush1.bf16.msra.mxu0 %v3223
    %3275 = vmatprep.subr.bf16.mxu0 0
    %3276 = vmatpush1.bf16.msra.mxu0 %v3224
    %3277 = vmatprep.subr.bf16.mxu0 0
    %3278 = vmatpush1.bf16.msra.mxu0 %v3225
    %3279 = vmatprep.subr.bf16.mxu0 0
    %3280 = vmatpush1.bf16.msra.mxu0 %v3226
    %3281 = vmatprep.subr.bf16.mxu0 0
    %3282 = vmatpush1.bf16.msra.mxu0 %v3227
    %3283 = vmatprep.mubr.bf16.mxu0 %v3209
    %3284 = vmatmul.mubr.bf16.gmra.mrb[0].mxu0 %v3208
    %v3285 = vpop.f32.mrb[0].mxu0
    %v3286 = vadd.f32 %v3249, %v3285
    %v3287 = vpop.f32.mrb[0].mxu0
    %v3288 = vpop.f32.mrb[0].mxu0
    %v3289 = vpop.f32.mrb[0].mxu0
    %3290 = vdwg.mxu0
    %3291 = vmatprep.subr.bf16.mxu0 0
    %3292 = vmatpush1.bf16.msra.mxu0 %v3228
    %3293 = vmatprep.subr.bf16.mxu0 0
    %3294 = vmatpush1.bf16.msra.mxu0 %v3229
    %3295 = vmatprep.subr.bf16.mxu0 0
    %3296 = vmatpush1.bf16.msra.mxu0 %v3230
    %3297 = vmatprep.subr.bf16.mxu0 0
    %3298 = vmatpush1.bf16.msra.mxu0 %v3231
    %3299 = vmatprep.subr.bf16.mxu0 0
    %3300 = vmatpush1.bf16.msra.mxu0 %v3232
    %3301 = vmatprep.subr.bf16.mxu0 0
    %3302 = vmatpush1.bf16.msra.mxu0 %v3233
    %3303 = vmatprep.subr.bf16.mxu0 0
    %3304 = vmatpush1.bf16.msra.mxu0 %v3234
    %3305 = vmatprep.subr.bf16.mxu0 0
    %3306 = vmatpush1.bf16.msra.mxu0 %v3235
    %3307 = vmatprep.subr.bf16.mxu0 0
    %3308 = vmatpush1.bf16.msra.mxu0 %v3236
    %3309 = vmatprep.subr.bf16.mxu0 0
    %3310 = vmatpush1.bf16.msra.mxu0 %v3237
    %3311 = vmatprep.subr.bf16.mxu0 0
    %3312 = vmatpush1.bf16.msra.mxu0 %v3238
    %3313 = vmatprep.subr.bf16.mxu0 0
    %3314 = vmatpush1.bf16.msra.mxu0 %v3239
    %3315 = vmatprep.subr.bf16.mxu0 0
    %3316 = vmatpush1.bf16.msra.mxu0 %v3240
    %3317 = vmatprep.subr.bf16.mxu0 0
    %3318 = vmatpush1.bf16.msra.mxu0 %v3241
    %3319 = vmatprep.subr.bf16.mxu0 0
    %3320 = vmatpush1.bf16.msra.mxu0 %v3242
    %3321 = vmatprep.subr.bf16.mxu0 0
    %3322 = vmatpush1.bf16.msra.mxu0 %v3243
    %3323 = vmatprep.mubr.bf16.mxu0 %v3211
    %3324 = vmatmul.mubr.bf16.gmra.mrb[0].mxu0 %v3210
    %v3325 = vpop.f32.mrb[0].mxu0
    %v3326 = vadd.f32 %v3286, %v3325
    %v3327 = vpop.f32.mrb[0].mxu0
    %v3328 = vpop.f32.mrb[0].mxu0
    %v3329 = vpop.f32.mrb[0].mxu0
    %3330 = vdwg.mxu0
    %v3331 = vmax.f32 %v3326, 0.0
    %v3332 = vpack.c.bf16 %v3331, %v3331
    %v3333 = vld [vmem:[#allocation7] sm:$0xff]
    %v3334 = vld [vmem:[#allocation7 + $0x8] sm:$0xff]
    %v3335 = vld [vmem:[#allocation7 + $0x10] sm:$0xff]
    %v3336 = vld [vmem:[#allocation7 + $0x18] sm:$0xff]
    %v3337 = vld [vmem:[#allocation7 + $0x20] sm:$0xff]
    %v3338 = vld [vmem:[#allocation7 + $0x28] sm:$0xff]
    %v3339 = vld [vmem:[#allocation7 + $0x30] sm:$0xff]
    %v3340 = vld [vmem:[#allocation7 + $0x38] sm:$0xff]
    %v3341 = vld [vmem:[#allocation7 + $0x40] sm:$0xff]
    %v3342 = vld [vmem:[#allocation7 + $0x48] sm:$0xff]
    %v3343 = vld [vmem:[#allocation7 + $0x50] sm:$0xff]
    %v3344 = vld [vmem:[#allocation7 + $0x58] sm:$0xff]
    %v3345 = vld [vmem:[#allocation7 + $0x60] sm:$0xff]
    %v3346 = vld [vmem:[#allocation7 + $0x68] sm:$0xff]
    %v3347 = vld [vmem:[#allocation7 + $0x70] sm:$0xff]
    %v3348 = vld [vmem:[#allocation7 + $0x78] sm:$0xff]
    %v3349 = vld [vmem:[#allocation7 + $0x80] sm:$0xff]
    %v3350 = vld [vmem:[#allocation7 + $0x88] sm:$0xff]
    %v3351 = vld [vmem:[#allocation7 + $0x90] sm:$0xff]
    %v3352 = vld [vmem:[#allocation7 + $0x98] sm:$0xff]
    %v3353 = vld [vmem:[#allocation7 + $0xa0] sm:$0xff]
    %v3354 = vld [vmem:[#allocation7 + $0xa8] sm:$0xff]
    %v3355 = vld [vmem:[#allocation7 + $0xb0] sm:$0xff]
    %v3356 = vld [vmem:[#allocation7 + $0xb8] sm:$0xff]
    %v3357 = vld [vmem:[#allocation7 + $0xc0] sm:$0xff]
    %v3358 = vld [vmem:[#allocation7 + $0xc8] sm:$0xff]
    %v3359 = vld [vmem:[#allocation7 + $0xd0] sm:$0xff]
    %v3360 = vld [vmem:[#allocation7 + $0xd8] sm:$0xff]
    %v3361 = vld [vmem:[#allocation7 + $0xe0] sm:$0xff]
    %v3362 = vld [vmem:[#allocation7 + $0xe8] sm:$0xff]
    %v3363 = vld [vmem:[#allocation7 + $0xf0] sm:$0xff]
    %v3364 = vld [vmem:[#allocation7 + $0xf8] sm:$0xff]
    %v3365 = vld [vmem:[#allocation7 + $0x100] sm:$0xff]
    %v3366 = vld [vmem:[#allocation7 + $0x108] sm:$0xff]
    %v3367 = vld [vmem:[#allocation7 + $0x110] sm:$0xff]
    %v3368 = vld [vmem:[#allocation7 + $0x118] sm:$0xff]
    %v3369 = vld [vmem:[#allocation7 + $0x120] sm:$0xff]
    %v3370 = vld [vmem:[#allocation7 + $0x128] sm:$0xff]
    %v3371 = vld [vmem:[#allocation7 + $0x130] sm:$0xff]
    %v3372 = vld [vmem:[#allocation7 + $0x138] sm:$0xff]
    %v3373 = vld [vmem:[#allocation7 + $0x140] sm:$0xff]
    %v3374 = vld [vmem:[#allocation7 + $0x148] sm:$0xff]
    %v3375 = vld [vmem:[#allocation7 + $0x150] sm:$0xff]
    %v3376 = vld [vmem:[#allocation7 + $0x158] sm:$0xff]
    %v3377 = vld [vmem:[#allocation7 + $0x160] sm:$0xff]
    %v3378 = vld [vmem:[#allocation7 + $0x168] sm:$0xff]
    %v3379 = vld [vmem:[#allocation7 + $0x170] sm:$0xff]
    %v3380 = vld [vmem:[#allocation7 + $0x178] sm:$0xff]
    %v3381 = vld [vmem:[#allocation7 + $0x180] sm:$0xff]
    %v3382 = vld [vmem:[#allocation7 + $0x188] sm:$0xff]
    %v3383 = vld [vmem:[#allocation7 + $0x190] sm:$0xff]
    %v3384 = vld [vmem:[#allocation7 + $0x198] sm:$0xff]
    %v3385 = vld [vmem:[#allocation7 + $0x1a0] sm:$0xff]
    %v3386 = vld [vmem:[#allocation7 + $0x1a8] sm:$0xff]
    %v3387 = vld [vmem:[#allocation7 + $0x1b0] sm:$0xff]
    %v3388 = vld [vmem:[#allocation7 + $0x1b8] sm:$0xff]
    %v3389 = vld [vmem:[#allocation7 + $0x1c0] sm:$0xff]
    %v3390 = vld [vmem:[#allocation7 + $0x1c8] sm:$0xff]
    %v3391 = vld [vmem:[#allocation7 + $0x1d0] sm:$0xff]
    %v3392 = vld [vmem:[#allocation7 + $0x1d8] sm:$0xff]
    %v3393 = vld [vmem:[#allocation7 + $0x1e0] sm:$0xff]
    %v3394 = vld [vmem:[#allocation7 + $0x1e8] sm:$0xff]
    %v3395 = vld [vmem:[#allocation7 + $0x1f0] sm:$0xff]
    %v3396 = vld [vmem:[#allocation7 + $0x1f8] sm:$0xff]
    %v3397 = vld [vmem:[#allocation7 + $0x200] sm:$0xff]
    %v3398 = vld [vmem:[#allocation7 + $0x208] sm:$0xff]
    %v3399 = vld [vmem:[#allocation7 + $0x210] sm:$0xff]
    %v3400 = vld [vmem:[#allocation7 + $0x218] sm:$0xff]
    %v3401 = vld [vmem:[#allocation7 + $0x220] sm:$0xff]
    %v3402 = vld [vmem:[#allocation7 + $0x228] sm:$0xff]
    %v3403 = vld [vmem:[#allocation7 + $0x230] sm:$0xff]
    %v3404 = vld [vmem:[#allocation7 + $0x238] sm:$0xff]
    %v3405 = vld [vmem:[#allocation7 + $0x240] sm:$0xff]
    %v3406 = vld [vmem:[#allocation7 + $0x248] sm:$0xff]
    %v3407 = vld [vmem:[#allocation7 + $0x250] sm:$0xff]
    %v3408 = vld [vmem:[#allocation7 + $0x258] sm:$0xff]
    %v3409 = vld [vmem:[#allocation7 + $0x260] sm:$0xff]
    %v3410 = vld [vmem:[#allocation7 + $0x268] sm:$0xff]
    %v3411 = vld [vmem:[#allocation7 + $0x270] sm:$0xff]
    %v3412 = vld [vmem:[#allocation7 + $0x278] sm:$0xff]
    %v3413 = vld [vmem:[#allocation7 + $0x280] sm:$0xff]
    %v3414 = vld [vmem:[#allocation7 + $0x288] sm:$0xff]
    %v3415 = vld [vmem:[#allocation7 + $0x290] sm:$0xff]
    %v3416 = vld [vmem:[#allocation7 + $0x298] sm:$0xff]
    %v3417 = vld [vmem:[#allocation7 + $0x2a0] sm:$0xff]
    %v3418 = vld [vmem:[#allocation7 + $0x2a8] sm:$0xff]
    %v3419 = vld [vmem:[#allocation7 + $0x2b0] sm:$0xff]
    %v3420 = vld [vmem:[#allocation7 + $0x2b8] sm:$0xff]
    %v3421 = vld [vmem:[#allocation7 + $0x2c0] sm:$0xff]
    %v3422 = vld [vmem:[#allocation7 + $0x2c8] sm:$0xff]
    %v3423 = vld [vmem:[#allocation7 + $0x2d0] sm:$0xff]
    %v3424 = vld [vmem:[#allocation7 + $0x2d8] sm:$0xff]
    %v3425 = vld [vmem:[#allocation7 + $0x2e0] sm:$0xff]
    %v3426 = vld [vmem:[#allocation7 + $0x2e8] sm:$0xff]
    %v3427 = vld [vmem:[#allocation7 + $0x2f0] sm:$0xff]
    %v3428 = vld [vmem:[#allocation7 + $0x2f8] sm:$0xff]
    %v3429 = vld [vmem:[#allocation18] sm:$0xff]
    %v3430 = vld [vmem:[#allocation18 + $0x8] sm:$0xf]
    %v3433 = vlaneseq
    %v3434 = vshrl.u32 %v3433, 7
    %v3435 = vsub.s32 0, %v3434
    %v3436 = vrot.slane %v3429, %v3435
    %v3437 = vlaneseq
    %v3438 = vshrl.u32 %v3437, 7
    %v3439 = vsub.s32 1, %v3438
    %v3440 = vrot.slane %v3429, %v3439
    %v3441 = vlaneseq
    %v3442 = vshrl.u32 %v3441, 7
    %v3443 = vsub.s32 2, %v3442
    %v3444 = vrot.slane %v3429, %v3443
    %v3445 = vlaneseq
    %v3446 = vshrl.u32 %v3445, 7
    %v3447 = vsub.s32 3, %v3446
    %v3448 = vrot.slane %v3429, %v3447
    %v3449 = vlaneseq
    %v3450 = vshrl.u32 %v3449, 7
    %v3451 = vsub.s32 4, %v3450
    %v3452 = vrot.slane %v3429, %v3451
    %v3453 = vlaneseq
    %v3454 = vshrl.u32 %v3453, 7
    %v3455 = vsub.s32 5, %v3454
    %v3456 = vrot.slane %v3429, %v3455
    %v3457 = vlaneseq
    %v3458 = vshrl.u32 %v3457, 7
    %v3459 = vsub.s32 6, %v3458
    %v3460 = vrot.slane %v3429, %v3459
    %v3461 = vlaneseq
    %v3462 = vshrl.u32 %v3461, 7
    %v3463 = vsub.s32 7, %v3462
    %v3464 = vrot.slane %v3429, %v3463
    %v3465 = vlaneseq
    %v3466 = vshrl.u32 %v3465, 7
    %v3467 = vsub.s32 0, %v3466
    %v3468 = vrot.slane %v3430, %v3467
    %v3469 = vlaneseq
    %v3470 = vshrl.u32 %v3469, 7
    %v3471 = vsub.s32 1, %v3470
    %v3472 = vrot.slane %v3430, %v3471
    %v3473 = vlaneseq
    %v3474 = vshrl.u32 %v3473, 7
    %v3475 = vsub.s32 2, %v3474
    %v3476 = vrot.slane %v3430, %v3475
    %v3477 = vlaneseq
    %v3478 = vshrl.u32 %v3477, 7
    %v3479 = vsub.s32 3, %v3478
    %v3480 = vrot.slane %v3430, %v3479
    %3493 = vmatprep.subr.bf16.mxu0 %v3334
    %3494 = vmatpush1.bf16.msra.mxu0 %v3333
    %3495 = vmatprep.subr.bf16.mxu0 %v3346
    %3496 = vmatpush1.bf16.msra.mxu0 %v3345
    %3497 = vmatprep.subr.bf16.mxu0 %v3358
    %3498 = vmatpush1.bf16.msra.mxu0 %v3357
    %3499 = vmatprep.subr.bf16.mxu0 %v3370
    %3500 = vmatpush1.bf16.msra.mxu0 %v3369
    %3501 = vmatprep.subr.bf16.mxu0 %v3382
    %3502 = vmatpush1.bf16.msra.mxu0 %v3381
    %3503 = vmatprep.subr.bf16.mxu0 %v3394
    %3504 = vmatpush1.bf16.msra.mxu0 %v3393
    %3505 = vmatprep.subr.bf16.mxu0 %v3406
    %3506 = vmatpush1.bf16.msra.mxu0 %v3405
    %3507 = vmatprep.subr.bf16.mxu0 %v3418
    %3508 = vmatpush1.bf16.msra.mxu0 %v3417
    %3509 = vmatprep.subr.bf16.mxu0 0
    %3510 = vmatpush1.bf16.msra.mxu0 0
    %3511 = vmatprep.subr.bf16.mxu0 0
    %3512 = vmatpush1.bf16.msra.mxu0 0
    %3513 = vmatprep.subr.bf16.mxu0 0
    %3514 = vmatpush1.bf16.msra.mxu0 0
    %3515 = vmatprep.subr.bf16.mxu0 0
    %3516 = vmatpush1.bf16.msra.mxu0 0
    %3517 = vmatprep.subr.bf16.mxu0 0
    %3518 = vmatpush1.bf16.msra.mxu0 0
    %3519 = vmatprep.subr.bf16.mxu0 0
    %3520 = vmatpush1.bf16.msra.mxu0 0
    %3521 = vmatprep.subr.bf16.mxu0 0
    %3522 = vmatpush1.bf16.msra.mxu0 0
    %3523 = vmatprep.subr.bf16.mxu0 0
    %3524 = vmatpush1.bf16.msra.mxu0 0
    %3525 = vmatprep.mubr.bf16.mxu0 0
    %3526 = vmatmul.mubr.bf16.gmra.mrb[0].mxu0 %v3332
    %v3527 = vpop.f32.mrb[0].mxu0
    %v3528 = vadd.f32 %v3436, %v3527
    %v3529 = vpop.f32.mrb[0].mxu0
    %v3530 = vadd.f32 %v3440, %v3529
    %v3531 = vpop.f32.mrb[0].mxu0
    %v3532 = vpop.f32.mrb[0].mxu0
    %3533 = vdwg.mxu0
    %3534 = vmatprep.subr.bf16.mxu0 %v3336
    %3535 = vmatpush1.bf16.msra.mxu0 %v3335
    %3536 = vmatprep.subr.bf16.mxu0 %v3348
    %3537 = vmatpush1.bf16.msra.mxu0 %v3347
    %3538 = vmatprep.subr.bf16.mxu0 %v3360
    %3539 = vmatpush1.bf16.msra.mxu0 %v3359
    %3540 = vmatprep.subr.bf16.mxu0 %v3372
    %3541 = vmatpush1.bf16.msra.mxu0 %v3371
    %3542 = vmatprep.subr.bf16.mxu0 %v3384
    %3543 = vmatpush1.bf16.msra.mxu0 %v3383
    %3544 = vmatprep.subr.bf16.mxu0 %v3396
    %3545 = vmatpush1.bf16.msra.mxu0 %v3395
    %3546 = vmatprep.subr.bf16.mxu0 %v3408
    %3547 = vmatpush1.bf16.msra.mxu0 %v3407
    %3548 = vmatprep.subr.bf16.mxu0 %v3420
    %3549 = vmatpush1.bf16.msra.mxu0 %v3419
    %3550 = vmatprep.subr.bf16.mxu0 0
    %3551 = vmatpush1.bf16.msra.mxu0 0
    %3552 = vmatprep.subr.bf16.mxu0 0
    %3553 = vmatpush1.bf16.msra.mxu0 0
    %3554 = vmatprep.subr.bf16.mxu0 0
    %3555 = vmatpush1.bf16.msra.mxu0 0
    %3556 = vmatprep.subr.bf16.mxu0 0
    %3557 = vmatpush1.bf16.msra.mxu0 0
    %3558 = vmatprep.subr.bf16.mxu0 0
    %3559 = vmatpush1.bf16.msra.mxu0 0
    %3560 = vmatprep.subr.bf16.mxu0 0
    %3561 = vmatpush1.bf16.msra.mxu0 0
    %3562 = vmatprep.subr.bf16.mxu0 0
    %3563 = vmatpush1.bf16.msra.mxu0 0
    %3564 = vmatprep.subr.bf16.mxu0 0
    %3565 = vmatpush1.bf16.msra.mxu0 0
    %3566 = vmatprep.mubr.bf16.mxu0 0
    %3567 = vmatmul.mubr.bf16.gmra.mrb[0].mxu0 %v3332
    %v3568 = vpop.f32.mrb[0].mxu0
    %v3569 = vadd.f32 %v3444, %v3568
    %v3570 = vpop.f32.mrb[0].mxu0
    %v3571 = vadd.f32 %v3448, %v3570
    %v3572 = vpop.f32.mrb[0].mxu0
    %v3573 = vpop.f32.mrb[0].mxu0
    %3574 = vdwg.mxu0
    %3575 = vmatprep.subr.bf16.mxu0 %v3338
    %3576 = vmatpush1.bf16.msra.mxu0 %v3337
    %3577 = vmatprep.subr.bf16.mxu0 %v3350
    %3578 = vmatpush1.bf16.msra.mxu0 %v3349
    %3579 = vmatprep.subr.bf16.mxu0 %v3362
    %3580 = vmatpush1.bf16.msra.mxu0 %v3361
    %3581 = vmatprep.subr.bf16.mxu0 %v3374
    %3582 = vmatpush1.bf16.msra.mxu0 %v3373
    %3583 = vmatprep.subr.bf16.mxu0 %v3386
    %3584 = vmatpush1.bf16.msra.mxu0 %v3385
    %3585 = vmatprep.subr.bf16.mxu0 %v3398
    %3586 = vmatpush1.bf16.msra.mxu0 %v3397
    %3587 = vmatprep.subr.bf16.mxu0 %v3410
    %3588 = vmatpush1.bf16.msra.mxu0 %v3409
    %3589 = vmatprep.subr.bf16.mxu0 %v3422
    %3590 = vmatpush1.bf16.msra.mxu0 %v3421
    %3591 = vmatprep.subr.bf16.mxu0 0
    %3592 = vmatpush1.bf16.msra.mxu0 0
    %3593 = vmatprep.subr.bf16.mxu0 0
    %3594 = vmatpush1.bf16.msra.mxu0 0
    %3595 = vmatprep.subr.bf16.mxu0 0
    %3596 = vmatpush1.bf16.msra.mxu0 0
    %3597 = vmatprep.subr.bf16.mxu0 0
    %3598 = vmatpush1.bf16.msra.mxu0 0
    %3599 = vmatprep.subr.bf16.mxu0 0
    %3600 = vmatpush1.bf16.msra.mxu0 0
    %3601 = vmatprep.subr.bf16.mxu0 0
    %3602 = vmatpush1.bf16.msra.mxu0 0
    %3603 = vmatprep.subr.bf16.mxu0 0
    %3604 = vmatpush1.bf16.msra.mxu0 0
    %3605 = vmatprep.subr.bf16.mxu0 0
    %3606 = vmatpush1.bf16.msra.mxu0 0
    %3607 = vmatprep.mubr.bf16.mxu0 0
    %3608 = vmatmul.mubr.bf16.gmra.mrb[0].mxu0 %v3332
    %v3609 = vpop.f32.mrb[0].mxu0
    %v3610 = vadd.f32 %v3452, %v3609
    %v3611 = vpop.f32.mrb[0].mxu0
    %v3612 = vadd.f32 %v3456, %v3611
    %v3613 = vpop.f32.mrb[0].mxu0
    %v3614 = vpop.f32.mrb[0].mxu0
    %3615 = vdwg.mxu0
    %3616 = vmatprep.subr.bf16.mxu0 %v3340
    %3617 = vmatpush1.bf16.msra.mxu0 %v3339
    %3618 = vmatprep.subr.bf16.mxu0 %v3352
    %3619 = vmatpush1.bf16.msra.mxu0 %v3351
    %3620 = vmatprep.subr.bf16.mxu0 %v3364
    %3621 = vmatpush1.bf16.msra.mxu0 %v3363
    %3622 = vmatprep.subr.bf16.mxu0 %v3376
    %3623 = vmatpush1.bf16.msra.mxu0 %v3375
    %3624 = vmatprep.subr.bf16.mxu0 %v3388
    %3625 = vmatpush1.bf16.msra.mxu0 %v3387
    %3626 = vmatprep.subr.bf16.mxu0 %v3400
    %3627 = vmatpush1.bf16.msra.mxu0 %v3399
    %3628 = vmatprep.subr.bf16.mxu0 %v3412
    %3629 = vmatpush1.bf16.msra.mxu0 %v3411
    %3630 = vmatprep.subr.bf16.mxu0 %v3424
    %3631 = vmatpush1.bf16.msra.mxu0 %v3423
    %3632 = vmatprep.subr.bf16.mxu0 0
    %3633 = vmatpush1.bf16.msra.mxu0 0
    %3634 = vmatprep.subr.bf16.mxu0 0
    %3635 = vmatpush1.bf16.msra.mxu0 0
    %3636 = vmatprep.subr.bf16.mxu0 0
    %3637 = vmatpush1.bf16.msra.mxu0 0
    %3638 = vmatprep.subr.bf16.mxu0 0
    %3639 = vmatpush1.bf16.msra.mxu0 0
    %3640 = vmatprep.subr.bf16.mxu0 0
    %3641 = vmatpush1.bf16.msra.mxu0 0
    %3642 = vmatprep.subr.bf16.mxu0 0
    %3643 = vmatpush1.bf16.msra.mxu0 0
    %3644 = vmatprep.subr.bf16.mxu0 0
    %3645 = vmatpush1.bf16.msra.mxu0 0
    %3646 = vmatprep.subr.bf16.mxu0 0
    %3647 = vmatpush1.bf16.msra.mxu0 0
    %3648 = vmatprep.mubr.bf16.mxu0 0
    %3649 = vmatmul.mubr.bf16.gmra.mrb[0].mxu0 %v3332
    %v3650 = vpop.f32.mrb[0].mxu0
    %v3651 = vadd.f32 %v3460, %v3650
    %v3652 = vpop.f32.mrb[0].mxu0
    %v3653 = vadd.f32 %v3464, %v3652
    %v3654 = vpop.f32.mrb[0].mxu0
    %v3655 = vpop.f32.mrb[0].mxu0
    %3656 = vdwg.mxu0
    %3657 = vmatprep.subr.bf16.mxu0 %v3342
    %3658 = vmatpush1.bf16.msra.mxu0 %v3341
    %3659 = vmatprep.subr.bf16.mxu0 %v3354
    %3660 = vmatpush1.bf16.msra.mxu0 %v3353
    %3661 = vmatprep.subr.bf16.mxu0 %v3366
    %3662 = vmatpush1.bf16.msra.mxu0 %v3365
    %3663 = vmatprep.subr.bf16.mxu0 %v3378
    %3664 = vmatpush1.bf16.msra.mxu0 %v3377
    %3665 = vmatprep.subr.bf16.mxu0 %v3390
    %3666 = vmatpush1.bf16.msra.mxu0 %v3389
    %3667 = vmatprep.subr.bf16.mxu0 %v3402
    %3668 = vmatpush1.bf16.msra.mxu0 %v3401
    %3669 = vmatprep.subr.bf16.mxu0 %v3414
    %3670 = vmatpush1.bf16.msra.mxu0 %v3413
    %3671 = vmatprep.subr.bf16.mxu0 %v3426
    %3672 = vmatpush1.bf16.msra.mxu0 %v3425
    %3673 = vmatprep.subr.bf16.mxu0 0
    %3674 = vmatpush1.bf16.msra.mxu0 0
    %3675 = vmatprep.subr.bf16.mxu0 0
    %3676 = vmatpush1.bf16.msra.mxu0 0
    %3677 = vmatprep.subr.bf16.mxu0 0
    %3678 = vmatpush1.bf16.msra.mxu0 0
    %3679 = vmatprep.subr.bf16.mxu0 0
    %3680 = vmatpush1.bf16.msra.mxu0 0
    %3681 = vmatprep.subr.bf16.mxu0 0
    %3682 = vmatpush1.bf16.msra.mxu0 0
    %3683 = vmatprep.subr.bf16.mxu0 0
    %3684 = vmatpush1.bf16.msra.mxu0 0
    %3685 = vmatprep.subr.bf16.mxu0 0
    %3686 = vmatpush1.bf16.msra.mxu0 0
    %3687 = vmatprep.subr.bf16.mxu0 0
    %3688 = vmatpush1.bf16.msra.mxu0 0
    %3689 = vmatprep.mubr.bf16.mxu0 0
    %3690 = vmatmul.mubr.bf16.gmra.mrb[0].mxu0 %v3332
    %v3691 = vpop.f32.mrb[0].mxu0
    %v3692 = vadd.f32 %v3468, %v3691
    %v3693 = vpop.f32.mrb[0].mxu0
    %v3694 = vadd.f32 %v3472, %v3693
    %v3695 = vpop.f32.mrb[0].mxu0
    %v3696 = vpop.f32.mrb[0].mxu0
    %3697 = vdwg.mxu0
    %3698 = vmatprep.subr.bf16.mxu0 %v3344
    %3699 = vmatpush1.bf16.msra.mxu0 %v3343
    %3700 = vmatprep.subr.bf16.mxu0 %v3356
    %3701 = vmatpush1.bf16.msra.mxu0 %v3355
    %3702 = vmatprep.subr.bf16.mxu0 %v3368
    %3703 = vmatpush1.bf16.msra.mxu0 %v3367
    %3704 = vmatprep.subr.bf16.mxu0 %v3380
    %3705 = vmatpush1.bf16.msra.mxu0 %v3379
    %3706 = vmatprep.subr.bf16.mxu0 %v3392
    %3707 = vmatpush1.bf16.msra.mxu0 %v3391
    %3708 = vmatprep.subr.bf16.mxu0 %v3404
    %3709 = vmatpush1.bf16.msra.mxu0 %v3403
    %3710 = vmatprep.subr.bf16.mxu0 %v3416
    %3711 = vmatpush1.bf16.msra.mxu0 %v3415
    %3712 = vmatprep.subr.bf16.mxu0 %v3428
    %3713 = vmatpush1.bf16.msra.mxu0 %v3427
    %3714 = vmatprep.subr.bf16.mxu0 0
    %3715 = vmatpush1.bf16.msra.mxu0 0
    %3716 = vmatprep.subr.bf16.mxu0 0
    %3717 = vmatpush1.bf16.msra.mxu0 0
    %3718 = vmatprep.subr.bf16.mxu0 0
    %3719 = vmatpush1.bf16.msra.mxu0 0
    %3720 = vmatprep.subr.bf16.mxu0 0
    %3721 = vmatpush1.bf16.msra.mxu0 0
    %3722 = vmatprep.subr.bf16.mxu0 0
    %3723 = vmatpush1.bf16.msra.mxu0 0
    %3724 = vmatprep.subr.bf16.mxu0 0
    %3725 = vmatpush1.bf16.msra.mxu0 0
    %3726 = vmatprep.subr.bf16.mxu0 0
    %3727 = vmatpush1.bf16.msra.mxu0 0
    %3728 = vmatprep.subr.bf16.mxu0 0
    %3729 = vmatpush1.bf16.msra.mxu0 0
    %3730 = vmatprep.mubr.bf16.mxu0 0
    %3731 = vmatmul.mubr.bf16.gmra.mrb[0].mxu0 %v3332
    %v3732 = vpop.f32.mrb[0].mxu0
    %v3733 = vadd.f32 %v3476, %v3732
    %v3734 = vpop.f32.mrb[0].mxu0
    %v3735 = vadd.f32 %v3480, %v3734
    %v3736 = vpop.f32.mrb[0].mxu0
    %v3737 = vpop.f32.mrb[0].mxu0
    %3738 = vdwg.mxu0
    %3739 = vst [vmem:[#allocation4] sm:$0xff] %v3528
    %3740 = vst [vmem:[#allocation4 + $0x8] sm:$0xff] %v3530
    %3741 = vst [vmem:[#allocation4 + $0x10] sm:$0xff] %v3569
    %3742 = vst [vmem:[#allocation4 + $0x18] sm:$0xff] %v3571
    %3743 = vst [vmem:[#allocation4 + $0x20] sm:$0xff] %v3610
    %3744 = vst [vmem:[#allocation4 + $0x28] sm:$0xff] %v3612
    %3745 = vst [vmem:[#allocation4 + $0x30] sm:$0xff] %v3651
    %3746 = vst [vmem:[#allocation4 + $0x38] sm:$0xff] %v3653
    %3747 = vst [vmem:[#allocation4 + $0x40] sm:$0xff] %v3692
    %3748 = vst [vmem:[#allocation4 + $0x48] sm:$0xff] %v3694
    %3749 = vst [vmem:[#allocation4 + $0x50] sm:$0xff] %v3733
    %3750 = vst [vmem:[#allocation4 + $0x58] sm:$0xff] %v3735
    %v3751 = vld [vmem:[#allocation4] sm:$0xff]
    %v3752 = vld [vmem:[#allocation4 + $0x8] sm:$0xff]
    %v3753 = vld [vmem:[#allocation4 + $0x10] sm:$0xff]
    %v3754 = vld [vmem:[#allocation4 + $0x18] sm:$0xff]
    %v3755 = vld [vmem:[#allocation4 + $0x20] sm:$0xff]
    %v3756 = vld [vmem:[#allocation4 + $0x28] sm:$0xff]
    %v3757 = vld [vmem:[#allocation4 + $0x30] sm:$0xff]
    %v3758 = vld [vmem:[#allocation4 + $0x38] sm:$0xff]
    %v3759 = vld [vmem:[#allocation4 + $0x40] sm:$0xff]
    %v3760 = vld [vmem:[#allocation4 + $0x48] sm:$0xff]
    %v3761 = vld [vmem:[#allocation4 + $0x50] sm:$0xff]
    %v3762 = vld [vmem:[#allocation4 + $0x58] sm:$0xff]
    %v3763 = vld [vmem:[#allocation8] sm:$0xff]
    %v3764 = vld [vmem:[#allocation8 + $0x8] sm:$0xff]
    %v3765 = vld [vmem:[#allocation8 + $0x10] sm:$0xff]
    %v3766 = vld [vmem:[#allocation8 + $0x18] sm:$0xff]
    %v3767 = vld [vmem:[#allocation8 + $0x20] sm:$0xff]
    %v3768 = vld [vmem:[#allocation8 + $0x28] sm:$0xff]
    %v3769 = vld [vmem:[#allocation8 + $0x30] sm:$0xff]
    %v3770 = vld [vmem:[#allocation8 + $0x38] sm:$0xff]
    %v3771 = vld [vmem:[#allocation8 + $0x40] sm:$0xff]
    %v3772 = vld [vmem:[#allocation8 + $0x48] sm:$0xff]
    %v3773 = vld [vmem:[#allocation8 + $0x50] sm:$0xff]
    %v3774 = vld [vmem:[#allocation8 + $0x58] sm:$0xff]
    %v3775 = vld [vmem:[#allocation8 + $0x60] sm:$0xff]
    %v3776 = vld [vmem:[#allocation8 + $0x68] sm:$0xff]
    %v3777 = vld [vmem:[#allocation8 + $0x70] sm:$0xff]
    %v3778 = vld [vmem:[#allocation8 + $0x78] sm:$0xff]
    %v3779 = vld [vmem:[#allocation8 + $0x80] sm:$0xff]
    %v3780 = vld [vmem:[#allocation8 + $0x88] sm:$0xff]
    %v3781 = vld [vmem:[#allocation8 + $0x90] sm:$0xff]
    %v3782 = vld [vmem:[#allocation8 + $0x98] sm:$0xff]
    %v3783 = vld [vmem:[#allocation8 + $0xa0] sm:$0xff]
    %v3784 = vld [vmem:[#allocation8 + $0xa8] sm:$0xff]
    %v3785 = vld [vmem:[#allocation8 + $0xb0] sm:$0xff]
    %v3786 = vld [vmem:[#allocation8 + $0xb8] sm:$0xff]
    %v3787 = vld [vmem:[#allocation8 + $0xc0] sm:$0xff]
    %v3788 = vld [vmem:[#allocation8 + $0xc8] sm:$0xff]
    %v3789 = vld [vmem:[#allocation8 + $0xd0] sm:$0xff]
    %v3790 = vld [vmem:[#allocation8 + $0xd8] sm:$0xff]
    %v3791 = vld [vmem:[#allocation8 + $0xe0] sm:$0xff]
    %v3792 = vld [vmem:[#allocation8 + $0xe8] sm:$0xff]
    %v3793 = vld [vmem:[#allocation8 + $0xf0] sm:$0xff]
    %v3794 = vld [vmem:[#allocation8 + $0xf8] sm:$0xff]
    %v3795 = vld [vmem:[#allocation8 + $0x100] sm:$0xff]
    %v3796 = vld [vmem:[#allocation8 + $0x108] sm:$0xff]
    %v3797 = vld [vmem:[#allocation8 + $0x110] sm:$0xff]
    %v3798 = vld [vmem:[#allocation8 + $0x118] sm:$0xff]
    %v3799 = vld [vmem:[#allocation8 + $0x120] sm:$0xff]
    %v3800 = vld [vmem:[#allocation8 + $0x128] sm:$0xff]
    %v3801 = vld [vmem:[#allocation8 + $0x130] sm:$0xff]
    %v3802 = vld [vmem:[#allocation8 + $0x138] sm:$0xff]
    %v3803 = vld [vmem:[#allocation8 + $0x140] sm:$0xff]
    %v3804 = vld [vmem:[#allocation8 + $0x148] sm:$0xff]
    %v3805 = vld [vmem:[#allocation8 + $0x150] sm:$0xff]
    %v3806 = vld [vmem:[#allocation8 + $0x158] sm:$0xff]
    %v3807 = vld [vmem:[#allocation8 + $0x160] sm:$0xff]
    %v3808 = vld [vmem:[#allocation8 + $0x168] sm:$0xff]
    %v3809 = vld [vmem:[#allocation8 + $0x170] sm:$0xff]
    %v3810 = vld [vmem:[#allocation8 + $0x178] sm:$0xff]
    %v3811 = vld [vmem:[#allocation8 + $0x180] sm:$0xff]
    %v3812 = vld [vmem:[#allocation8 + $0x188] sm:$0xff]
    %v3813 = vld [vmem:[#allocation8 + $0x190] sm:$0xff]
    %v3814 = vld [vmem:[#allocation8 + $0x198] sm:$0xff]
    %v3815 = vld [vmem:[#allocation8 + $0x1a0] sm:$0xff]
    %v3816 = vld [vmem:[#allocation8 + $0x1a8] sm:$0xff]
    %v3817 = vld [vmem:[#allocation8 + $0x1b0] sm:$0xff]
    %v3818 = vld [vmem:[#allocation8 + $0x1b8] sm:$0xff]
    %v3819 = vld [vmem:[#allocation8 + $0x1c0] sm:$0xff]
    %v3820 = vld [vmem:[#allocation8 + $0x1c8] sm:$0xff]
    %v3821 = vld [vmem:[#allocation8 + $0x1d0] sm:$0xff]
    %v3822 = vld [vmem:[#allocation8 + $0x1d8] sm:$0xff]
    %v3823 = vld [vmem:[#allocation8 + $0x1e0] sm:$0xff]
    %v3824 = vld [vmem:[#allocation8 + $0x1e8] sm:$0xff]
    %v3825 = vld [vmem:[#allocation8 + $0x1f0] sm:$0xff]
    %v3826 = vld [vmem:[#allocation8 + $0x1f8] sm:$0xff]
    %v3827 = vld [vmem:[#allocation8 + $0x200] sm:$0xff]
    %v3828 = vld [vmem:[#allocation8 + $0x208] sm:$0xff]
    %v3829 = vld [vmem:[#allocation8 + $0x210] sm:$0xff]
    %v3830 = vld [vmem:[#allocation8 + $0x218] sm:$0xff]
    %v3831 = vld [vmem:[#allocation8 + $0x220] sm:$0xff]
    %v3832 = vld [vmem:[#allocation8 + $0x228] sm:$0xff]
    %v3833 = vld [vmem:[#allocation8 + $0x230] sm:$0xff]
    %v3834 = vld [vmem:[#allocation8 + $0x238] sm:$0xff]
    %v3835 = vld [vmem:[#allocation8 + $0x240] sm:$0xff]
    %v3836 = vld [vmem:[#allocation8 + $0x248] sm:$0xff]
    %v3837 = vld [vmem:[#allocation8 + $0x250] sm:$0xff]
    %v3838 = vld [vmem:[#allocation8 + $0x258] sm:$0xff]
    %v3839 = vld [vmem:[#allocation8 + $0x260] sm:$0xff]
    %v3840 = vld [vmem:[#allocation8 + $0x268] sm:$0xff]
    %v3841 = vld [vmem:[#allocation8 + $0x270] sm:$0xff]
    %v3842 = vld [vmem:[#allocation8 + $0x278] sm:$0xff]
    %v3843 = vld [vmem:[#allocation8 + $0x280] sm:$0xff]
    %v3844 = vld [vmem:[#allocation8 + $0x288] sm:$0xff]
    %v3845 = vld [vmem:[#allocation8 + $0x290] sm:$0xff]
    %v3846 = vld [vmem:[#allocation8 + $0x298] sm:$0xff]
    %v3847 = vld [vmem:[#allocation8 + $0x2a0] sm:$0xff]
    %v3848 = vld [vmem:[#allocation8 + $0x2a8] sm:$0xff]
    %v3849 = vld [vmem:[#allocation8 + $0x2b0] sm:$0xff]
    %v3850 = vld [vmem:[#allocation8 + $0x2b8] sm:$0xff]
    %v3851 = vld [vmem:[#allocation8 + $0x2c0] sm:$0xff]
    %v3852 = vld [vmem:[#allocation8 + $0x2c8] sm:$0xff]
    %v3853 = vld [vmem:[#allocation8 + $0x2d0] sm:$0xff]
    %v3854 = vld [vmem:[#allocation8 + $0x2d8] sm:$0xff]
    %v3855 = vld [vmem:[#allocation8 + $0x2e0] sm:$0xff]
    %v3856 = vld [vmem:[#allocation8 + $0x2e8] sm:$0xff]
    %v3857 = vld [vmem:[#allocation8 + $0x2f0] sm:$0xff]
    %v3858 = vld [vmem:[#allocation8 + $0x2f8] sm:$0xff]
    %v3859 = vld [vmem:[#allocation8 + $0x300] sm:$0xff]
    %v3860 = vld [vmem:[#allocation8 + $0x308] sm:$0xff]
    %v3861 = vld [vmem:[#allocation8 + $0x310] sm:$0xff]
    %v3862 = vld [vmem:[#allocation8 + $0x318] sm:$0xff]
    %v3863 = vld [vmem:[#allocation8 + $0x320] sm:$0xff]
    %v3864 = vld [vmem:[#allocation8 + $0x328] sm:$0xff]
    %v3865 = vld [vmem:[#allocation8 + $0x330] sm:$0xff]
    %v3866 = vld [vmem:[#allocation8 + $0x338] sm:$0xff]
    %v3867 = vld [vmem:[#allocation8 + $0x340] sm:$0xff]
    %v3868 = vld [vmem:[#allocation8 + $0x348] sm:$0xff]
    %v3869 = vld [vmem:[#allocation8 + $0x350] sm:$0xff]
    %v3870 = vld [vmem:[#allocation8 + $0x358] sm:$0xff]
    %v3871 = vld [vmem:[#allocation8 + $0x360] sm:$0xff]
    %v3872 = vld [vmem:[#allocation8 + $0x368] sm:$0xff]
    %v3873 = vld [vmem:[#allocation8 + $0x370] sm:$0xff]
    %v3874 = vld [vmem:[#allocation8 + $0x378] sm:$0xff]
    %v3875 = vld [vmem:[#allocation8 + $0x380] sm:$0xff]
    %v3876 = vld [vmem:[#allocation8 + $0x388] sm:$0xff]
    %v3877 = vld [vmem:[#allocation8 + $0x390] sm:$0xff]
    %v3878 = vld [vmem:[#allocation8 + $0x398] sm:$0xff]
    %v3879 = vld [vmem:[#allocation8 + $0x3a0] sm:$0xff]
    %v3880 = vld [vmem:[#allocation8 + $0x3a8] sm:$0xff]
    %v3881 = vld [vmem:[#allocation8 + $0x3b0] sm:$0xff]
    %v3882 = vld [vmem:[#allocation8 + $0x3b8] sm:$0xff]
    %v3883 = vld [vmem:[#allocation8 + $0x3c0] sm:$0xff]
    %v3884 = vld [vmem:[#allocation8 + $0x3c8] sm:$0xff]
    %v3885 = vld [vmem:[#allocation8 + $0x3d0] sm:$0xff]
    %v3886 = vld [vmem:[#allocation8 + $0x3d8] sm:$0xff]
    %v3887 = vld [vmem:[#allocation8 + $0x3e0] sm:$0xff]
    %v3888 = vld [vmem:[#allocation8 + $0x3e8] sm:$0xff]
    %v3889 = vld [vmem:[#allocation8 + $0x3f0] sm:$0xff]
    %v3890 = vld [vmem:[#allocation8 + $0x3f8] sm:$0xff]
    %v3891 = vld [vmem:[#allocation8 + $0x400] sm:$0xff]
    %v3892 = vld [vmem:[#allocation8 + $0x408] sm:$0xff]
    %v3893 = vld [vmem:[#allocation8 + $0x410] sm:$0xff]
    %v3894 = vld [vmem:[#allocation8 + $0x418] sm:$0xff]
    %v3895 = vld [vmem:[#allocation8 + $0x420] sm:$0xff]
    %v3896 = vld [vmem:[#allocation8 + $0x428] sm:$0xff]
    %v3897 = vld [vmem:[#allocation8 + $0x430] sm:$0xff]
    %v3898 = vld [vmem:[#allocation8 + $0x438] sm:$0xff]
    %v3899 = vld [vmem:[#allocation8 + $0x440] sm:$0xff]
    %v3900 = vld [vmem:[#allocation8 + $0x448] sm:$0xff]
    %v3901 = vld [vmem:[#allocation8 + $0x450] sm:$0xff]
    %v3902 = vld [vmem:[#allocation8 + $0x458] sm:$0xff]
    %v3903 = vld [vmem:[#allocation8 + $0x460] sm:$0xff]
    %v3904 = vld [vmem:[#allocation8 + $0x468] sm:$0xff]
    %v3905 = vld [vmem:[#allocation8 + $0x470] sm:$0xff]
    %v3906 = vld [vmem:[#allocation8 + $0x478] sm:$0xff]
    %v3907 = vld [vmem:[#allocation8 + $0x480] sm:$0xff]
    %v3908 = vld [vmem:[#allocation8 + $0x488] sm:$0xff]
    %v3909 = vld [vmem:[#allocation8 + $0x490] sm:$0xff]
    %v3910 = vld [vmem:[#allocation8 + $0x498] sm:$0xff]
    %v3911 = vld [vmem:[#allocation8 + $0x4a0] sm:$0xff]
    %v3912 = vld [vmem:[#allocation8 + $0x4a8] sm:$0xff]
    %v3913 = vld [vmem:[#allocation8 + $0x4b0] sm:$0xff]
    %v3914 = vld [vmem:[#allocation8 + $0x4b8] sm:$0xff]
    %v3915 = vld [vmem:[#allocation8 + $0x4c0] sm:$0xff]
    %v3916 = vld [vmem:[#allocation8 + $0x4c8] sm:$0xff]
    %v3917 = vld [vmem:[#allocation8 + $0x4d0] sm:$0xff]
    %v3918 = vld [vmem:[#allocation8 + $0x4d8] sm:$0xff]
    %v3919 = vld [vmem:[#allocation8 + $0x4e0] sm:$0xff]
    %v3920 = vld [vmem:[#allocation8 + $0x4e8] sm:$0xff]
    %v3921 = vld [vmem:[#allocation8 + $0x4f0] sm:$0xff]
    %v3922 = vld [vmem:[#allocation8 + $0x4f8] sm:$0xff]
    %v3923 = vld [vmem:[#allocation8 + $0x500] sm:$0xff]
    %v3924 = vld [vmem:[#allocation8 + $0x508] sm:$0xff]
    %v3925 = vld [vmem:[#allocation8 + $0x510] sm:$0xff]
    %v3926 = vld [vmem:[#allocation8 + $0x518] sm:$0xff]
    %v3927 = vld [vmem:[#allocation8 + $0x520] sm:$0xff]
    %v3928 = vld [vmem:[#allocation8 + $0x528] sm:$0xff]
    %v3929 = vld [vmem:[#allocation8 + $0x530] sm:$0xff]
    %v3930 = vld [vmem:[#allocation8 + $0x538] sm:$0xff]
    %v3931 = vld [vmem:[#allocation8 + $0x540] sm:$0xff]
    %v3932 = vld [vmem:[#allocation8 + $0x548] sm:$0xff]
    %v3933 = vld [vmem:[#allocation8 + $0x550] sm:$0xff]
    %v3934 = vld [vmem:[#allocation8 + $0x558] sm:$0xff]
    %v3935 = vld [vmem:[#allocation8 + $0x560] sm:$0xff]
    %v3936 = vld [vmem:[#allocation8 + $0x568] sm:$0xff]
    %v3937 = vld [vmem:[#allocation8 + $0x570] sm:$0xff]
    %v3938 = vld [vmem:[#allocation8 + $0x578] sm:$0xff]
    %v3939 = vld [vmem:[#allocation8 + $0x580] sm:$0xff]
    %v3940 = vld [vmem:[#allocation8 + $0x588] sm:$0xff]
    %v3941 = vld [vmem:[#allocation8 + $0x590] sm:$0xff]
    %v3942 = vld [vmem:[#allocation8 + $0x598] sm:$0xff]
    %v3943 = vld [vmem:[#allocation8 + $0x5a0] sm:$0xff]
    %v3944 = vld [vmem:[#allocation8 + $0x5a8] sm:$0xff]
    %v3945 = vld [vmem:[#allocation8 + $0x5b0] sm:$0xff]
    %v3946 = vld [vmem:[#allocation8 + $0x5b8] sm:$0xff]
    %v3947 = vld [vmem:[#allocation8 + $0x5c0] sm:$0xff]
    %v3948 = vld [vmem:[#allocation8 + $0x5c8] sm:$0xff]
    %v3949 = vld [vmem:[#allocation8 + $0x5d0] sm:$0xff]
    %v3950 = vld [vmem:[#allocation8 + $0x5d8] sm:$0xff]
    %v3951 = vld [vmem:[#allocation8 + $0x5e0] sm:$0xff]
    %v3952 = vld [vmem:[#allocation8 + $0x5e8] sm:$0xff]
    %v3953 = vld [vmem:[#allocation8 + $0x5f0] sm:$0xff]
    %v3954 = vld [vmem:[#allocation8 + $0x5f8] sm:$0xff]
    %v3955 = vld [vmem:[#allocation8 + $0x600] sm:$0xff]
    %v3956 = vld [vmem:[#allocation8 + $0x608] sm:$0xff]
    %v3957 = vld [vmem:[#allocation8 + $0x610] sm:$0xff]
    %v3958 = vld [vmem:[#allocation8 + $0x618] sm:$0xff]
    %v3959 = vld [vmem:[#allocation8 + $0x620] sm:$0xff]
    %v3960 = vld [vmem:[#allocation8 + $0x628] sm:$0xff]
    %v3961 = vld [vmem:[#allocation8 + $0x630] sm:$0xff]
    %v3962 = vld [vmem:[#allocation8 + $0x638] sm:$0xff]
    %v3963 = vld [vmem:[#allocation8 + $0x640] sm:$0xff]
    %v3964 = vld [vmem:[#allocation8 + $0x648] sm:$0xff]
    %v3965 = vld [vmem:[#allocation8 + $0x650] sm:$0xff]
    %v3966 = vld [vmem:[#allocation8 + $0x658] sm:$0xff]
    %v3967 = vld [vmem:[#allocation8 + $0x660] sm:$0xff]
    %v3968 = vld [vmem:[#allocation8 + $0x668] sm:$0xff]
    %v3969 = vld [vmem:[#allocation8 + $0x670] sm:$0xff]
    %v3970 = vld [vmem:[#allocation8 + $0x678] sm:$0xff]
    %v3971 = vld [vmem:[#allocation8 + $0x680] sm:$0xff]
    %v3972 = vld [vmem:[#allocation8 + $0x688] sm:$0xff]
    %v3973 = vld [vmem:[#allocation8 + $0x690] sm:$0xff]
    %v3974 = vld [vmem:[#allocation8 + $0x698] sm:$0xff]
    %v3975 = vld [vmem:[#allocation8 + $0x6a0] sm:$0xff]
    %v3976 = vld [vmem:[#allocation8 + $0x6a8] sm:$0xff]
    %v3977 = vld [vmem:[#allocation8 + $0x6b0] sm:$0xff]
    %v3978 = vld [vmem:[#allocation8 + $0x6b8] sm:$0xff]
    %v3979 = vld [vmem:[#allocation8 + $0x6c0] sm:$0xff]
    %v3980 = vld [vmem:[#allocation8 + $0x6c8] sm:$0xff]
    %v3981 = vld [vmem:[#allocation8 + $0x6d0] sm:$0xff]
    %v3982 = vld [vmem:[#allocation8 + $0x6d8] sm:$0xff]
    %v3983 = vld [vmem:[#allocation8 + $0x6e0] sm:$0xff]
    %v3984 = vld [vmem:[#allocation8 + $0x6e8] sm:$0xff]
    %v3985 = vld [vmem:[#allocation8 + $0x6f0] sm:$0xff]
    %v3986 = vld [vmem:[#allocation8 + $0x6f8] sm:$0xff]
    %v3987 = vld [vmem:[#allocation8 + $0x700] sm:$0xff]
    %v3988 = vld [vmem:[#allocation8 + $0x708] sm:$0xff]
    %v3989 = vld [vmem:[#allocation8 + $0x710] sm:$0xff]
    %v3990 = vld [vmem:[#allocation8 + $0x718] sm:$0xff]
    %v3991 = vld [vmem:[#allocation8 + $0x720] sm:$0xff]
    %v3992 = vld [vmem:[#allocation8 + $0x728] sm:$0xff]
    %v3993 = vld [vmem:[#allocation8 + $0x730] sm:$0xff]
    %v3994 = vld [vmem:[#allocation8 + $0x738] sm:$0xff]
    %v3995 = vld [vmem:[#allocation8 + $0x740] sm:$0xff]
    %v3996 = vld [vmem:[#allocation8 + $0x748] sm:$0xff]
    %v3997 = vld [vmem:[#allocation8 + $0x750] sm:$0xff]
    %v3998 = vld [vmem:[#allocation8 + $0x758] sm:$0xff]
    %v3999 = vld [vmem:[#allocation8 + $0x760] sm:$0xff]
    %v4000 = vld [vmem:[#allocation8 + $0x768] sm:$0xff]
    %v4001 = vld [vmem:[#allocation8 + $0x770] sm:$0xff]
    %v4002 = vld [vmem:[#allocation8 + $0x778] sm:$0xff]
    %v4003 = vld [vmem:[#allocation8 + $0x780] sm:$0xff]
    %v4004 = vld [vmem:[#allocation8 + $0x788] sm:$0xff]
    %v4005 = vld [vmem:[#allocation8 + $0x790] sm:$0xff]
    %v4006 = vld [vmem:[#allocation8 + $0x798] sm:$0xff]
    %v4007 = vld [vmem:[#allocation8 + $0x7a0] sm:$0xff]
    %v4008 = vld [vmem:[#allocation8 + $0x7a8] sm:$0xff]
    %v4009 = vld [vmem:[#allocation8 + $0x7b0] sm:$0xff]
    %v4010 = vld [vmem:[#allocation8 + $0x7b8] sm:$0xff]
    %v4011 = vld [vmem:[#allocation8 + $0x7c0] sm:$0xff]
    %v4012 = vld [vmem:[#allocation8 + $0x7c8] sm:$0xff]
    %v4013 = vld [vmem:[#allocation8 + $0x7d0] sm:$0xff]
    %v4014 = vld [vmem:[#allocation8 + $0x7d8] sm:$0xff]
    %v4015 = vld [vmem:[#allocation8 + $0x7e0] sm:$0xff]
    %v4016 = vld [vmem:[#allocation8 + $0x7e8] sm:$0xff]
    %v4017 = vld [vmem:[#allocation8 + $0x7f0] sm:$0xff]
    %v4018 = vld [vmem:[#allocation8 + $0x7f8] sm:$0xff]
    %v4019 = vld [vmem:[#allocation8 + $0x800] sm:$0xff]
    %v4020 = vld [vmem:[#allocation8 + $0x808] sm:$0xff]
    %v4021 = vld [vmem:[#allocation8 + $0x810] sm:$0xff]
    %v4022 = vld [vmem:[#allocation8 + $0x818] sm:$0xff]
    %v4023 = vld [vmem:[#allocation8 + $0x820] sm:$0xff]
    %v4024 = vld [vmem:[#allocation8 + $0x828] sm:$0xff]
    %v4025 = vld [vmem:[#allocation8 + $0x830] sm:$0xff]
    %v4026 = vld [vmem:[#allocation8 + $0x838] sm:$0xff]
    %v4027 = vld [vmem:[#allocation8 + $0x840] sm:$0xff]
    %v4028 = vld [vmem:[#allocation8 + $0x848] sm:$0xff]
    %v4029 = vld [vmem:[#allocation8 + $0x850] sm:$0xff]
    %v4030 = vld [vmem:[#allocation8 + $0x858] sm:$0xff]
    %v4031 = vld [vmem:[#allocation8 + $0x860] sm:$0xff]
    %v4032 = vld [vmem:[#allocation8 + $0x868] sm:$0xff]
    %v4033 = vld [vmem:[#allocation8 + $0x870] sm:$0xff]
    %v4034 = vld [vmem:[#allocation8 + $0x878] sm:$0xff]
    %v4035 = vld [vmem:[#allocation8 + $0x880] sm:$0xff]
    %v4036 = vld [vmem:[#allocation8 + $0x888] sm:$0xff]
    %v4037 = vld [vmem:[#allocation8 + $0x890] sm:$0xff]
    %v4038 = vld [vmem:[#allocation8 + $0x898] sm:$0xff]
    %v4039 = vld [vmem:[#allocation8 + $0x8a0] sm:$0xff]
    %v4040 = vld [vmem:[#allocation8 + $0x8a8] sm:$0xff]
    %v4041 = vld [vmem:[#allocation8 + $0x8b0] sm:$0xff]
    %v4042 = vld [vmem:[#allocation8 + $0x8b8] sm:$0xff]
    %v4043 = vld [vmem:[#allocation8 + $0x8c0] sm:$0xff]
    %v4044 = vld [vmem:[#allocation8 + $0x8c8] sm:$0xff]
    %v4045 = vld [vmem:[#allocation8 + $0x8d0] sm:$0xff]
    %v4046 = vld [vmem:[#allocation8 + $0x8d8] sm:$0xff]
    %v4047 = vld [vmem:[#allocation8 + $0x8e0] sm:$0xff]
    %v4048 = vld [vmem:[#allocation8 + $0x8e8] sm:$0xff]
    %v4049 = vld [vmem:[#allocation8 + $0x8f0] sm:$0xff]
    %v4050 = vld [vmem:[#allocation8 + $0x8f8] sm:$0xff]
    %4051 = vmatprep.subr.bf16.mxu0 %v3764
    %4052 = vmatpush1.bf16.msra.mxu0 %v3763
    %4053 = vmatprep.subr.bf16.mxu0 %v3776
    %4054 = vmatpush1.bf16.msra.mxu0 %v3775
    %4055 = vmatprep.subr.bf16.mxu0 %v3788
    %4056 = vmatpush1.bf16.msra.mxu0 %v3787
    %4057 = vmatprep.subr.bf16.mxu0 %v3800
    %4058 = vmatpush1.bf16.msra.mxu0 %v3799
    %4059 = vmatprep.subr.bf16.mxu0 %v3812
    %4060 = vmatpush1.bf16.msra.mxu0 %v3811
    %4061 = vmatprep.subr.bf16.mxu0 %v3824
    %4062 = vmatpush1.bf16.msra.mxu0 %v3823
    %4063 = vmatprep.subr.bf16.mxu0 %v3836
    %4064 = vmatpush1.bf16.msra.mxu0 %v3835
    %4065 = vmatprep.subr.bf16.mxu0 %v3848
    %4066 = vmatpush1.bf16.msra.mxu0 %v3847
    %4067 = vmatprep.subr.bf16.mxu0 %v3860
    %4068 = vmatpush1.bf16.msra.mxu0 %v3859
    %4069 = vmatprep.subr.bf16.mxu0 %v3872
    %4070 = vmatpush1.bf16.msra.mxu0 %v3871
    %4071 = vmatprep.subr.bf16.mxu0 %v3884
    %4072 = vmatpush1.bf16.msra.mxu0 %v3883
    %4073 = vmatprep.subr.bf16.mxu0 %v3896
    %4074 = vmatpush1.bf16.msra.mxu0 %v3895
    %4075 = vmatprep.subr.bf16.mxu0 %v3908
    %4076 = vmatpush1.bf16.msra.mxu0 %v3907
    %4077 = vmatprep.subr.bf16.mxu0 %v3920
    %4078 = vmatpush1.bf16.msra.mxu0 %v3919
    %4079 = vmatprep.subr.bf16.mxu0 %v3932
    %4080 = vmatpush1.bf16.msra.mxu0 %v3931
    %4081 = vmatprep.subr.bf16.mxu0 %v3944
    %4082 = vmatpush1.bf16.msra.mxu0 %v3943
    %4083 = vmatprep.mubr.bf16.mxu0 0
    %4084 = vmatmul.mubr.bf16.gmra.mrb[0].mxu0 0
    %v4085 = vpop.f32.mrb[0].mxu0
    %v4086 = vadd.f32 0.0, %v4085
    %v4087 = vpop.f32.mrb[0].mxu0
    %v4088 = vadd.f32 0.0, %v4087
    %v4089 = vpop.f32.mrb[0].mxu0
    %v4090 = vpop.f32.mrb[0].mxu0
    %4091 = vdwg.mxu0
    %4092 = vmatprep.subr.bf16.mxu0 %v3956
    %4093 = vmatpush1.bf16.msra.mxu0 %v3955
    %4094 = vmatprep.subr.bf16.mxu0 %v3968
    %4095 = vmatpush1.bf16.msra.mxu0 %v3967
    %4096 = vmatprep.subr.bf16.mxu0 %v3980
    %4097 = vmatpush1.bf16.msra.mxu0 %v3979
    %4098 = vmatprep.subr.bf16.mxu0 %v3992
    %4099 = vmatpush1.bf16.msra.mxu0 %v3991
    %4100 = vmatprep.subr.bf16.mxu0 %v4004
    %4101 = vmatpush1.bf16.msra.mxu0 %v4003
    %4102 = vmatprep.subr.bf16.mxu0 %v4016
    %4103 = vmatpush1.bf16.msra.mxu0 %v4015
    %4104 = vmatprep.subr.bf16.mxu0 %v4028
    %4105 = vmatpush1.bf16.msra.mxu0 %v4027
    %4106 = vmatprep.subr.bf16.mxu0 %v4040
    %4107 = vmatpush1.bf16.msra.mxu0 %v4039
    %4108 = vmatprep.subr.bf16.mxu0 0
    %4109 = vmatpush1.bf16.msra.mxu0 0
    %4110 = vmatprep.subr.bf16.mxu0 0
    %4111 = vmatpush1.bf16.msra.mxu0 0
    %4112 = vmatprep.subr.bf16.mxu0 0
    %4113 = vmatpush1.bf16.msra.mxu0 0
    %4114 = vmatprep.subr.bf16.mxu0 0
    %4115 = vmatpush1.bf16.msra.mxu0 0
    %4116 = vmatprep.subr.bf16.mxu0 0
    %4117 = vmatpush1.bf16.msra.mxu0 0
    %4118 = vmatprep.subr.bf16.mxu0 0
    %4119 = vmatpush1.bf16.msra.mxu0 0
    %4120 = vmatprep.subr.bf16.mxu0 0
    %4121 = vmatpush1.bf16.msra.mxu0 0
    %4122 = vmatprep.subr.bf16.mxu0 0
    %4123 = vmatpush1.bf16.msra.mxu0 0
    %4124 = vmatprep.mubr.bf16.mxu0 0
    %4125 = vmatmul.mubr.bf16.gmra.mrb[0].mxu0 0
    %v4126 = vpop.f32.mrb[0].mxu0
    %v4127 = vadd.f32 %v4086, %v4126
    %v4128 = vpop.f32.mrb[0].mxu0
    %v4129 = vadd.f32 %v4088, %v4128
    %v4130 = vpop.f32.mrb[0].mxu0
    %v4131 = vpop.f32.mrb[0].mxu0
    %4132 = vdwg.mxu0
    %4133 = vmatprep.subr.bf16.mxu0 %v3766
    %4134 = vmatpush1.bf16.msra.mxu0 %v3765
    %4135 = vmatprep.subr.bf16.mxu0 %v3778
    %4136 = vmatpush1.bf16.msra.mxu0 %v3777
    %4137 = vmatprep.subr.bf16.mxu0 %v3790
    %4138 = vmatpush1.bf16.msra.mxu0 %v3789
    %4139 = vmatprep.subr.bf16.mxu0 %v3802
    %4140 = vmatpush1.bf16.msra.mxu0 %v3801
    %4141 = vmatprep.subr.bf16.mxu0 %v3814
    %4142 = vmatpush1.bf16.msra.mxu0 %v3813
    %4143 = vmatprep.subr.bf16.mxu0 %v3826
    %4144 = vmatpush1.bf16.msra.mxu0 %v3825
    %4145 = vmatprep.subr.bf16.mxu0 %v3838
    %4146 = vmatpush1.bf16.msra.mxu0 %v3837
    %4147 = vmatprep.subr.bf16.mxu0 %v3850
    %4148 = vmatpush1.bf16.msra.mxu0 %v3849
    %4149 = vmatprep.subr.bf16.mxu0 %v3862
    %4150 = vmatpush1.bf16.msra.mxu0 %v3861
    %4151 = vmatprep.subr.bf16.mxu0 %v3874
    %4152 = vmatpush1.bf16.msra.mxu0 %v3873
    %4153 = vmatprep.subr.bf16.mxu0 %v3886
    %4154 = vmatpush1.bf16.msra.mxu0 %v3885
    %4155 = vmatprep.subr.bf16.mxu0 %v3898
    %4156 = vmatpush1.bf16.msra.mxu0 %v3897
    %4157 = vmatprep.subr.bf16.mxu0 %v3910
    %4158 = vmatpush1.bf16.msra.mxu0 %v3909
    %4159 = vmatprep.subr.bf16.mxu0 %v3922
    %4160 = vmatpush1.bf16.msra.mxu0 %v3921
    %4161 = vmatprep.subr.bf16.mxu0 %v3934
    %4162 = vmatpush1.bf16.msra.mxu0 %v3933
    %4163 = vmatprep.subr.bf16.mxu0 %v3946
    %4164 = vmatpush1.bf16.msra.mxu0 %v3945
    %4165 = vmatprep.mubr.bf16.mxu0 0
    %4166 = vmatmul.mubr.bf16.gmra.mrb[0].mxu0 0
    %v4167 = vpop.f32.mrb[0].mxu0
    %v4168 = vadd.f32 0.0, %v4167
    %v4169 = vpop.f32.mrb[0].mxu0
    %v4170 = vadd.f32 0.0, %v4169
    %v4171 = vpop.f32.mrb[0].mxu0
    %v4172 = vpop.f32.mrb[0].mxu0
    %4173 = vdwg.mxu0
    %4174 = vmatprep.subr.bf16.mxu0 %v3958
    %4175 = vmatpush1.bf16.msra.mxu0 %v3957
    %4176 = vmatprep.subr.bf16.mxu0 %v3970
    %4177 = vmatpush1.bf16.msra.mxu0 %v3969
    %4178 = vmatprep.subr.bf16.mxu0 %v3982
    %4179 = vmatpush1.bf16.msra.mxu0 %v3981
    %4180 = vmatprep.subr.bf16.mxu0 %v3994
    %4181 = vmatpush1.bf16.msra.mxu0 %v3993
    %4182 = vmatprep.subr.bf16.mxu0 %v4006
    %4183 = vmatpush1.bf16.msra.mxu0 %v4005
    %4184 = vmatprep.subr.bf16.mxu0 %v4018
    %4185 = vmatpush1.bf16.msra.mxu0 %v4017
    %4186 = vmatprep.subr.bf16.mxu0 %v4030
    %4187 = vmatpush1.bf16.msra.mxu0 %v4029
    %4188 = vmatprep.subr.bf16.mxu0 %v4042
    %4189 = vmatpush1.bf16.msra.mxu0 %v4041
    %4190 = vmatprep.subr.bf16.mxu0 0
    %4191 = vmatpush1.bf16.msra.mxu0 0
    %4192 = vmatprep.subr.bf16.mxu0 0
    %4193 = vmatpush1.bf16.msra.mxu0 0
    %4194 = vmatprep.subr.bf16.mxu0 0
    %4195 = vmatpush1.bf16.msra.mxu0 0
    %4196 = vmatprep.subr.bf16.mxu0 0
    %4197 = vmatpush1.bf16.msra.mxu0 0
    %4198 = vmatprep.subr.bf16.mxu0 0
    %4199 = vmatpush1.bf16.msra.mxu0 0
    %4200 = vmatprep.subr.bf16.mxu0 0
    %4201 = vmatpush1.bf16.msra.mxu0 0
    %4202 = vmatprep.subr.bf16.mxu0 0
    %4203 = vmatpush1.bf16.msra.mxu0 0
    %4204 = vmatprep.subr.bf16.mxu0 0
    %4205 = vmatpush1.bf16.msra.mxu0 0
    %4206 = vmatprep.mubr.bf16.mxu0 0
    %4207 = vmatmul.mubr.bf16.gmra.mrb[0].mxu0 0
    %v4208 = vpop.f32.mrb[0].mxu0
    %v4209 = vadd.f32 %v4168, %v4208
    %v4210 = vpop.f32.mrb[0].mxu0
    %v4211 = vadd.f32 %v4170, %v4210
    %v4212 = vpop.f32.mrb[0].mxu0
    %v4213 = vpop.f32.mrb[0].mxu0
    %4214 = vdwg.mxu0
    %4215 = vmatprep.subr.bf16.mxu0 %v3768
    %4216 = vmatpush1.bf16.msra.mxu0 %v3767
    %4217 = vmatprep.subr.bf16.mxu0 %v3780
    %4218 = vmatpush1.bf16.msra.mxu0 %v3779
    %4219 = vmatprep.subr.bf16.mxu0 %v3792
    %4220 = vmatpush1.bf16.msra.mxu0 %v3791
    %4221 = vmatprep.subr.bf16.mxu0 %v3804
    %4222 = vmatpush1.bf16.msra.mxu0 %v3803
    %4223 = vmatprep.subr.bf16.mxu0 %v3816
    %4224 = vmatpush1.bf16.msra.mxu0 %v3815
    %4225 = vmatprep.subr.bf16.mxu0 %v3828
    %4226 = vmatpush1.bf16.msra.mxu0 %v3827
    %4227 = vmatprep.subr.bf16.mxu0 %v3840
    %4228 = vmatpush1.bf16.msra.mxu0 %v3839
    %4229 = vmatprep.subr.bf16.mxu0 %v3852
    %4230 = vmatpush1.bf16.msra.mxu0 %v3851
    %4231 = vmatprep.subr.bf16.mxu0 %v3864
    %4232 = vmatpush1.bf16.msra.mxu0 %v3863
    %4233 = vmatprep.subr.bf16.mxu0 %v3876
    %4234 = vmatpush1.bf16.msra.mxu0 %v3875
    %4235 = vmatprep.subr.bf16.mxu0 %v3888
    %4236 = vmatpush1.bf16.msra.mxu0 %v3887
    %4237 = vmatprep.subr.bf16.mxu0 %v3900
    %4238 = vmatpush1.bf16.msra.mxu0 %v3899
    %4239 = vmatprep.subr.bf16.mxu0 %v3912
    %4240 = vmatpush1.bf16.msra.mxu0 %v3911
    %4241 = vmatprep.subr.bf16.mxu0 %v3924
    %4242 = vmatpush1.bf16.msra.mxu0 %v3923
    %4243 = vmatprep.subr.bf16.mxu0 %v3936
    %4244 = vmatpush1.bf16.msra.mxu0 %v3935
    %4245 = vmatprep.subr.bf16.mxu0 %v3948
    %4246 = vmatpush1.bf16.msra.mxu0 %v3947
    %4247 = vmatprep.mubr.bf16.mxu0 0
    %4248 = vmatmul.mubr.bf16.gmra.mrb[0].mxu0 0
    %v4249 = vpop.f32.mrb[0].mxu0
    %v4250 = vadd.f32 0.0, %v4249
    %v4251 = vpop.f32.mrb[0].mxu0
    %v4252 = vadd.f32 0.0, %v4251
    %v4253 = vpop.f32.mrb[0].mxu0
    %v4254 = vpop.f32.mrb[0].mxu0
    %4255 = vdwg.mxu0
    %4256 = vmatprep.subr.bf16.mxu0 %v3960
    %4257 = vmatpush1.bf16.msra.mxu0 %v3959
    %4258 = vmatprep.subr.bf16.mxu0 %v3972
    %4259 = vmatpush1.bf16.msra.mxu0 %v3971
    %4260 = vmatprep.subr.bf16.mxu0 %v3984
    %4261 = vmatpush1.bf16.msra.mxu0 %v3983
    %4262 = vmatprep.subr.bf16.mxu0 %v3996
    %4263 = vmatpush1.bf16.msra.mxu0 %v3995
    %4264 = vmatprep.subr.bf16.mxu0 %v4008
    %4265 = vmatpush1.bf16.msra.mxu0 %v4007
    %4266 = vmatprep.subr.bf16.mxu0 %v4020
    %4267 = vmatpush1.bf16.msra.mxu0 %v4019
    %4268 = vmatprep.subr.bf16.mxu0 %v4032
    %4269 = vmatpush1.bf16.msra.mxu0 %v4031
    %4270 = vmatprep.subr.bf16.mxu0 %v4044
    %4271 = vmatpush1.bf16.msra.mxu0 %v4043
    %4272 = vmatprep.subr.bf16.mxu0 0
    %4273 = vmatpush1.bf16.msra.mxu0 0
    %4274 = vmatprep.subr.bf16.mxu0 0
    %4275 = vmatpush1.bf16.msra.mxu0 0
    %4276 = vmatprep.subr.bf16.mxu0 0
    %4277 = vmatpush1.bf16.msra.mxu0 0
    %4278 = vmatprep.subr.bf16.mxu0 0
    %4279 = vmatpush1.bf16.msra.mxu0 0
    %4280 = vmatprep.subr.bf16.mxu0 0
    %4281 = vmatpush1.bf16.msra.mxu0 0
    %4282 = vmatprep.subr.bf16.mxu0 0
    %4283 = vmatpush1.bf16.msra.mxu0 0
    %4284 = vmatprep.subr.bf16.mxu0 0
    %4285 = vmatpush1.bf16.msra.mxu0 0
    %4286 = vmatprep.subr.bf16.mxu0 0
    %4287 = vmatpush1.bf16.msra.mxu0 0
    %4288 = vmatprep.mubr.bf16.mxu0 0
    %4289 = vmatmul.mubr.bf16.gmra.mrb[0].mxu0 0
    %v4290 = vpop.f32.mrb[0].mxu0
    %v4291 = vadd.f32 %v4250, %v4290
    %v4292 = vpop.f32.mrb[0].mxu0
    %v4293 = vadd.f32 %v4252, %v4292
    %v4294 = vpop.f32.mrb[0].mxu0
    %v4295 = vpop.f32.mrb[0].mxu0
    %4296 = vdwg.mxu0
    %4297 = vmatprep.subr.bf16.mxu0 %v3770
    %4298 = vmatpush1.bf16.msra.mxu0 %v3769
    %4299 = vmatprep.subr.bf16.mxu0 %v3782
    %4300 = vmatpush1.bf16.msra.mxu0 %v3781
    %4301 = vmatprep.subr.bf16.mxu0 %v3794
    %4302 = vmatpush1.bf16.msra.mxu0 %v3793
    %4303 = vmatprep.subr.bf16.mxu0 %v3806
    %4304 = vmatpush1.bf16.msra.mxu0 %v3805
    %4305 = vmatprep.subr.bf16.mxu0 %v3818
    %4306 = vmatpush1.bf16.msra.mxu0 %v3817
    %4307 = vmatprep.subr.bf16.mxu0 %v3830
    %4308 = vmatpush1.bf16.msra.mxu0 %v3829
    %4309 = vmatprep.subr.bf16.mxu0 %v3842
    %4310 = vmatpush1.bf16.msra.mxu0 %v3841
    %4311 = vmatprep.subr.bf16.mxu0 %v3854
    %4312 = vmatpush1.bf16.msra.mxu0 %v3853
    %4313 = vmatprep.subr.bf16.mxu0 %v3866
    %4314 = vmatpush1.bf16.msra.mxu0 %v3865
    %4315 = vmatprep.subr.bf16.mxu0 %v3878
    %4316 = vmatpush1.bf16.msra.mxu0 %v3877
    %4317 = vmatprep.subr.bf16.mxu0 %v3890
    %4318 = vmatpush1.bf16.msra.mxu0 %v3889
    %4319 = vmatprep.subr.bf16.mxu0 %v3902
    %4320 = vmatpush1.bf16.msra.mxu0 %v3901
    %4321 = vmatprep.subr.bf16.mxu0 %v3914
    %4322 = vmatpush1.bf16.msra.mxu0 %v3913
    %4323 = vmatprep.subr.bf16.mxu0 %v3926
    %4324 = vmatpush1.bf16.msra.mxu0 %v3925
    %4325 = vmatprep.subr.bf16.mxu0 %v3938
    %4326 = vmatpush1.bf16.msra.mxu0 %v3937
    %4327 = vmatprep.subr.bf16.mxu0 %v3950
    %4328 = vmatpush1.bf16.msra.mxu0 %v3949
    %4329 = vmatprep.mubr.bf16.mxu0 0
    %4330 = vmatmul.mubr.bf16.gmra.mrb[0].mxu0 0
    %v4331 = vpop.f32.mrb[0].mxu0
    %v4332 = vadd.f32 0.0, %v4331
    %v4333 = vpop.f32.mrb[0].mxu0
    %v4334 = vadd.f32 0.0, %v4333
    %v4335 = vpop.f32.mrb[0].mxu0
    %v4336 = vpop.f32.mrb[0].mxu0
    %4337 = vdwg.mxu0
    %4338 = vmatprep.subr.bf16.mxu0 %v3962
    %4339 = vmatpush1.bf16.msra.mxu0 %v3961
    %4340 = vmatprep.subr.bf16.mxu0 %v3974
    %4341 = vmatpush1.bf16.msra.mxu0 %v3973
    %4342 = vmatprep.subr.bf16.mxu0 %v3986
    %4343 = vmatpush1.bf16.msra.mxu0 %v3985
    %4344 = vmatprep.subr.bf16.mxu0 %v3998
    %4345 = vmatpush1.bf16.msra.mxu0 %v3997
    %4346 = vmatprep.subr.bf16.mxu0 %v4010
    %4347 = vmatpush1.bf16.msra.mxu0 %v4009
    %4348 = vmatprep.subr.bf16.mxu0 %v4022
    %4349 = vmatpush1.bf16.msra.mxu0 %v4021
    %4350 = vmatprep.subr.bf16.mxu0 %v4034
    %4351 = vmatpush1.bf16.msra.mxu0 %v4033
    %4352 = vmatprep.subr.bf16.mxu0 %v4046
    %4353 = vmatpush1.bf16.msra.mxu0 %v4045
    %4354 = vmatprep.subr.bf16.mxu0 0
    %4355 = vmatpush1.bf16.msra.mxu0 0
    %4356 = vmatprep.subr.bf16.mxu0 0
    %4357 = vmatpush1.bf16.msra.mxu0 0
    %4358 = vmatprep.subr.bf16.mxu0 0
    %4359 = vmatpush1.bf16.msra.mxu0 0
    %4360 = vmatprep.subr.bf16.mxu0 0
    %4361 = vmatpush1.bf16.msra.mxu0 0
    %4362 = vmatprep.subr.bf16.mxu0 0
    %4363 = vmatpush1.bf16.msra.mxu0 0
    %4364 = vmatprep.subr.bf16.mxu0 0
    %4365 = vmatpush1.bf16.msra.mxu0 0
    %4366 = vmatprep.subr.bf16.mxu0 0
    %4367 = vmatpush1.bf16.msra.mxu0 0
    %4368 = vmatprep.subr.bf16.mxu0 0
    %4369 = vmatpush1.bf16.msra.mxu0 0
    %4370 = vmatprep.mubr.bf16.mxu0 0
    %4371 = vmatmul.mubr.bf16.gmra.mrb[0].mxu0 0
    %v4372 = vpop.f32.mrb[0].mxu0
    %v4373 = vadd.f32 %v4332, %v4372
    %v4374 = vpop.f32.mrb[0].mxu0
    %v4375 = vadd.f32 %v4334, %v4374
    %v4376 = vpop.f32.mrb[0].mxu0
    %v4377 = vpop.f32.mrb[0].mxu0
    %4378 = vdwg.mxu0
    %4379 = vmatprep.subr.bf16.mxu0 %v3772
    %4380 = vmatpush1.bf16.msra.mxu0 %v3771
    %4381 = vmatprep.subr.bf16.mxu0 %v3784
    %4382 = vmatpush1.bf16.msra.mxu0 %v3783
    %4383 = vmatprep.subr.bf16.mxu0 %v3796
    %4384 = vmatpush1.bf16.msra.mxu0 %v3795
    %4385 = vmatprep.subr.bf16.mxu0 %v3808
    %4386 = vmatpush1.bf16.msra.mxu0 %v3807
    %4387 = vmatprep.subr.bf16.mxu0 %v3820
    %4388 = vmatpush1.bf16.msra.mxu0 %v3819
    %4389 = vmatprep.subr.bf16.mxu0 %v3832
    %4390 = vmatpush1.bf16.msra.mxu0 %v3831
    %4391 = vmatprep.subr.bf16.mxu0 %v3844
    %4392 = vmatpush1.bf16.msra.mxu0 %v3843
    %4393 = vmatprep.subr.bf16.mxu0 %v3856
    %4394 = vmatpush1.bf16.msra.mxu0 %v3855
    %4395 = vmatprep.subr.bf16.mxu0 %v3868
    %4396 = vmatpush1.bf16.msra.mxu0 %v3867
    %4397 = vmatprep.subr.bf16.mxu0 %v3880
    %4398 = vmatpush1.bf16.msra.mxu0 %v3879
    %4399 = vmatprep.subr.bf16.mxu0 %v3892
    %4400 = vmatpush1.bf16.msra.mxu0 %v3891
    %4401 = vmatprep.subr.bf16.mxu0 %v3904
    %4402 = vmatpush1.bf16.msra.mxu0 %v3903
    %4403 = vmatprep.subr.bf16.mxu0 %v3916
    %4404 = vmatpush1.bf16.msra.mxu0 %v3915
    %4405 = vmatprep.subr.bf16.mxu0 %v3928
    %4406 = vmatpush1.bf16.msra.mxu0 %v3927
    %4407 = vmatprep.subr.bf16.mxu0 %v3940
    %4408 = vmatpush1.bf16.msra.mxu0 %v3939
    %4409 = vmatprep.subr.bf16.mxu0 %v3952
    %4410 = vmatpush1.bf16.msra.mxu0 %v3951
    %4411 = vmatprep.mubr.bf16.mxu0 0
    %4412 = vmatmul.mubr.bf16.gmra.mrb[0].mxu0 0
    %v4413 = vpop.f32.mrb[0].mxu0
    %v4414 = vadd.f32 0.0, %v4413
    %v4415 = vpop.f32.mrb[0].mxu0
    %v4416 = vadd.f32 0.0, %v4415
    %v4417 = vpop.f32.mrb[0].mxu0
    %v4418 = vpop.f32.mrb[0].mxu0
    %4419 = vdwg.mxu0
    %4420 = vmatprep.subr.bf16.mxu0 %v3964
    %4421 = vmatpush1.bf16.msra.mxu0 %v3963
    %4422 = vmatprep.subr.bf16.mxu0 %v3976
    %4423 = vmatpush1.bf16.msra.mxu0 %v3975
    %4424 = vmatprep.subr.bf16.mxu0 %v3988
    %4425 = vmatpush1.bf16.msra.mxu0 %v3987
    %4426 = vmatprep.subr.bf16.mxu0 %v4000
    %4427 = vmatpush1.bf16.msra.mxu0 %v3999
    %4428 = vmatprep.subr.bf16.mxu0 %v4012
    %4429 = vmatpush1.bf16.msra.mxu0 %v4011
    %4430 = vmatprep.subr.bf16.mxu0 %v4024
    %4431 = vmatpush1.bf16.msra.mxu0 %v4023
    %4432 = vmatprep.subr.bf16.mxu0 %v4036
    %4433 = vmatpush1.bf16.msra.mxu0 %v4035
    %4434 = vmatprep.subr.bf16.mxu0 %v4048
    %4435 = vmatpush1.bf16.msra.mxu0 %v4047
    %4436 = vmatprep.subr.bf16.mxu0 0
    %4437 = vmatpush1.bf16.msra.mxu0 0
    %4438 = vmatprep.subr.bf16.mxu0 0
    %4439 = vmatpush1.bf16.msra.mxu0 0
    %4440 = vmatprep.subr.bf16.mxu0 0
    %4441 = vmatpush1.bf16.msra.mxu0 0
    %4442 = vmatprep.subr.bf16.mxu0 0
    %4443 = vmatpush1.bf16.msra.mxu0 0
    %4444 = vmatprep.subr.bf16.mxu0 0
    %4445 = vmatpush1.bf16.msra.mxu0 0
    %4446 = vmatprep.subr.bf16.mxu0 0
    %4447 = vmatpush1.bf16.msra.mxu0 0
    %4448 = vmatprep.subr.bf16.mxu0 0
    %4449 = vmatpush1.bf16.msra.mxu0 0
    %4450 = vmatprep.subr.bf16.mxu0 0
    %4451 = vmatpush1.bf16.msra.mxu0 0
    %4452 = vmatprep.mubr.bf16.mxu0 0
    %4453 = vmatmul.mubr.bf16.gmra.mrb[0].mxu0 0
    %v4454 = vpop.f32.mrb[0].mxu0
    %v4455 = vadd.f32 %v4414, %v4454
    %v4456 = vpop.f32.mrb[0].mxu0
    %v4457 = vadd.f32 %v4416, %v4456
    %v4458 = vpop.f32.mrb[0].mxu0
    %v4459 = vpop.f32.mrb[0].mxu0
    %4460 = vdwg.mxu0
    %4461 = vmatprep.subr.bf16.mxu0 %v3774
    %4462 = vmatpush1.bf16.msra.mxu0 %v3773
    %4463 = vmatprep.subr.bf16.mxu0 %v3786
    %4464 = vmatpush1.bf16.msra.mxu0 %v3785
    %4465 = vmatprep.subr.bf16.mxu0 %v3798
    %4466 = vmatpush1.bf16.msra.mxu0 %v3797
    %4467 = vmatprep.subr.bf16.mxu0 %v3810
    %4468 = vmatpush1.bf16.msra.mxu0 %v3809
    %4469 = vmatprep.subr.bf16.mxu0 %v3822
    %4470 = vmatpush1.bf16.msra.mxu0 %v3821
    %4471 = vmatprep.subr.bf16.mxu0 %v3834
    %4472 = vmatpush1.bf16.msra.mxu0 %v3833
    %4473 = vmatprep.subr.bf16.mxu0 %v3846
    %4474 = vmatpush1.bf16.msra.mxu0 %v3845
    %4475 = vmatprep.subr.bf16.mxu0 %v3858
    %4476 = vmatpush1.bf16.msra.mxu0 %v3857
    %4477 = vmatprep.subr.bf16.mxu0 %v3870
    %4478 = vmatpush1.bf16.msra.mxu0 %v3869
    %4479 = vmatprep.subr.bf16.mxu0 %v3882
    %4480 = vmatpush1.bf16.msra.mxu0 %v3881
    %4481 = vmatprep.subr.bf16.mxu0 %v3894
    %4482 = vmatpush1.bf16.msra.mxu0 %v3893
    %4483 = vmatprep.subr.bf16.mxu0 %v3906
    %4484 = vmatpush1.bf16.msra.mxu0 %v3905
    %4485 = vmatprep.subr.bf16.mxu0 %v3918
    %4486 = vmatpush1.bf16.msra.mxu0 %v3917
    %4487 = vmatprep.subr.bf16.mxu0 %v3930
    %4488 = vmatpush1.bf16.msra.mxu0 %v3929
    %4489 = vmatprep.subr.bf16.mxu0 %v3942
    %4490 = vmatpush1.bf16.msra.mxu0 %v3941
    %4491 = vmatprep.subr.bf16.mxu0 %v3954
    %4492 = vmatpush1.bf16.msra.mxu0 %v3953
    %4493 = vmatprep.mubr.bf16.mxu0 0
    %4494 = vmatmul.mubr.bf16.gmra.mrb[0].mxu0 0
    %v4495 = vpop.f32.mrb[0].mxu0
    %v4496 = vadd.f32 0.0, %v4495
    %v4497 = vpop.f32.mrb[0].mxu0
    %v4498 = vadd.f32 0.0, %v4497
    %v4499 = vpop.f32.mrb[0].mxu0
    %v4500 = vpop.f32.mrb[0].mxu0
    %4501 = vdwg.mxu0
    %4502 = vmatprep.subr.bf16.mxu0 %v3966
    %4503 = vmatpush1.bf16.msra.mxu0 %v3965
    %4504 = vmatprep.subr.bf16.mxu0 %v3978
    %4505 = vmatpush1.bf16.msra.mxu0 %v3977
    %4506 = vmatprep.subr.bf16.mxu0 %v3990
    %4507 = vmatpush1.bf16.msra.mxu0 %v3989
    %4508 = vmatprep.subr.bf16.mxu0 %v4002
    %4509 = vmatpush1.bf16.msra.mxu0 %v4001
    %4510 = vmatprep.subr.bf16.mxu0 %v4014
    %4511 = vmatpush1.bf16.msra.mxu0 %v4013
    %4512 = vmatprep.subr.bf16.mxu0 %v4026
    %4513 = vmatpush1.bf16.msra.mxu0 %v4025
    %4514 = vmatprep.subr.bf16.mxu0 %v4038
    %4515 = vmatpush1.bf16.msra.mxu0 %v4037
    %4516 = vmatprep.subr.bf16.mxu0 %v4050
    %4517 = vmatpush1.bf16.msra.mxu0 %v4049
    %4518 = vmatprep.subr.bf16.mxu0 0
    %4519 = vmatpush1.bf16.msra.mxu0 0
    %4520 = vmatprep.subr.bf16.mxu0 0
    %4521 = vmatpush1.bf16.msra.mxu0 0
    %4522 = vmatprep.subr.bf16.mxu0 0
    %4523 = vmatpush1.bf16.msra.mxu0 0
    %4524 = vmatprep.subr.bf16.mxu0 0
    %4525 = vmatpush1.bf16.msra.mxu0 0
    %4526 = vmatprep.subr.bf16.mxu0 0
    %4527 = vmatpush1.bf16.msra.mxu0 0
    %4528 = vmatprep.subr.bf16.mxu0 0
    %4529 = vmatpush1.bf16.msra.mxu0 0
    %4530 = vmatprep.subr.bf16.mxu0 0
    %4531 = vmatpush1.bf16.msra.mxu0 0
    %4532 = vmatprep.subr.bf16.mxu0 0
    %4533 = vmatpush1.bf16.msra.mxu0 0
    %4534 = vmatprep.mubr.bf16.mxu0 0
    %4535 = vmatmul.mubr.bf16.gmra.mrb[0].mxu0 0
    %v4536 = vpop.f32.mrb[0].mxu0
    %v4537 = vadd.f32 %v4496, %v4536
    %v4538 = vpop.f32.mrb[0].mxu0
    %v4539 = vadd.f32 %v4498, %v4538
    %v4540 = vpop.f32.mrb[0].mxu0
    %v4541 = vpop.f32.mrb[0].mxu0
    %4542 = vdwg.mxu0
    %v4543 = vadd.f32 %v3751, %v4127
    %v4544 = vadd.f32 %v3752, %v4129
    %v4545 = vadd.f32 %v3753, %v4209
    %v4546 = vadd.f32 %v3754, %v4211
    %v4547 = vadd.f32 %v3755, %v4291
    %v4548 = vadd.f32 %v3756, %v4293
    %v4549 = vadd.f32 %v3757, %v4373
    %v4550 = vadd.f32 %v3758, %v4375
    %v4551 = vadd.f32 %v3759, %v4455
    %v4552 = vadd.f32 %v3760, %v4457
    %v4553 = vadd.f32 %v3761, %v4537
    %v4554 = vadd.f32 %v3762, %v4539
    %v4555 = vxor.u32 %v4543, 2147483648
    %v4556 = vxor.u32 %v4544, 2147483648
    %v4557 = vxor.u32 %v4545, 2147483648
    %v4558 = vmul.f32 %v4555, 1.442695
    %v4559 = vpow.pop %v4558
    %v4560 = vmul.f32 %v4556, 1.442695
    %v4561 = vpow.pop %v4560
    %v4562 = vmul.f32 %v4557, 1.442695
    %v4563 = vpow.pop %v4562
    %v4564 = vadd.f32 %v4559, 1.0
    %v4565 = vadd.f32 %v4561, 1.0
    %v4566 = vadd.f32 %v4563, 1.0
    %v4567 = vrcp.pop %v4564
    %v4568 = vmul.f32 1.0, %v4567
    %v4569 = vrcp.pop %v4565
    %v4570 = vmul.f32 1.0, %v4569
    %v4571 = vrcp.pop %v4566
    %v4572 = vmul.f32 1.0, %v4571
    %v4573 = vxor.u32 %v4546, 2147483648
    %v4574 = vxor.u32 %v4547, 2147483648
    %v4575 = vxor.u32 %v4548, 2147483648
    %v4576 = vmul.f32 %v4573, 1.442695
    %v4577 = vpow.pop %v4576
    %v4578 = vmul.f32 %v4574, 1.442695
    %v4579 = vpow.pop %v4578
    %v4580 = vmul.f32 %v4575, 1.442695
    %v4581 = vpow.pop %v4580
    %v4582 = vadd.f32 %v4577, 1.0
    %v4583 = vadd.f32 %v4579, 1.0
    %v4584 = vadd.f32 %v4581, 1.0
    %v4585 = vrcp.pop %v4582
    %v4586 = vmul.f32 1.0, %v4585
    %v4587 = vrcp.pop %v4583
    %v4588 = vmul.f32 1.0, %v4587
    %v4589 = vrcp.pop %v4584
    %v4590 = vmul.f32 1.0, %v4589
    %v4591 = vtanh.pop %v4549
    %v4592 = vtanh.pop %v4550
    %v4593 = vtanh.pop %v4551
    %v4594 = vxor.u32 %v4552, 2147483648
    %v4595 = vxor.u32 %v4553, 2147483648
    %v4596 = vxor.u32 %v4554, 2147483648
    %v4597 = vmul.f32 %v4594, 1.442695
    %v4598 = vpow.pop %v4597
    %v4599 = vmul.f32 %v4595, 1.442695
    %v4600 = vpow.pop %v4599
    %v4601 = vmul.f32 %v4596, 1.442695
    %v4602 = vpow.pop %v4601
    %v4603 = vadd.f32 %v4598, 1.0
    %v4604 = vadd.f32 %v4600, 1.0
    %v4605 = vadd.f32 %v4602, 1.0
    %v4606 = vrcp.pop %v4603
    %v4607 = vmul.f32 1.0, %v4606
    %v4608 = vrcp.pop %v4604
    %v4609 = vmul.f32 1.0, %v4608
    %v4610 = vrcp.pop %v4605
    %v4611 = vmul.f32 1.0, %v4610
    %v4612 = vmul.f32 %v4586, 0.0
    %v4613 = vmul.f32 %v4588, 0.0
    %v4614 = vmul.f32 %v4590, 0.0
    %v4615 = vmul.f32 %v4568, %v4591
    %v4616 = vmul.f32 %v4570, %v4592
    %v4617 = vmul.f32 %v4572, %v4593
    %v4618 = vadd.f32 %v4612, %v4615
    %v4619 = vadd.f32 %v4613, %v4616
    %v4620 = vadd.f32 %v4614, %v4617
    %v4621 = vtanh.pop %v4618
    %v4622 = vtanh.pop %v4619
    %v4623 = vtanh.pop %v4620
    %v4624 = vmul.f32 %v4607, %v4621
    %v4625 = vmul.f32 %v4609, %v4622
    %v4626 = vmul.f32 %v4611, %v4623
    %v4627 = vpack.c.bf16 %v4624, %v4624
    %v4628 = vpack.c.bf16 %v4625, %v4625
    %v4629 = vpack.c.bf16 %v4626, %v4626
    %v4630 = vld [vmem:[#allocation19] sm:$0xf]
    %v4631 = vld [vmem:[#allocation19 + $0x4] sm:$0xf]
    %v4632 = vld [vmem:[#allocation19 + $0x8] sm:$0xf]
    %v4633 = vld [vmem:[#allocation19 + $0xc] sm:$0xf]
    %v4634 = vld [vmem:[#allocation19 + $0x10] sm:$0xf]
    %v4635 = vld [vmem:[#allocation19 + $0x14] sm:$0xf]
    %v4636 = vld [vmem:[#allocation19 + $0x18] sm:$0xf]
    %v4637 = vld [vmem:[#allocation19 + $0x1c] sm:$0xf]
    %v4638 = vld [vmem:[#allocation19 + $0x20] sm:$0xf]
    %v4639 = vld [vmem:[#allocation19 + $0x24] sm:$0xf]
    %v4640 = vld [vmem:[#allocation19 + $0x28] sm:$0xf]
    %v4641 = vld [vmem:[#allocation19 + $0x2c] sm:$0xf]
    %v4642 = vld [vmem:[#allocation19 + $0x30] sm:$0xf]
    %v4643 = vld [vmem:[#allocation19 + $0x34] sm:$0xf]
    %v4644 = vld [vmem:[#allocation19 + $0x38] sm:$0xf]
    %v4645 = vld [vmem:[#allocation19 + $0x3c] sm:$0xf]
    %v4646 = vld [vmem:[#allocation19 + $0x40] sm:$0xf]
    %v4647 = vld [vmem:[#allocation19 + $0x44] sm:$0xf]
    %v4648 = vld [vmem:[#allocation19 + $0x48] sm:$0xf]
    %v4649 = vld [vmem:[#allocation19 + $0x4c] sm:$0xf]
    %v4650 = vld [vmem:[#allocation19 + $0x50] sm:$0xf]
    %v4651 = vld [vmem:[#allocation19 + $0x54] sm:$0xf]
    %v4652 = vld [vmem:[#allocation19 + $0x58] sm:$0xf]
    %v4653 = vld [vmem:[#allocation19 + $0x5c] sm:$0xf]
    %v4654 = vld [vmem:[#allocation19 + $0x60] sm:$0xf]
    %v4655 = vld [vmem:[#allocation19 + $0x64] sm:$0xf]
    %v4656 = vld [vmem:[#allocation19 + $0x68] sm:$0xf]
    %v4657 = vld [vmem:[#allocation19 + $0x6c] sm:$0xf]
    %v4658 = vld [vmem:[#allocation19 + $0x70] sm:$0xf]
    %v4659 = vld [vmem:[#allocation19 + $0x74] sm:$0xf]
    %v4660 = vld [vmem:[#allocation19 + $0x78] sm:$0xf]
    %v4661 = vld [vmem:[#allocation19 + $0x7c] sm:$0xf]
    %v4662 = vld [vmem:[#allocation19 + $0x80] sm:$0xf]
    %v4663 = vld [vmem:[#allocation19 + $0x84] sm:$0xf]
    %v4664 = vld [vmem:[#allocation19 + $0x88] sm:$0xf]
    %v4665 = vld [vmem:[#allocation19 + $0x8c] sm:$0xf]
    %v4666 = vld [vmem:[#allocation19 + $0x90] sm:$0xf]
    %v4667 = vld [vmem:[#allocation19 + $0x94] sm:$0xf]
    %v4668 = vld [vmem:[#allocation19 + $0x98] sm:$0xf]
    %v4669 = vld [vmem:[#allocation19 + $0x9c] sm:$0xf]
    %v4670 = vld [vmem:[#allocation19 + $0xa0] sm:$0xf]
    %v4671 = vld [vmem:[#allocation19 + $0xa4] sm:$0xf]
    %v4672 = vld [vmem:[#allocation19 + $0xa8] sm:$0xf]
    %v4673 = vld [vmem:[#allocation19 + $0xac] sm:$0xf]
    %v4674 = vld [vmem:[#allocation19 + $0xb0] sm:$0xf]
    %v4675 = vld [vmem:[#allocation19 + $0xb4] sm:$0xf]
    %v4676 = vld [vmem:[#allocation19 + $0xb8] sm:$0xf]
    %v4677 = vld [vmem:[#allocation19 + $0xbc] sm:$0xf]
    %v4678 = vld [vmem:[#allocation21] sm:$0x1]
    %v4680 = vlaneseq
    %v4681 = vshrl.u32 %v4680, 7
    %v4682 = vsub.s32 0, %v4681
    %v4683 = vrot.slane %v4678, %v4682
    %v4733 = vunpack.c.l.b16 %v4630
    %v4734 = vunpack.c.l.b16 %v4631
    %v4735 = vunpack.c.l.b16 %v4632
    %v4736 = vunpack.c.l.b16 %v4633
    %v4737 = vunpack.c.l.b16 %v4634
    %v4738 = vunpack.c.l.b16 %v4635
    %v4739 = vunpack.c.l.b16 %v4636
    %v4740 = vunpack.c.l.b16 %v4637
    %v4741 = vunpack.c.l.b16 %v4638
    %v4742 = vunpack.c.l.b16 %v4639
    %v4743 = vunpack.c.l.b16 %v4640
    %v4744 = vunpack.c.l.b16 %v4641
    %v4745 = vunpack.c.l.b16 %v4642
    %v4746 = vunpack.c.l.b16 %v4643
    %v4747 = vunpack.c.l.b16 %v4644
    %v4748 = vunpack.c.l.b16 %v4645
    %v4749 = vunpack.c.l.b16 %v4646
    %v4750 = vunpack.c.l.b16 %v4647
    %v4751 = vunpack.c.l.b16 %v4648
    %v4752 = vunpack.c.l.b16 %v4649
    %v4753 = vunpack.c.l.b16 %v4650
    %v4754 = vunpack.c.l.b16 %v4651
    %v4755 = vunpack.c.l.b16 %v4652
    %v4756 = vunpack.c.l.b16 %v4653
    %v4757 = vunpack.c.l.b16 %v4654
    %v4758 = vunpack.c.l.b16 %v4655
    %v4759 = vunpack.c.l.b16 %v4656
    %v4760 = vunpack.c.l.b16 %v4657
    %v4761 = vunpack.c.l.b16 %v4658
    %v4762 = vunpack.c.l.b16 %v4659
    %v4763 = vunpack.c.l.b16 %v4660
    %v4764 = vunpack.c.l.b16 %v4661
    %v4765 = vunpack.c.l.b16 %v4662
    %v4766 = vunpack.c.l.b16 %v4663
    %v4767 = vunpack.c.l.b16 %v4664
    %v4768 = vunpack.c.l.b16 %v4665
    %v4769 = vunpack.c.l.b16 %v4666
    %v4770 = vunpack.c.l.b16 %v4667
    %v4771 = vunpack.c.l.b16 %v4668
    %v4772 = vunpack.c.l.b16 %v4669
    %v4773 = vunpack.c.l.b16 %v4670
    %v4774 = vunpack.c.l.b16 %v4671
    %v4775 = vunpack.c.l.b16 %v4672
    %v4776 = vunpack.c.l.b16 %v4673
    %v4777 = vunpack.c.l.b16 %v4674
    %v4778 = vunpack.c.l.b16 %v4675
    %v4779 = vunpack.c.l.b16 %v4676
    %v4780 = vunpack.c.l.b16 %v4677
    %v4781 = vpack.c.b16 %v4734, %v4733
    %v4782 = vpack.c.b16 %v4736, %v4735
    %v4783 = vpack.c.b16 %v4738, %v4737
    %v4784 = vpack.c.b16 %v4740, %v4739
    %v4785 = vpack.c.b16 %v4742, %v4741
    %v4786 = vpack.c.b16 %v4744, %v4743
    %v4787 = vpack.c.b16 %v4746, %v4745
    %v4788 = vpack.c.b16 %v4748, %v4747
    %v4789 = vpack.c.b16 %v4750, %v4749
    %v4790 = vpack.c.b16 %v4752, %v4751
    %v4791 = vpack.c.b16 %v4754, %v4753
    %v4792 = vpack.c.b16 %v4756, %v4755
    %v4793 = vpack.c.b16 %v4758, %v4757
    %v4794 = vpack.c.b16 %v4760, %v4759
    %v4795 = vpack.c.b16 %v4762, %v4761
    %v4796 = vpack.c.b16 %v4764, %v4763
    %v4797 = vpack.c.b16 %v4766, %v4765
    %v4798 = vpack.c.b16 %v4768, %v4767
    %v4799 = vpack.c.b16 %v4770, %v4769
    %v4800 = vpack.c.b16 %v4772, %v4771
    %v4801 = vpack.c.b16 %v4774, %v4773
    %v4802 = vpack.c.b16 %v4776, %v4775
    %v4803 = vpack.c.b16 %v4778, %v4777
    %v4804 = vpack.c.b16 %v4780, %v4779
    %4829 = vmatprep.subr.bf16.mxu0 0
    %4830 = vmatpush1.bf16.msra.mxu0 %v4781
    %4831 = vmatprep.subr.bf16.mxu0 0
    %4832 = vmatpush1.bf16.msra.mxu0 %v4782
    %4833 = vmatprep.subr.bf16.mxu0 0
    %4834 = vmatpush1.bf16.msra.mxu0 %v4783
    %4835 = vmatprep.subr.bf16.mxu0 0
    %4836 = vmatpush1.bf16.msra.mxu0 %v4784
    %4837 = vmatprep.subr.bf16.mxu0 0
    %4838 = vmatpush1.bf16.msra.mxu0 %v4785
    %4839 = vmatprep.subr.bf16.mxu0 0
    %4840 = vmatpush1.bf16.msra.mxu0 %v4786
    %4841 = vmatprep.subr.bf16.mxu0 0
    %4842 = vmatpush1.bf16.msra.mxu0 %v4787
    %4843 = vmatprep.subr.bf16.mxu0 0
    %4844 = vmatpush1.bf16.msra.mxu0 %v4788
    %4845 = vmatprep.subr.bf16.mxu0 0
    %4846 = vmatpush1.bf16.msra.mxu0 %v4789
    %4847 = vmatprep.subr.bf16.mxu0 0
    %4848 = vmatpush1.bf16.msra.mxu0 %v4790
    %4849 = vmatprep.subr.bf16.mxu0 0
    %4850 = vmatpush1.bf16.msra.mxu0 %v4791
    %4851 = vmatprep.subr.bf16.mxu0 0
    %4852 = vmatpush1.bf16.msra.mxu0 %v4792
    %4853 = vmatprep.subr.bf16.mxu0 0
    %4854 = vmatpush1.bf16.msra.mxu0 %v4793
    %4855 = vmatprep.subr.bf16.mxu0 0
    %4856 = vmatpush1.bf16.msra.mxu0 %v4794
    %4857 = vmatprep.subr.bf16.mxu0 0
    %4858 = vmatpush1.bf16.msra.mxu0 %v4795
    %4859 = vmatprep.subr.bf16.mxu0 0
    %4860 = vmatpush1.bf16.msra.mxu0 %v4796
    %4861 = vmatprep.mubr.bf16.mxu0 %v4628
    %4862 = vmatmul.mubr.bf16.gmra.mrb[0].mxu0 %v4627
    %v4863 = vpop.f32.mrb[0].mxu0
    %v4864 = vadd.f32 %v4683, %v4863
    %v4865 = vpop.f32.mrb[0].mxu0
    %v4866 = vpop.f32.mrb[0].mxu0
    %v4867 = vpop.f32.mrb[0].mxu0
    %4868 = vdwg.mxu0
    %4869 = vmatprep.subr.bf16.mxu0 0
    %4870 = vmatpush1.bf16.msra.mxu0 %v4797
    %4871 = vmatprep.subr.bf16.mxu0 0
    %4872 = vmatpush1.bf16.msra.mxu0 %v4798
    %4873 = vmatprep.subr.bf16.mxu0 0
    %4874 = vmatpush1.bf16.msra.mxu0 %v4799
    %4875 = vmatprep.subr.bf16.mxu0 0
    %4876 = vmatpush1.bf16.msra.mxu0 %v4800
    %4877 = vmatprep.subr.bf16.mxu0 0
    %4878 = vmatpush1.bf16.msra.mxu0 %v4801
    %4879 = vmatprep.subr.bf16.mxu0 0
    %4880 = vmatpush1.bf16.msra.mxu0 %v4802
    %4881 = vmatprep.subr.bf16.mxu0 0
    %4882 = vmatpush1.bf16.msra.mxu0 %v4803
    %4883 = vmatprep.subr.bf16.mxu0 0
    %4884 = vmatpush1.bf16.msra.mxu0 %v4804
    %4885 = vmatprep.subr.bf16.mxu0 0
    %4886 = vmatpush1.bf16.msra.mxu0 0
    %4887 = vmatprep.subr.bf16.mxu0 0
    %4888 = vmatpush1.bf16.msra.mxu0 0
    %4889 = vmatprep.subr.bf16.mxu0 0
    %4890 = vmatpush1.bf16.msra.mxu0 0
    %4891 = vmatprep.subr.bf16.mxu0 0
    %4892 = vmatpush1.bf16.msra.mxu0 0
    %4893 = vmatprep.subr.bf16.mxu0 0
    %4894 = vmatpush1.bf16.msra.mxu0 0
    %4895 = vmatprep.subr.bf16.mxu0 0
    %4896 = vmatpush1.bf16.msra.mxu0 0
    %4897 = vmatprep.subr.bf16.mxu0 0
    %4898 = vmatpush1.bf16.msra.mxu0 0
    %4899 = vmatprep.subr.bf16.mxu0 0
    %4900 = vmatpush1.bf16.msra.mxu0 0
    %4901 = vmatprep.mubr.bf16.mxu0 0
    %4902 = vmatmul.mubr.bf16.gmra.mrb[0].mxu0 %v4629
    %v4903 = vpop.f32.mrb[0].mxu0
    %v4904 = vadd.f32 %v4864, %v4903
    %v4905 = vpop.f32.mrb[0].mxu0
    %v4906 = vpop.f32.mrb[0].mxu0
    %v4907 = vpop.f32.mrb[0].mxu0
    %4908 = vdwg.mxu0
    %v4909 = vmax.f32 %v4904, 0.0
    %v4910 = vpack.c.bf16 %v4909, %v4909
    %v4911 = vld [vmem:[#allocation22] sm:$0xf]
    %v4912 = vld [vmem:[#allocation22 + $0x4] sm:$0xf]
    %v4913 = vld [vmem:[#allocation22 + $0x8] sm:$0xf]
    %v4914 = vld [vmem:[#allocation22 + $0xc] sm:$0xf]
    %v4915 = vld [vmem:[#allocation22 + $0x10] sm:$0xf]
    %v4916 = vld [vmem:[#allocation22 + $0x14] sm:$0xf]
    %v4917 = vld [vmem:[#allocation22 + $0x18] sm:$0xf]
    %v4918 = vld [vmem:[#allocation22 + $0x1c] sm:$0xf]
    %v4919 = vld [vmem:[#allocation22 + $0x20] sm:$0xf]
    %v4920 = vld [vmem:[#allocation22 + $0x24] sm:$0xf]
    %v4921 = vld [vmem:[#allocation22 + $0x28] sm:$0xf]
    %v4922 = vld [vmem:[#allocation22 + $0x2c] sm:$0xf]
    %v4923 = vld [vmem:[#allocation22 + $0x30] sm:$0xf]
    %v4924 = vld [vmem:[#allocation22 + $0x34] sm:$0xf]
    %v4925 = vld [vmem:[#allocation22 + $0x38] sm:$0xf]
    %v4926 = vld [vmem:[#allocation22 + $0x3c] sm:$0xf]
    %v4927 = vld [vmem:[#allocation24] sm:$0x1]
    %v4929 = vlaneseq
    %v4930 = vshrl.u32 %v4929, 7
    %v4931 = vsub.s32 0, %v4930
    %v4932 = vrot.slane %v4927, %v4931
    %v4950 = vunpack.c.l.b16 %v4911
    %v4951 = vunpack.c.l.b16 %v4912
    %v4952 = vunpack.c.l.b16 %v4913
    %v4953 = vunpack.c.l.b16 %v4914
    %v4954 = vunpack.c.l.b16 %v4915
    %v4955 = vunpack.c.l.b16 %v4916
    %v4956 = vunpack.c.l.b16 %v4917
    %v4957 = vunpack.c.l.b16 %v4918
    %v4958 = vunpack.c.l.b16 %v4919
    %v4959 = vunpack.c.l.b16 %v4920
    %v4960 = vunpack.c.l.b16 %v4921
    %v4961 = vunpack.c.l.b16 %v4922
    %v4962 = vunpack.c.l.b16 %v4923
    %v4963 = vunpack.c.l.b16 %v4924
    %v4964 = vunpack.c.l.b16 %v4925
    %v4965 = vunpack.c.l.b16 %v4926
    %v4966 = vpack.c.b16 %v4951, %v4950
    %v4967 = vpack.c.b16 %v4953, %v4952
    %v4968 = vpack.c.b16 %v4955, %v4954
    %v4969 = vpack.c.b16 %v4957, %v4956
    %v4970 = vpack.c.b16 %v4959, %v4958
    %v4971 = vpack.c.b16 %v4961, %v4960
    %v4972 = vpack.c.b16 %v4963, %v4962
    %v4973 = vpack.c.b16 %v4965, %v4964
    %4982 = vmatprep.subr.bf16.mxu0 0
    %4983 = vmatpush1.bf16.msra.mxu0 %v4966
    %4984 = vmatprep.subr.bf16.mxu0 0
    %4985 = vmatpush1.bf16.msra.mxu0 %v4967
    %4986 = vmatprep.subr.bf16.mxu0 0
    %4987 = vmatpush1.bf16.msra.mxu0 %v4968
    %4988 = vmatprep.subr.bf16.mxu0 0
    %4989 = vmatpush1.bf16.msra.mxu0 %v4969
    %4990 = vmatprep.subr.bf16.mxu0 0
    %4991 = vmatpush1.bf16.msra.mxu0 %v4970
    %4992 = vmatprep.subr.bf16.mxu0 0
    %4993 = vmatpush1.bf16.msra.mxu0 %v4971
    %4994 = vmatprep.subr.bf16.mxu0 0
    %4995 = vmatpush1.bf16.msra.mxu0 %v4972
    %4996 = vmatprep.subr.bf16.mxu0 0
    %4997 = vmatpush1.bf16.msra.mxu0 %v4973
    %4998 = vmatprep.subr.bf16.mxu0 0
    %4999 = vmatpush1.bf16.msra.mxu0 0
    %5000 = vmatprep.subr.bf16.mxu0 0
    %5001 = vmatpush1.bf16.msra.mxu0 0
    %5002 = vmatprep.subr.bf16.mxu0 0
    %5003 = vmatpush1.bf16.msra.mxu0 0
    %5004 = vmatprep.subr.bf16.mxu0 0
    %5005 = vmatpush1.bf16.msra.mxu0 0
    %5006 = vmatprep.subr.bf16.mxu0 0
    %5007 = vmatpush1.bf16.msra.mxu0 0
    %5008 = vmatprep.subr.bf16.mxu0 0
    %5009 = vmatpush1.bf16.msra.mxu0 0
    %5010 = vmatprep.subr.bf16.mxu0 0
    %5011 = vmatpush1.bf16.msra.mxu0 0
    %5012 = vmatprep.subr.bf16.mxu0 0
    %5013 = vmatpush1.bf16.msra.mxu0 0
    %5014 = vmatprep.mubr.bf16.mxu0 0
    %5015 = vmatmul.mubr.bf16.gmra.mrb[0].mxu0 %v4910
    %v5016 = vpop.f32.mrb[0].mxu0
    %v5017 = vadd.f32 %v4932, %v5016
    %v5018 = vpop.f32.mrb[0].mxu0
    %v5019 = vpop.f32.mrb[0].mxu0
    %v5020 = vpop.f32.mrb[0].mxu0
    %5021 = vdwg.mxu0
    %5022 = vst [vmem:[#allocation25] sm:$0xff] %v5017
    // Predicated region
    $region78: #{tpu_custom_call.1} parent=1 // pred_check
      _
    $region79: #{tpu_custom_call.1} parent=1 // pred_check_branch
      %5024 = sbr.rel (0) target = $region81
    $region80: #{tpu_custom_call.1} parent=1 // pred_region
      %s5026 = ssub.s32 128, 128
      %5027 = vsyncadd [#allocation12], %s5026
      %s5029 = sshll.u32 [#allocation25], 4
      %s5030 = int_to_ptr.vmem [resolvable:$true] %s5029
      %5032 = dma.vmem_to_hbm [thread:$0]  %s5030, 128, %s13, [#allocation12]
    $region81: #{tpu_custom_call.1} parent=1 // pred_fallthru
      _
    // Predicated region
    $region82: #{tpu_custom_call.1} parent=1 // pred_check
      _
    $region83: #{tpu_custom_call.1} parent=1 // pred_check_branch
      %5034 = sbr.rel (0) target = $region85
    $region84: #{tpu_custom_call.1} parent=1 // pred_region
      %5035 = dma.done [#allocation12], 128
    $region85: #{tpu_custom_call.1} parent=1 // pred_fallthru
      _
    %5036 = vsyncpa [#allocation11], 1
    %5037 = vsyncpa [#allocation14], 1
    %5038 = vsyncpa [#allocation17], 1
    %5039 = vsyncpa [#allocation20], 1
    %5040 = vsyncpa [#allocation23], 1
    %5041 = vsyncpa [#allocation12], 1
  %5042 = vsyncmov [#allocation9]
  %s5043 = vpop.sfrf %5042
  %p5044 = scmp.eq.s32.totalorder %s5043, 0
  %p5045 = pneg %p5044
  %5047 = shalt.err (%p5045)
  %s5048 = scalar_lea.sflag [#allocation9], 1
  %5049 = vsyncmov %s5048
  %s5050 = vpop.sfrf %5049
  %p5051 = scmp.eq.s32.totalorder %s5050, 0
  %p5052 = pneg %p5051
  %5054 = shalt.err (%p5052)
  %s5055 = scalar_lea.sflag [#allocation9], 2
  %5056 = vsyncmov %s5055
  %s5057 = vpop.sfrf %5056
  %p5058 = scmp.eq.s32.totalorder %s5057, 0
  %p5059 = pneg %p5058
  %5061 = shalt.err (%p5059)
  %s5062 = scalar_lea.sflag [#allocation9], 3
  %5063 = vsyncmov %s5062
  %s5064 = vpop.sfrf %5063
  %p5065 = scmp.eq.s32.totalorder %s5064, 0
  %p5066 = pneg %p5065
  %5068 = shalt.err (%p5066)

</llo_original>
